<compile_context>
chip_gen: v5e
topology: v5e:2x2
jax: 0.10.0
libtpu: 0.0.40
codegen_flags: <defaults>
</compile_context>

<pallas_src>
import functools

import jax
import jax.numpy as jnp
import numpy as np
from jax import lax
from jax.experimental import pallas as pl
from jax.experimental.pallas import tpu as pltpu


def _round_up(a, b):
    return ((a + b - 1) // b) * b


# ----------------------------------------------------------------------------
# Host-side (one-time) weight preprocessing
# ----------------------------------------------------------------------------
def _row_tap_matrices(w_t, w_in_len, w_out_len, k, s=2, p=1):
    """Per-vertical-tap matrices for ConvTranspose2d (stride s, padding p).

    w_t: PyTorch weight (Cin, Cout, kH, kW).  mats[i] maps a flattened input row
    (w-major, cin-minor) to the contribution of vertical tap i to a flattened
    output row (w-major, cout-minor):
        out[wo*Cout + co] += in[wi*Cin + ci] * W[ci, co, i, j],  wo = s*wi - p + j.
    """
    w = np.asarray(w_t, np.float32)
    cin, cout = w.shape[0], w.shape[1]
    mats = np.zeros((k, w_in_len * cin, w_out_len * cout), np.float32)
    for i in range(k):
        for wi in range(w_in_len):
            for j in range(k):
                wo = s * wi - p + j
                if 0 <= wo < w_out_len:
                    mats[i, wi * cin:(wi + 1) * cin,
                         wo * cout:(wo + 1) * cout] = w[:, :, i, j]
    return mats


def _combined_matrix(mats, kp_half, np_half):
    """Build [[M_even, M_cur],[0, M_next]] so [xc||xn] @ M -> [even_row||odd_row].

    even row 2m   = xc @ mats[1]
    odd  row 2m+1 = xc @ mats[2] (k=3 only) + xn @ mats[0]
    Input halves are kp_half wide, output halves np_half wide (zero padded).
    """
    k, kreal, nreal = mats.shape
    m = np.zeros((2 * kp_half, 2 * np_half), np.float32)
    m[:kreal, :nreal] = mats[1]
    if k == 3:
        m[:kreal, np_half:np_half + nreal] = mats[2]
    m[kp_half:kp_half + kreal, np_half:np_half + nreal] = mats[0]
    return m


def _pair_bias(b, w_out, np_half):
    row = np.tile(np.asarray(b, np.float32), w_out)
    bt = np.zeros((1, 2 * np_half), np.float32)
    bt[0, :row.size] = row
    bt[0, np_half:np_half + row.size] = row
    return bt


def prepare_decoder_params(params):
    """Fold all layout transforms into kernel-ready constants (done once)."""
    mxu = jnp.bfloat16
    channels = int(params["w3"].shape[1])
    wc = 28 * channels
    np3 = _round_up(wc, 128)

    # Linear: permute output columns from view(-1,64,4,4) order (c,h,w) to NHWC
    # row order (h,w,c) so the kernel emits (4, 4*64) spatial rows directly.
    perm = np.zeros(1024, np.int64)
    for h in range(4):
        for w in range(4):
            for c in range(64):
                perm[h * 256 + w * 64 + c] = c * 16 + h * 4 + w
    w_lin_p = np.asarray(params["w_lin"], np.float32)[:, perm]
    b_lin_p = np.asarray(params["b_lin"], np.float32)[perm]

    m1 = _row_tap_matrices(params["w1"], 4, 7, 2)      # (2, 256, 224)
    m2 = _row_tap_matrices(params["w2"], 7, 14, 3)     # (3, 224, 224)
    m3 = _row_tap_matrices(params["w3"], 14, 28, 3)    # (3, 224, 28*C)

    return {
        "w_lin": jnp.asarray(w_lin_p, mxu),
        "b_lin": jnp.asarray(b_lin_p.reshape(1, 1024), jnp.float32),
        "m1": jnp.asarray(_combined_matrix(m1, 256, 256), mxu),   # (512, 512)
        "b1": jnp.asarray(_pair_bias(params["b1"], 7, 256), jnp.float32),
        "m2": jnp.asarray(_combined_matrix(m2, 256, 256), mxu),   # (512, 512)
        "b2": jnp.asarray(_pair_bias(params["b2"], 14, 256), jnp.float32),
        "m3": jnp.asarray(_combined_matrix(m3, 256, np3), mxu),   # (512, 2*np3)
        "b3": jnp.asarray(_pair_bias(params["b3"], 28, np3), jnp.float32),
    }


# ----------------------------------------------------------------------------
# Fused decoder kernel: Linear + 3 ConvTranspose2d layers, TB batch elements
# per grid step.  Scratch layout: slab r (= spatial row r) occupies rows
# [r*TB, (r+1)*TB) and 256 lanes; all slices/stores are slab-aligned.
# ----------------------------------------------------------------------------
def _decoder_kernel(x_ref, wlin_ref, blin_ref, m1_ref, b1_ref,
                    m2_ref, b2_ref, m3_ref, b3_ref,
                    o_ref, a0, a1, a2):
    f32 = jnp.float32
    mxu = jnp.bfloat16
    TB = x_ref.shape[0]

    def pair_matmul(xc, xn, m_ref, b_ref):
        lhs = jnp.concatenate([xc.astype(mxu), xn.astype(mxu)], axis=1)
        return jnp.dot(lhs, m_ref[...], preferred_element_type=f32) + b_ref[...]

    # ---- expand: Linear(E->1024) + ReLU, one (TB,E)@(E,256) matmul per row h --
    x = x_ref[...].astype(mxu)                                   # (TB, E)
    for h in range(4):
        y = jnp.dot(x, wlin_ref[:, h * 256:(h + 1) * 256],
                    preferred_element_type=f32) + blin_ref[:, h * 256:(h + 1) * 256]
        a0[h * TB:(h + 1) * TB, :] = jnp.maximum(y, 0.0)
    a0[4 * TB:5 * TB, :] = jnp.zeros((TB, 256), f32)             # shift pad slab

    # ---- deconv1: (64->32, k=2, s=2, p=1, op=1) + ReLU, 4x4 -> 7x7 ----------
    y = jnp.maximum(pair_matmul(a0[0:4 * TB, :], a0[TB:5 * TB, :],
                                m1_ref, b1_ref), 0.0)            # (4*TB, 512)
    for m in range(4):
        a1[(2 * m) * TB:(2 * m + 1) * TB, :] = y[m * TB:(m + 1) * TB, 0:256]
    for m in range(3):                                            # row 7 junk dropped
        a1[(2 * m + 1) * TB:(2 * m + 2) * TB, :] = y[m * TB:(m + 1) * TB, 256:512]
    a1[7 * TB:8 * TB, :] = jnp.zeros((TB, 256), f32)             # row-7 zero pad

    # ---- deconv2: (32->16, k=3, s=2, p=1, op=1) + ReLU, 7x7 -> 14x14 --------
    y = jnp.maximum(pair_matmul(a1[0:7 * TB, :], a1[TB:8 * TB, :],
                                m2_ref, b2_ref), 0.0)            # (7*TB, 512)
    for m in range(7):
        a2[(2 * m) * TB:(2 * m + 1) * TB, :] = y[m * TB:(m + 1) * TB, 0:256]
        a2[(2 * m + 1) * TB:(2 * m + 2) * TB, :] = y[m * TB:(m + 1) * TB, 256:512]
    a2[14 * TB:15 * TB, :] = jnp.zeros((TB, 256), f32)           # row-14 zero pad

    # ---- deconv3: (16->C, k=3, s=2, p=1, op=1) + Sigmoid, 14x14 -> 28x28 ----
    # One lane-dense block store of all 14 [even||odd] row pairs for TB elems.
    o_ref[...] = jax.nn.sigmoid(pair_matmul(a2[0:14 * TB, :], a2[TB:15 * TB, :],
                                            m3_ref, b3_ref))


def _const_index_map(ndim):
    zeros = (0,) * ndim
    return lambda g: zeros


def _decoder_forward(x, kp, channels, block_b=32):
    B, E = x.shape
    wc = 28 * channels
    np3 = _round_up(wc, 128)

    TB = min(_round_up(block_b, 8), _round_up(B, 8))   # multiple of 8
    B_pad = _round_up(B, TB)
    NB = B_pad // TB
    x_pad = x if B_pad == B else jnp.pad(x, ((0, B_pad - B), (0, 0)))

    consts = (kp["w_lin"], kp["b_lin"], kp["m1"], kp["b1"],
              kp["m2"], kp["b2"], kp["m3"], kp["b3"])
    const_specs = [pl.BlockSpec(c.shape, _const_index_map(c.ndim)) for c in consts]

    out = pl.pallas_call(
        _decoder_kernel,
        out_shape=jax.ShapeDtypeStruct((NB * 14 * TB, 2 * np3), jnp.float32),
        grid=(NB,),
        in_specs=[pl.BlockSpec((TB, E), lambda g: (g, 0))] + const_specs,
        out_specs=pl.BlockSpec((14 * TB, 2 * np3), lambda g: (g, 0)),
        scratch_shapes=[
            pltpu.VMEM((5 * TB, 256), jnp.float32),    # Linear rows + pad slab
            pltpu.VMEM((8 * TB, 256), jnp.float32),    # 7x7 rows + zero pad slab
            pltpu.VMEM((15 * TB, 256), jnp.float32),   # 14x14 rows + zero pad slab
        ],
        compiler_params=pltpu.CompilerParams(
            dimension_semantics=("parallel",)),
    )(x_pad, *consts)

    # Free wrapper-side de-interleave: rows are (block, pair m, element t),
    # lanes are [even row (np3) || odd row (np3)] with real width wc = 28*C.
    out = out.reshape(NB, 14, TB, 2, np3)[..., :wc]
    out = out.transpose(0, 2, 1, 3, 4).reshape(NB * TB, 28, 28, channels)
    return out[:B]


decoder_forward = jax.jit(_decoder_forward, static_argnames=("channels", "block_b"))


# ----------------------------------------------------------------------------
# Pure-JAX reference (PyTorch semantics)
# ----------------------------------------------------------------------------
def _ref_conv_transpose(x_nhwc, w_t, bias, stride, padding, output_padding, act):
    kH = w_t.shape[2]
    pb = kH - 1 - padding
    pa = kH - 1 - padding + output_padding
    w_flip = w_t[:, :, ::-1, ::-1]
    w_hwio = jnp.transpose(w_flip, (2, 3, 0, 1))
    y = lax.conv_general_dilated(
        x_nhwc, w_hwio, window_strides=(1, 1),
        padding=[(pb, pa), (pb, pa)], lhs_dilation=(stride, stride),
        dimension_numbers=("NHWC", "HWIO", "NHWC"))
    y = y + bias.reshape(1, 1, 1, -1)
    if act == "relu":
        return jnp.maximum(y, 0.0)
    return jax.nn.sigmoid(y)


def decoder_forward_ref(x, params):
    h = jnp.maximum(jnp.dot(x, params["w_lin"]) + params["b_lin"], 0.0)
    B = x.shape[0]
    h = h.reshape(B, 64, 4, 4).transpose(0, 2, 3, 1)
    h = _ref_conv_transpose(h, params["w1"], params["b1"], 2, 1, 1, "relu")
    h = _ref_conv_transpose(h, params["w2"], params["b2"], 2, 1, 1, "relu")
    h = _ref_conv_transpose(h, params["w3"], params["b3"], 2, 1, 1, "sigmoid")
    return h


# ----------------------------------------------------------------------------
# Deterministic parameter init (PyTorch layouts) + demo
# ----------------------------------------------------------------------------
def init_params(key, encoding_dim, channels):
    ks = jax.random.split(key, 8)
    scale = 0.1
    return {
        "w_lin": scale * jax.random.normal(ks[0], (encoding_dim, 1024), jnp.float32),
        "b_lin": scale * jax.random.normal(ks[1], (1024,), jnp.float32),
        "w1": scale * jax.random.normal(ks[2], (64, 32, 2, 2), jnp.float32),
        "b1": scale * jax.random.normal(ks[3], (32,), jnp.float32),
        "w2": scale * jax.random.normal(ks[4], (32, 16, 3, 3), jnp.float32),
        "b2": scale * jax.random.normal(ks[5], (16,), jnp.float32),
        "w3": scale * jax.random.normal(ks[6], (16, channels, 3, 3), jnp.float32),
        "b3": scale * jax.random.normal(ks[7], (channels,), jnp.float32),
    }


if __name__ == "__main__":
    B, encoding_dim, channels = 2, 32, 3
    key = jax.random.PRNGKey(0)
    pkey, xkey = jax.random.split(key)
    params = init_params(pkey, encoding_dim, channels)
    kparams = prepare_decoder_params(params)

    x = jax.random.normal(xkey, (B, encoding_dim), jnp.float32)
    out = jax.block_until_ready(decoder_forward(x, kparams, channels=channels))
    assert out.shape == (B, 28, 28, channels), out.shape
    ref = jax.block_until_ready(decoder_forward_ref(x, params))
    np.testing.assert_allclose(np.asarray(out), np.asarray(ref), rtol=2e-2, atol=2e-2)

    # Extra check: batch not a multiple of the block -> padding + multi-step grid.
    x2 = jax.random.normal(jax.random.PRNGKey(1), (11, encoding_dim), jnp.float32)
    out2 = jax.block_until_ready(
        decoder_forward(x2, kparams, channels=channels, block_b=8))
    ref2 = decoder_forward_ref(x2, params)
    np.testing.assert_allclose(np.asarray(out2), np.asarray(ref2), rtol=2e-2, atol=2e-2)

    print("KERNEL_OK")
</pallas_src>

<mosaic_0001>
module attributes {stable_mosaic.version = 11 : i64} {
  func.func @_decoder_kernel(%arg0: i32, %arg1: memref<8x32xf32, #tpu.memory_space<vmem>>, %arg2: memref<32x1024xbf16, #tpu.memory_space<vmem>>, %arg3: memref<1x1024xf32, #tpu.memory_space<vmem>>, %arg4: memref<512x512xbf16, #tpu.memory_space<vmem>>, %arg5: memref<1x512xf32, #tpu.memory_space<vmem>>, %arg6: memref<512x512xbf16, #tpu.memory_space<vmem>>, %arg7: memref<1x512xf32, #tpu.memory_space<vmem>>, %arg8: memref<512x256xbf16, #tpu.memory_space<vmem>>, %arg9: memref<1x256xf32, #tpu.memory_space<vmem>>, %arg10: memref<112x256xf32, #tpu.memory_space<vmem>>, %arg11: memref<40x256xf32, #tpu.memory_space<vmem>>, %arg12: memref<64x256xf32, #tpu.memory_space<vmem>>, %arg13: memref<120x256xf32, #tpu.memory_space<vmem>>) attributes {dimension_semantics = [#tpu.dimension_semantics<parallel>], iteration_bounds = array<i64: 1>, scalar_prefetch = 0 : i64, scratch_operands = 3 : i64, tpu.core_type = #tpu.core_type<tc>, window_params = [{transform_indices = @transform_0, window_bounds = array<i64: 8, 32>}, {pipeline_mode = #tpu.pipeline_mode<synchronous>, transform_indices = @transform_1, window_bounds = array<i64: 32, 1024>}, {pipeline_mode = #tpu.pipeline_mode<synchronous>, transform_indices = @transform_2, window_bounds = array<i64: 1, 1024>}, {pipeline_mode = #tpu.pipeline_mode<synchronous>, transform_indices = @transform_3, window_bounds = array<i64: 512, 512>}, {pipeline_mode = #tpu.pipeline_mode<synchronous>, transform_indices = @transform_4, window_bounds = array<i64: 1, 512>}, {pipeline_mode = #tpu.pipeline_mode<synchronous>, transform_indices = @transform_5, window_bounds = array<i64: 512, 512>}, {pipeline_mode = #tpu.pipeline_mode<synchronous>, transform_indices = @transform_6, window_bounds = array<i64: 1, 512>}, {pipeline_mode = #tpu.pipeline_mode<synchronous>, transform_indices = @transform_7, window_bounds = array<i64: 512, 256>}, {pipeline_mode = #tpu.pipeline_mode<synchronous>, transform_indices = @transform_8, window_bounds = array<i64: 1, 256>}, {transform_indices = @transform_9, window_bounds = array<i64: 112, 256>}]} {
    %c0 = arith.constant 0 : index
    %c0_0 = arith.constant 0 : index
    %0 = vector.load %arg1[%c0, %c0_0] : memref<8x32xf32, #tpu.memory_space<vmem>>, vector<8x32xf32>
    %1 = arith.truncf %0 : vector<8x32xf32> to vector<8x32xbf16>
    %c0_1 = arith.constant 0 : index
    %c0_2 = arith.constant 0 : index
    %2 = vector.load %arg2[%c0_1, %c0_2] : memref<32x1024xbf16, #tpu.memory_space<vmem>>, vector<32x256xbf16>
    %cst = arith.constant dense<0.000000e+00> : vector<8x256xf32>
    %3 = tpu.matmul %1, %2, %cst {dimension_numbers = #tpu.dot_dimension_numbers<[1], [0], [0], [1], [0, 0, 1, 1], [], []>} : vector<8x32xbf16>, vector<32x256xbf16>, vector<8x256xf32> -> vector<8x256xf32>
    %c0_3 = arith.constant 0 : index
    %c0_4 = arith.constant 0 : index
    %4 = vector.load %arg3[%c0_3, %c0_4] : memref<1x1024xf32, #tpu.memory_space<vmem>>, vector<1x256xf32>
    %5 = vector.broadcast %4 : vector<1x256xf32> to vector<8x256xf32>
    %6 = arith.addf %3, %5 : vector<8x256xf32>
    %cst_5 = arith.constant 0.000000e+00 : f32
    %7 = vector.broadcast %cst_5 : f32 to vector<8x256xf32>
    %8 = arith.maximumf %6, %7 : vector<8x256xf32>
    %c0_6 = arith.constant 0 : index
    %c0_7 = arith.constant 0 : index
    %9 = vector.load %arg11[%c0_6, %c0_7] : memref<40x256xf32, #tpu.memory_space<vmem>>, vector<8x256xf32>
    tpu.vector_store %arg11[%c0_6, %c0_7], %8 {strides = array<i32>} : memref<40x256xf32, #tpu.memory_space<vmem>>, vector<8x256xf32>,
    %c0_8 = arith.constant 0 : index
    %c256 = arith.constant 256 : index
    %10 = vector.load %arg2[%c0_8, %c256] : memref<32x1024xbf16, #tpu.memory_space<vmem>>, vector<32x256xbf16>
    %cst_9 = arith.constant dense<0.000000e+00> : vector<8x256xf32>
    %11 = tpu.matmul %1, %10, %cst_9 {dimension_numbers = #tpu.dot_dimension_numbers<[1], [0], [0], [1], [0, 0, 1, 1], [], []>} : vector<8x32xbf16>, vector<32x256xbf16>, vector<8x256xf32> -> vector<8x256xf32>
    %c0_10 = arith.constant 0 : index
    %c256_11 = arith.constant 256 : index
    %12 = vector.load %arg3[%c0_10, %c256_11] : memref<1x1024xf32, #tpu.memory_space<vmem>>, vector<1x256xf32>
    %13 = vector.broadcast %12 : vector<1x256xf32> to vector<8x256xf32>
    %14 = arith.addf %11, %13 : vector<8x256xf32>
    %cst_12 = arith.constant 0.000000e+00 : f32
    %15 = vector.broadcast %cst_12 : f32 to vector<8x256xf32>
    %16 = arith.maximumf %14, %15 : vector<8x256xf32>
    %c8 = arith.constant 8 : index
    %c0_13 = arith.constant 0 : index
    %17 = vector.load %arg11[%c8, %c0_13] : memref<40x256xf32, #tpu.memory_space<vmem>>, vector<8x256xf32>
    tpu.vector_store %arg11[%c8, %c0_13], %16 {strides = array<i32>} : memref<40x256xf32, #tpu.memory_space<vmem>>, vector<8x256xf32>,
    %c0_14 = arith.constant 0 : index
    %c512 = arith.constant 512 : index
    %18 = vector.load %arg2[%c0_14, %c512] : memref<32x1024xbf16, #tpu.memory_space<vmem>>, vector<32x256xbf16>
    %cst_15 = arith.constant dense<0.000000e+00> : vector<8x256xf32>
    %19 = tpu.matmul %1, %18, %cst_15 {dimension_numbers = #tpu.dot_dimension_numbers<[1], [0], [0], [1], [0, 0, 1, 1], [], []>} : vector<8x32xbf16>, vector<32x256xbf16>, vector<8x256xf32> -> vector<8x256xf32>
    %c0_16 = arith.constant 0 : index
    %c512_17 = arith.constant 512 : index
    %20 = vector.load %arg3[%c0_16, %c512_17] : memref<1x1024xf32, #tpu.memory_space<vmem>>, vector<1x256xf32>
    %21 = vector.broadcast %20 : vector<1x256xf32> to vector<8x256xf32>
    %22 = arith.addf %19, %21 : vector<8x256xf32>
    %cst_18 = arith.constant 0.000000e+00 : f32
    %23 = vector.broadcast %cst_18 : f32 to vector<8x256xf32>
    %24 = arith.maximumf %22, %23 : vector<8x256xf32>
    %c16 = arith.constant 16 : index
    %c0_19 = arith.constant 0 : index
    %25 = vector.load %arg11[%c16, %c0_19] : memref<40x256xf32, #tpu.memory_space<vmem>>, vector<8x256xf32>
    tpu.vector_store %arg11[%c16, %c0_19], %24 {strides = array<i32>} : memref<40x256xf32, #tpu.memory_space<vmem>>, vector<8x256xf32>,
    %c0_20 = arith.constant 0 : index
    %c768 = arith.constant 768 : index
    %26 = vector.load %arg2[%c0_20, %c768] : memref<32x1024xbf16, #tpu.memory_space<vmem>>, vector<32x256xbf16>
    %cst_21 = arith.constant dense<0.000000e+00> : vector<8x256xf32>
    %27 = tpu.matmul %1, %26, %cst_21 {dimension_numbers = #tpu.dot_dimension_numbers<[1], [0], [0], [1], [0, 0, 1, 1], [], []>} : vector<8x32xbf16>, vector<32x256xbf16>, vector<8x256xf32> -> vector<8x256xf32>
    %c0_22 = arith.constant 0 : index
    %c768_23 = arith.constant 768 : index
    %28 = vector.load %arg3[%c0_22, %c768_23] : memref<1x1024xf32, #tpu.memory_space<vmem>>, vector<1x256xf32>
    %29 = vector.broadcast %28 : vector<1x256xf32> to vector<8x256xf32>
    %30 = arith.addf %27, %29 : vector<8x256xf32>
    %cst_24 = arith.constant 0.000000e+00 : f32
    %31 = vector.broadcast %cst_24 : f32 to vector<8x256xf32>
    %32 = arith.maximumf %30, %31 : vector<8x256xf32>
    %c24 = arith.constant 24 : index
    %c0_25 = arith.constant 0 : index
    %33 = vector.load %arg11[%c24, %c0_25] : memref<40x256xf32, #tpu.memory_space<vmem>>, vector<8x256xf32>
    tpu.vector_store %arg11[%c24, %c0_25], %32 {strides = array<i32>} : memref<40x256xf32, #tpu.memory_space<vmem>>, vector<8x256xf32>,
    %cst_26 = arith.constant 0.000000e+00 : f32
    %34 = vector.broadcast %cst_26 : f32 to vector<8x256xf32>
    %c32 = arith.constant 32 : index
    %c0_27 = arith.constant 0 : index
    %35 = vector.load %arg11[%c32, %c0_27] : memref<40x256xf32, #tpu.memory_space<vmem>>, vector<8x256xf32>
    tpu.vector_store %arg11[%c32, %c0_27], %34 {strides = array<i32>} : memref<40x256xf32, #tpu.memory_space<vmem>>, vector<8x256xf32>,
    %c0_28 = arith.constant 0 : index
    %c0_29 = arith.constant 0 : index
    %36 = vector.load %arg11[%c0_28, %c0_29] : memref<40x256xf32, #tpu.memory_space<vmem>>, vector<32x256xf32>
    %c8_30 = arith.constant 8 : index
    %c0_31 = arith.constant 0 : index
    %37 = vector.load %arg11[%c8_30, %c0_31] : memref<40x256xf32, #tpu.memory_space<vmem>>, vector<32x256xf32>
    %38 = arith.truncf %36 : vector<32x256xf32> to vector<32x256xbf16>
    %39 = arith.truncf %37 : vector<32x256xf32> to vector<32x256xbf16>
    %40 = tpu.concatenate %38, %39 in 1 : vector<32x256xbf16>, vector<32x256xbf16> -> vector<32x512xbf16>
    %c0_32 = arith.constant 0 : index
    %c0_33 = arith.constant 0 : index
    %41 = vector.load %arg4[%c0_32, %c0_33] : memref<512x512xbf16, #tpu.memory_space<vmem>>, vector<512x512xbf16>
    %cst_34 = arith.constant dense<0.000000e+00> : vector<32x512xf32>
    %42 = tpu.matmul %40, %41, %cst_34 {dimension_numbers = #tpu.dot_dimension_numbers<[1], [0], [0], [1], [0, 0, 1, 1], [], []>} : vector<32x512xbf16>, vector<512x512xbf16>, vector<32x512xf32> -> vector<32x512xf32>
    %c0_35 = arith.constant 0 : index
    %c0_36 = arith.constant 0 : index
    %43 = vector.load %arg5[%c0_35, %c0_36] : memref<1x512xf32, #tpu.memory_space<vmem>>, vector<1x512xf32>
    %44 = vector.broadcast %43 : vector<1x512xf32> to vector<32x512xf32>
    %45 = arith.addf %42, %44 : vector<32x512xf32>
    %cst_37 = arith.constant 0.000000e+00 : f32
    %46 = vector.broadcast %cst_37 : f32 to vector<32x512xf32>
    %47 = arith.maximumf %45, %46 : vector<32x512xf32>
    %48 = vector.extract_strided_slice %47 {offsets = [0, 0], sizes = [8, 256], strides = [1, 1]} : vector<32x512xf32> to vector<8x256xf32>
    %c0_38 = arith.constant 0 : index
    %c0_39 = arith.constant 0 : index
    %49 = vector.load %arg12[%c0_38, %c0_39] : memref<64x256xf32, #tpu.memory_space<vmem>>, vector<8x256xf32>
    tpu.vector_store %arg12[%c0_38, %c0_39], %48 {strides = array<i32>} : memref<64x256xf32, #tpu.memory_space<vmem>>, vector<8x256xf32>,
    %50 = vector.extract_strided_slice %47 {offsets = [8, 0], sizes = [8, 256], strides = [1, 1]} : vector<32x512xf32> to vector<8x256xf32>
    %c16_40 = arith.constant 16 : index
    %c0_41 = arith.constant 0 : index
    %51 = vector.load %arg12[%c16_40, %c0_41] : memref<64x256xf32, #tpu.memory_space<vmem>>, vector<8x256xf32>
    tpu.vector_store %arg12[%c16_40, %c0_41], %50 {strides = array<i32>} : memref<64x256xf32, #tpu.memory_space<vmem>>, vector<8x256xf32>,
    %52 = vector.extract_strided_slice %47 {offsets = [16, 0], sizes = [8, 256], strides = [1, 1]} : vector<32x512xf32> to vector<8x256xf32>
    %c32_42 = arith.constant 32 : index
    %c0_43 = arith.constant 0 : index
    %53 = vector.load %arg12[%c32_42, %c0_43] : memref<64x256xf32, #tpu.memory_space<vmem>>, vector<8x256xf32>
    tpu.vector_store %arg12[%c32_42, %c0_43], %52 {strides = array<i32>} : memref<64x256xf32, #tpu.memory_space<vmem>>, vector<8x256xf32>,
    %54 = vector.extract_strided_slice %47 {offsets = [24, 0], sizes = [8, 256], strides = [1, 1]} : vector<32x512xf32> to vector<8x256xf32>
    %c48 = arith.constant 48 : index
    %c0_44 = arith.constant 0 : index
    %55 = vector.load %arg12[%c48, %c0_44] : memref<64x256xf32, #tpu.memory_space<vmem>>, vector<8x256xf32>
    tpu.vector_store %arg12[%c48, %c0_44], %54 {strides = array<i32>} : memref<64x256xf32, #tpu.memory_space<vmem>>, vector<8x256xf32>,
    %56 = vector.extract_strided_slice %47 {offsets = [0, 256], sizes = [8, 256], strides = [1, 1]} : vector<32x512xf32> to vector<8x256xf32>
    %c8_45 = arith.constant 8 : index
    %c0_46 = arith.constant 0 : index
    %57 = vector.load %arg12[%c8_45, %c0_46] : memref<64x256xf32, #tpu.memory_space<vmem>>, vector<8x256xf32>
    tpu.vector_store %arg12[%c8_45, %c0_46], %56 {strides = array<i32>} : memref<64x256xf32, #tpu.memory_space<vmem>>, vector<8x256xf32>,
    %58 = vector.extract_strided_slice %47 {offsets = [8, 256], sizes = [8, 256], strides = [1, 1]} : vector<32x512xf32> to vector<8x256xf32>
    %c24_47 = arith.constant 24 : index
    %c0_48 = arith.constant 0 : index
    %59 = vector.load %arg12[%c24_47, %c0_48] : memref<64x256xf32, #tpu.memory_space<vmem>>, vector<8x256xf32>
    tpu.vector_store %arg12[%c24_47, %c0_48], %58 {strides = array<i32>} : memref<64x256xf32, #tpu.memory_space<vmem>>, vector<8x256xf32>,
    %60 = vector.extract_strided_slice %47 {offsets = [16, 256], sizes = [8, 256], strides = [1, 1]} : vector<32x512xf32> to vector<8x256xf32>
    %c40 = arith.constant 40 : index
    %c0_49 = arith.constant 0 : index
    %61 = vector.load %arg12[%c40, %c0_49] : memref<64x256xf32, #tpu.memory_space<vmem>>, vector<8x256xf32>
    tpu.vector_store %arg12[%c40, %c0_49], %60 {strides = array<i32>} : memref<64x256xf32, #tpu.memory_space<vmem>>, vector<8x256xf32>,
    %cst_50 = arith.constant 0.000000e+00 : f32
    %62 = vector.broadcast %cst_50 : f32 to vector<8x256xf32>
    %c56 = arith.constant 56 : index
    %c0_51 = arith.constant 0 : index
    %63 = vector.load %arg12[%c56, %c0_51] : memref<64x256xf32, #tpu.memory_space<vmem>>, vector<8x256xf32>
    tpu.vector_store %arg12[%c56, %c0_51], %62 {strides = array<i32>} : memref<64x256xf32, #tpu.memory_space<vmem>>, vector<8x256xf32>,
    %c0_52 = arith.constant 0 : index
    %c0_53 = arith.constant 0 : index
    %64 = vector.load %arg12[%c0_52, %c0_53] : memref<64x256xf32, #tpu.memory_space<vmem>>, vector<56x256xf32>
    %c8_54 = arith.constant 8 : index
    %c0_55 = arith.constant 0 : index
    %65 = vector.load %arg12[%c8_54, %c0_55] : memref<64x256xf32, #tpu.memory_space<vmem>>, vector<56x256xf32>
    %66 = arith.truncf %64 : vector<56x256xf32> to vector<56x256xbf16>
    %67 = arith.truncf %65 : vector<56x256xf32> to vector<56x256xbf16>
    %68 = tpu.concatenate %66, %67 in 1 : vector<56x256xbf16>, vector<56x256xbf16> -> vector<56x512xbf16>
    %c0_56 = arith.constant 0 : index
    %c0_57 = arith.constant 0 : index
    %69 = vector.load %arg6[%c0_56, %c0_57] : memref<512x512xbf16, #tpu.memory_space<vmem>>, vector<512x512xbf16>
    %cst_58 = arith.constant dense<0.000000e+00> : vector<56x512xf32>
    %70 = tpu.matmul %68, %69, %cst_58 {dimension_numbers = #tpu.dot_dimension_numbers<[1], [0], [0], [1], [0, 0, 1, 1], [], []>} : vector<56x512xbf16>, vector<512x512xbf16>, vector<56x512xf32> -> vector<56x512xf32>
    %c0_59 = arith.constant 0 : index
    %c0_60 = arith.constant 0 : index
    %71 = vector.load %arg7[%c0_59, %c0_60] : memref<1x512xf32, #tpu.memory_space<vmem>>, vector<1x512xf32>
    %72 = vector.broadcast %71 : vector<1x512xf32> to vector<56x512xf32>
    %73 = arith.addf %70, %72 : vector<56x512xf32>
    %cst_61 = arith.constant 0.000000e+00 : f32
    %74 = vector.broadcast %cst_61 : f32 to vector<56x512xf32>
    %75 = arith.maximumf %73, %74 : vector<56x512xf32>
    %76 = vector.extract_strided_slice %75 {offsets = [0, 0], sizes = [8, 256], strides = [1, 1]} : vector<56x512xf32> to vector<8x256xf32>
    %c0_62 = arith.constant 0 : index
    %c0_63 = arith.constant 0 : index
    %77 = vector.load %arg13[%c0_62, %c0_63] : memref<120x256xf32, #tpu.memory_space<vmem>>, vector<8x256xf32>
    tpu.vector_store %arg13[%c0_62, %c0_63], %76 {strides = array<i32>} : memref<120x256xf32, #tpu.memory_space<vmem>>, vector<8x256xf32>,
    %78 = vector.extract_strided_slice %75 {offsets = [0, 256], sizes = [8, 256], strides = [1, 1]} : vector<56x512xf32> to vector<8x256xf32>
    %c8_64 = arith.constant 8 : index
    %c0_65 = arith.constant 0 : index
    %79 = vector.load %arg13[%c8_64, %c0_65] : memref<120x256xf32, #tpu.memory_space<vmem>>, vector<8x256xf32>
    tpu.vector_store %arg13[%c8_64, %c0_65], %78 {strides = array<i32>} : memref<120x256xf32, #tpu.memory_space<vmem>>, vector<8x256xf32>,
    %80 = vector.extract_strided_slice %75 {offsets = [8, 0], sizes = [8, 256], strides = [1, 1]} : vector<56x512xf32> to vector<8x256xf32>
    %c16_66 = arith.constant 16 : index
    %c0_67 = arith.constant 0 : index
    %81 = vector.load %arg13[%c16_66, %c0_67] : memref<120x256xf32, #tpu.memory_space<vmem>>, vector<8x256xf32>
    tpu.vector_store %arg13[%c16_66, %c0_67], %80 {strides = array<i32>} : memref<120x256xf32, #tpu.memory_space<vmem>>, vector<8x256xf32>,
    %82 = vector.extract_strided_slice %75 {offsets = [8, 256], sizes = [8, 256], strides = [1, 1]} : vector<56x512xf32> to vector<8x256xf32>
    %c24_68 = arith.constant 24 : index
    %c0_69 = arith.constant 0 : index
    %83 = vector.load %arg13[%c24_68, %c0_69] : memref<120x256xf32, #tpu.memory_space<vmem>>, vector<8x256xf32>
    tpu.vector_store %arg13[%c24_68, %c0_69], %82 {strides = array<i32>} : memref<120x256xf32, #tpu.memory_space<vmem>>, vector<8x256xf32>,
    %84 = vector.extract_strided_slice %75 {offsets = [16, 0], sizes = [8, 256], strides = [1, 1]} : vector<56x512xf32> to vector<8x256xf32>
    %c32_70 = arith.constant 32 : index
    %c0_71 = arith.constant 0 : index
    %85 = vector.load %arg13[%c32_70, %c0_71] : memref<120x256xf32, #tpu.memory_space<vmem>>, vector<8x256xf32>
    tpu.vector_store %arg13[%c32_70, %c0_71], %84 {strides = array<i32>} : memref<120x256xf32, #tpu.memory_space<vmem>>, vector<8x256xf32>,
    %86 = vector.extract_strided_slice %75 {offsets = [16, 256], sizes = [8, 256], strides = [1, 1]} : vector<56x512xf32> to vector<8x256xf32>
    %c40_72 = arith.constant 40 : index
    %c0_73 = arith.constant 0 : index
    %87 = vector.load %arg13[%c40_72, %c0_73] : memref<120x256xf32, #tpu.memory_space<vmem>>, vector<8x256xf32>
    tpu.vector_store %arg13[%c40_72, %c0_73], %86 {strides = array<i32>} : memref<120x256xf32, #tpu.memory_space<vmem>>, vector<8x256xf32>,
    %88 = vector.extract_strided_slice %75 {offsets = [24, 0], sizes = [8, 256], strides = [1, 1]} : vector<56x512xf32> to vector<8x256xf32>
    %c48_74 = arith.constant 48 : index
    %c0_75 = arith.constant 0 : index
    %89 = vector.load %arg13[%c48_74, %c0_75] : memref<120x256xf32, #tpu.memory_space<vmem>>, vector<8x256xf32>
    tpu.vector_store %arg13[%c48_74, %c0_75], %88 {strides = array<i32>} : memref<120x256xf32, #tpu.memory_space<vmem>>, vector<8x256xf32>,
    %90 = vector.extract_strided_slice %75 {offsets = [24, 256], sizes = [8, 256], strides = [1, 1]} : vector<56x512xf32> to vector<8x256xf32>
    %c56_76 = arith.constant 56 : index
    %c0_77 = arith.constant 0 : index
    %91 = vector.load %arg13[%c56_76, %c0_77] : memref<120x256xf32, #tpu.memory_space<vmem>>, vector<8x256xf32>
    tpu.vector_store %arg13[%c56_76, %c0_77], %90 {strides = array<i32>} : memref<120x256xf32, #tpu.memory_space<vmem>>, vector<8x256xf32>,
    %92 = vector.extract_strided_slice %75 {offsets = [32, 0], sizes = [8, 256], strides = [1, 1]} : vector<56x512xf32> to vector<8x256xf32>
    %c64 = arith.constant 64 : index
    %c0_78 = arith.constant 0 : index
    %93 = vector.load %arg13[%c64, %c0_78] : memref<120x256xf32, #tpu.memory_space<vmem>>, vector<8x256xf32>
    tpu.vector_store %arg13[%c64, %c0_78], %92 {strides = array<i32>} : memref<120x256xf32, #tpu.memory_space<vmem>>, vector<8x256xf32>,
    %94 = vector.extract_strided_slice %75 {offsets = [32, 256], sizes = [8, 256], strides = [1, 1]} : vector<56x512xf32> to vector<8x256xf32>
    %c72 = arith.constant 72 : index
    %c0_79 = arith.constant 0 : index
    %95 = vector.load %arg13[%c72, %c0_79] : memref<120x256xf32, #tpu.memory_space<vmem>>, vector<8x256xf32>
    tpu.vector_store %arg13[%c72, %c0_79], %94 {strides = array<i32>} : memref<120x256xf32, #tpu.memory_space<vmem>>, vector<8x256xf32>,
    %96 = vector.extract_strided_slice %75 {offsets = [40, 0], sizes = [8, 256], strides = [1, 1]} : vector<56x512xf32> to vector<8x256xf32>
    %c80 = arith.constant 80 : index
    %c0_80 = arith.constant 0 : index
    %97 = vector.load %arg13[%c80, %c0_80] : memref<120x256xf32, #tpu.memory_space<vmem>>, vector<8x256xf32>
    tpu.vector_store %arg13[%c80, %c0_80], %96 {strides = array<i32>} : memref<120x256xf32, #tpu.memory_space<vmem>>, vector<8x256xf32>,
    %98 = vector.extract_strided_slice %75 {offsets = [40, 256], sizes = [8, 256], strides = [1, 1]} : vector<56x512xf32> to vector<8x256xf32>
    %c88 = arith.constant 88 : index
    %c0_81 = arith.constant 0 : index
    %99 = vector.load %arg13[%c88, %c0_81] : memref<120x256xf32, #tpu.memory_space<vmem>>, vector<8x256xf32>
    tpu.vector_store %arg13[%c88, %c0_81], %98 {strides = array<i32>} : memref<120x256xf32, #tpu.memory_space<vmem>>, vector<8x256xf32>,
    %100 = vector.extract_strided_slice %75 {offsets = [48, 0], sizes = [8, 256], strides = [1, 1]} : vector<56x512xf32> to vector<8x256xf32>
    %c96 = arith.constant 96 : index
    %c0_82 = arith.constant 0 : index
    %101 = vector.load %arg13[%c96, %c0_82] : memref<120x256xf32, #tpu.memory_space<vmem>>, vector<8x256xf32>
    tpu.vector_store %arg13[%c96, %c0_82], %100 {strides = array<i32>} : memref<120x256xf32, #tpu.memory_space<vmem>>, vector<8x256xf32>,
    %102 = vector.extract_strided_slice %75 {offsets = [48, 256], sizes = [8, 256], strides = [1, 1]} : vector<56x512xf32> to vector<8x256xf32>
    %c104 = arith.constant 104 : index
    %c0_83 = arith.constant 0 : index
    %103 = vector.load %arg13[%c104, %c0_83] : memref<120x256xf32, #tpu.memory_space<vmem>>, vector<8x256xf32>
    tpu.vector_store %arg13[%c104, %c0_83], %102 {strides = array<i32>} : memref<120x256xf32, #tpu.memory_space<vmem>>, vector<8x256xf32>,
    %cst_84 = arith.constant 0.000000e+00 : f32
    %104 = vector.broadcast %cst_84 : f32 to vector<8x256xf32>
    %c112 = arith.constant 112 : index
    %c0_85 = arith.constant 0 : index
    %105 = vector.load %arg13[%c112, %c0_85] : memref<120x256xf32, #tpu.memory_space<vmem>>, vector<8x256xf32>
    tpu.vector_store %arg13[%c112, %c0_85], %104 {strides = array<i32>} : memref<120x256xf32, #tpu.memory_space<vmem>>, vector<8x256xf32>,
    %c0_86 = arith.constant 0 : index
    %c0_87 = arith.constant 0 : index
    %106 = vector.load %arg13[%c0_86, %c0_87] : memref<120x256xf32, #tpu.memory_space<vmem>>, vector<112x256xf32>
    %c8_88 = arith.constant 8 : index
    %c0_89 = arith.constant 0 : index
    %107 = vector.load %arg13[%c8_88, %c0_89] : memref<120x256xf32, #tpu.memory_space<vmem>>, vector<112x256xf32>
    %108 = arith.truncf %106 : vector<112x256xf32> to vector<112x256xbf16>
    %109 = arith.truncf %107 : vector<112x256xf32> to vector<112x256xbf16>
    %110 = tpu.concatenate %108, %109 in 1 : vector<112x256xbf16>, vector<112x256xbf16> -> vector<112x512xbf16>
    %c0_90 = arith.constant 0 : index
    %c0_91 = arith.constant 0 : index
    %111 = vector.load %arg8[%c0_90, %c0_91] : memref<512x256xbf16, #tpu.memory_space<vmem>>, vector<512x256xbf16>
    %cst_92 = arith.constant dense<0.000000e+00> : vector<112x256xf32>
    %112 = tpu.matmul %110, %111, %cst_92 {dimension_numbers = #tpu.dot_dimension_numbers<[1], [0], [0], [1], [0, 0, 1, 1], [], []>} : vector<112x512xbf16>, vector<512x256xbf16>, vector<112x256xf32> -> vector<112x256xf32>
    %c0_93 = arith.constant 0 : index
    %c0_94 = arith.constant 0 : index
    %113 = vector.load %arg9[%c0_93, %c0_94] : memref<1x256xf32, #tpu.memory_space<vmem>>, vector<1x256xf32>
    %114 = vector.broadcast %113 : vector<1x256xf32> to vector<112x256xf32>
    %115 = arith.addf %112, %114 : vector<112x256xf32>
    %116 = arith.negf %115 : vector<112x256xf32>
    %117 = math.exp %116 : vector<112x256xf32>
    %cst_95 = arith.constant 1.000000e+00 : f32
    %118 = vector.broadcast %cst_95 : f32 to vector<112x256xf32>
    %119 = arith.addf %118, %117 : vector<112x256xf32>
    %120 = arith.divf %118, %119 : vector<112x256xf32>
    %c0_96 = arith.constant 0 : index
    %c0_97 = arith.constant 0 : index
    %121 = vector.load %arg10[%c0_96, %c0_97] : memref<112x256xf32, #tpu.memory_space<vmem>>, vector<112x256xf32>
    tpu.vector_store %arg10[%c0_96, %c0_97], %120 {strides = array<i32>} : memref<112x256xf32, #tpu.memory_space<vmem>>, vector<112x256xf32>,
    return
  }
  func.func @transform_0(%arg0: i32) -> (i32, i32) {
    %c0_i32 = arith.constant 0 : i32
    %c0_i32_0 = arith.constant 0 : i32
    return %arg0, %c0_i32 : i32, i32
  }
  func.func @transform_1(%arg0: i32) -> (i32, i32) {
    %c0_i32 = arith.constant 0 : i32
    %c0_i32_0 = arith.constant 0 : i32
    %c0_i32_1 = arith.constant 0 : i32
    return %c0_i32, %c0_i32_0 : i32, i32
  }
  func.func @transform_2(%arg0: i32) -> (i32, i32) {
    %c0_i32 = arith.constant 0 : i32
    %c0_i32_0 = arith.constant 0 : i32
    %c0_i32_1 = arith.constant 0 : i32
    return %c0_i32, %c0_i32_0 : i32, i32
  }
  func.func @transform_3(%arg0: i32) -> (i32, i32) {
    %c0_i32 = arith.constant 0 : i32
    %c0_i32_0 = arith.constant 0 : i32
    %c0_i32_1 = arith.constant 0 : i32
    return %c0_i32, %c0_i32_0 : i32, i32
  }
  func.func @transform_4(%arg0: i32) -> (i32, i32) {
    %c0_i32 = arith.constant 0 : i32
    %c0_i32_0 = arith.constant 0 : i32
    %c0_i32_1 = arith.constant 0 : i32
    return %c0_i32, %c0_i32_0 : i32, i32
  }
  func.func @transform_5(%arg0: i32) -> (i32, i32) {
    %c0_i32 = arith.constant 0 : i32
    %c0_i32_0 = arith.constant 0 : i32
    %c0_i32_1 = arith.constant 0 : i32
    return %c0_i32, %c0_i32_0 : i32, i32
  }
  func.func @transform_6(%arg0: i32) -> (i32, i32) {
    %c0_i32 = arith.constant 0 : i32
    %c0_i32_0 = arith.constant 0 : i32
    %c0_i32_1 = arith.constant 0 : i32
    return %c0_i32, %c0_i32_0 : i32, i32
  }
  func.func @transform_7(%arg0: i32) -> (i32, i32) {
    %c0_i32 = arith.constant 0 : i32
    %c0_i32_0 = arith.constant 0 : i32
    %c0_i32_1 = arith.constant 0 : i32
    return %c0_i32, %c0_i32_0 : i32, i32
  }
  func.func @transform_8(%arg0: i32) -> (i32, i32) {
    %c0_i32 = arith.constant 0 : i32
    %c0_i32_0 = arith.constant 0 : i32
    %c0_i32_1 = arith.constant 0 : i32
    return %c0_i32, %c0_i32_0 : i32, i32
  }
  func.func @transform_9(%arg0: i32) -> (i32, i32) {
    %c0_i32 = arith.constant 0 : i32
    %c0_i32_0 = arith.constant 0 : i32
    return %arg0, %c0_i32 : i32, i32
  }
}

</mosaic_0001>

<llo_original>
// kernel: _decoder_forward.1
$region0: #{_decoder_forward.1}
  #allocation0 [shape = 'u32[]', space=smem, size = 0x4, offset = 0x4, fixed_abs, tag = 'smem constant byte address 0x4 - core index']
  #allocation1 [shape = 'u32[72,128]{1,0:T(1,128)}', space=vmem, size = 0x9000, scoped, tag = 'internal scratch']
  #allocation2 [shape = 'f32[40,256]{1,0:T(8,128)}', space=vmem, size = 0xa000, scoped, tag = 'scratch operand']
  #allocation3 [shape = 'f32[64,256]{1,0:T(8,128)}', space=vmem, size = 0x10000, scoped, tag = 'scratch operand']
  #allocation4 [shape = 'f32[120,256]{1,0:T(8,128)}', space=vmem, size = 0x1e000, scoped, tag = 'scratch operand']
  %s0 = inlined_call_operand.vmem [shape: f32[8,32], index: 0, kind: input, shape index: {}]
  %s1 = inlined_call_operand.hbm [shape: bf16[32,1024], index: 1, kind: input, shape index: {}]
  %s2 = inlined_call_operand.vmem [shape: f32[1,1024], index: 2, kind: input, shape index: {}]
  %s3 = inlined_call_operand.hbm [shape: bf16[512,512], index: 3, kind: input, shape index: {}]
  %s4 = inlined_call_operand.vmem [shape: f32[1,512], index: 4, kind: input, shape index: {}]
  %s5 = inlined_call_operand.hbm [shape: bf16[512,512], index: 5, kind: input, shape index: {}]
  %s6 = inlined_call_operand.hbm [shape: f32[1,512], index: 6, kind: input, shape index: {}]
  %s7 = inlined_call_operand.hbm [shape: bf16[512,256], index: 7, kind: input, shape index: {}]
  %s8 = inlined_call_operand.vmem [shape: f32[1,256], index: 8, kind: input, shape index: {}]
  %s9 = inlined_call_operand.vmem [shape: f32[112,256], index: 9, kind: output, shape index: {}]
  %s10 = sld [smem:[#allocation0]]
  $region66: #{_decoder_forward.1} parent=0
    _
  %s12 = ssub.s32 1, %s10
  %s13 = scalar_select 0, %s12, %s10
  $region1: #{_decoder_forward.1} parent=0
    #allocation5 [shape = 'u8[65536]{0}', space=vmem, size = 0x10000, scoped, tag = 'input window, operand 1, single buffered']
    #allocation6 [shape = 's32[1]{0}', space=sflag, size = 0x4, scoped, tag = 'scoped memory for _decoder_forward.1']
    #allocation7 [shape = 'u8[524288]{0}', space=vmem, size = 0x80000, scoped, tag = 'input window, operand 3, single buffered']
    #allocation8 [shape = 's32[1]{0}', space=sflag, size = 0x4, scoped, tag = 'scoped memory for _decoder_forward.1']
    #allocation9 [shape = 'u8[524288]{0}', space=vmem, size = 0x80000, scoped, tag = 'input window, operand 5, single buffered']
    #allocation10 [shape = 'u8[2048]{0}', space=vmem, size = 0x800, scoped, tag = 'input window, operand 6, single buffered']
    #allocation11 [shape = 's32[1]{0}', space=sflag, size = 0x4, scoped, tag = 'scoped memory for _decoder_forward.1']
    #allocation12 [shape = 'u8[262144]{0}', space=vmem, size = 0x40000, scoped, tag = 'input window, operand 7, single buffered']
    %14 = vsyncpa [#allocation6], 0
    %15 = vsyncpa [#allocation8], 0
    %16 = vsyncpa [#allocation11], 0
    // Predicated region
    $region2: #{_decoder_forward.1} parent=1 // pred_check
      _
    $region3: #{_decoder_forward.1} parent=1 // pred_check_branch
      %18 = sbr.rel (0) target = $region5
    $region4: #{_decoder_forward.1} parent=1 // pred_region
      _
    $region5: #{_decoder_forward.1} parent=1 // pred_fallthru
      _
    // Predicated region
    $region6: #{_decoder_forward.1} parent=1 // pred_check
      _
    $region7: #{_decoder_forward.1} parent=1 // pred_check_branch
      %20 = sbr.rel (0) target = $region9
    $region8: #{_decoder_forward.1} parent=1 // pred_region
      %22 = vsyncadd [#allocation6], 0
      %s23 = sshll.u32 %s1, 4
      %s24 = int_to_ptr.hbm [resolvable:$true] %s23
      %s25 = sshll.u32 [#allocation5], 4
      %s26 = int_to_ptr.vmem [resolvable:$true] %s25
      %31 = dma.hbm_to_vmem [thread:$0]  %s24, 2048, %s26, [#allocation6], 512, 512, 32
    $region9: #{_decoder_forward.1} parent=1 // pred_fallthru
      _
    // Predicated region
    $region10: #{_decoder_forward.1} parent=1 // pred_check
      _
    $region11: #{_decoder_forward.1} parent=1 // pred_check_branch
      %33 = sbr.rel (0) target = $region13
    $region12: #{_decoder_forward.1} parent=1 // pred_region
      _
    $region13: #{_decoder_forward.1} parent=1 // pred_fallthru
      _
    // Predicated region
    $region14: #{_decoder_forward.1} parent=1 // pred_check
      _
    $region15: #{_decoder_forward.1} parent=1 // pred_check_branch
      %35 = sbr.rel (0) target = $region17
    $region16: #{_decoder_forward.1} parent=1 // pred_region
      %37 = vsyncadd [#allocation8], 0
      %s38 = sshll.u32 %s3, 4
      %s39 = int_to_ptr.hbm [resolvable:$true] %s38
      %s40 = sshll.u32 [#allocation7], 4
      %s41 = int_to_ptr.vmem [resolvable:$true] %s40
      %46 = dma.hbm_to_vmem [thread:$0]  %s39, 16384, %s41, [#allocation8], 256, 256, 16
    $region17: #{_decoder_forward.1} parent=1 // pred_fallthru
      _
    // Predicated region
    $region18: #{_decoder_forward.1} parent=1 // pred_check
      _
    $region19: #{_decoder_forward.1} parent=1 // pred_check_branch
      %48 = sbr.rel (0) target = $region21
    $region20: #{_decoder_forward.1} parent=1 // pred_region
      _
    $region21: #{_decoder_forward.1} parent=1 // pred_fallthru
      _
    // Predicated region
    $region22: #{_decoder_forward.1} parent=1 // pred_check
      _
    $region23: #{_decoder_forward.1} parent=1 // pred_check_branch
      %50 = sbr.rel (0) target = $region25
    $region24: #{_decoder_forward.1} parent=1 // pred_region
      %52 = vsyncadd [#allocation8], 0
      %s53 = sshll.u32 %s5, 4
      %s54 = int_to_ptr.hbm [resolvable:$true] %s53
      %s55 = sshll.u32 [#allocation9], 4
      %s56 = int_to_ptr.vmem [resolvable:$true] %s55
      %61 = dma.hbm_to_vmem [thread:$0]  %s54, 16384, %s56, [#allocation8], 256, 256, 16
    $region25: #{_decoder_forward.1} parent=1 // pred_fallthru
      _
    // Predicated region
    $region26: #{_decoder_forward.1} parent=1 // pred_check
      _
    $region27: #{_decoder_forward.1} parent=1 // pred_check_branch
      %63 = sbr.rel (0) target = $region29
    $region28: #{_decoder_forward.1} parent=1 // pred_region
      %65 = vsyncadd [#allocation11], 0
      %s67 = sshll.u32 %s6, 4
      %s68 = int_to_ptr.hbm [resolvable:$true] %s67
      %s69 = sshll.u32 [#allocation10], 4
      %s70 = int_to_ptr.vmem [resolvable:$true] %s69
      %72 = dma.hbm_to_vmem [thread:$0]  %s68, 64, %s70, [#allocation11]
    $region29: #{_decoder_forward.1} parent=1 // pred_fallthru
      _
    // Predicated region
    $region30: #{_decoder_forward.1} parent=1 // pred_check
      _
    $region31: #{_decoder_forward.1} parent=1 // pred_check_branch
      %74 = sbr.rel (0) target = $region33
    $region32: #{_decoder_forward.1} parent=1 // pred_region
      %76 = vsyncadd [#allocation11], 0
      %s77 = sshll.u32 %s7, 4
      %s78 = int_to_ptr.hbm [resolvable:$true] %s77
      %s79 = sshll.u32 [#allocation12], 4
      %s80 = int_to_ptr.vmem [resolvable:$true] %s79
      %85 = dma.hbm_to_vmem [thread:$0]  %s78, 8192, %s80, [#allocation11], 128, 128, 8
    $region33: #{_decoder_forward.1} parent=1 // pred_fallthru
      _
    // Predicated region
    $region34: #{_decoder_forward.1} parent=1 // pred_check
      _
    $region35: #{_decoder_forward.1} parent=1 // pred_check_branch
      %87 = sbr.rel (0) target = $region37
    $region36: #{_decoder_forward.1} parent=1 // pred_region
      _
    $region37: #{_decoder_forward.1} parent=1 // pred_fallthru
      _
    // Predicated region
    $region38: #{_decoder_forward.1} parent=1 // pred_check
      _
    $region39: #{_decoder_forward.1} parent=1 // pred_check_branch
      %89 = sbr.rel (0) target = $region41
    $region40: #{_decoder_forward.1} parent=1 // pred_region
      %91 = dma.done [#allocation6], 2048
    $region41: #{_decoder_forward.1} parent=1 // pred_fallthru
      _
    // Predicated region
    $region42: #{_decoder_forward.1} parent=1 // pred_check
      _
    $region43: #{_decoder_forward.1} parent=1 // pred_check_branch
      %93 = sbr.rel (0) target = $region45
    $region44: #{_decoder_forward.1} parent=1 // pred_region
      %95 = dma.done [#allocation8], 16384
    $region45: #{_decoder_forward.1} parent=1 // pred_fallthru
      _
    // Predicated region
    $region46: #{_decoder_forward.1} parent=1 // pred_check
      _
    $region47: #{_decoder_forward.1} parent=1 // pred_check_branch
      %97 = sbr.rel (0) target = $region49
    $region48: #{_decoder_forward.1} parent=1 // pred_region
      %99 = dma.done [#allocation8], 16384
    $region49: #{_decoder_forward.1} parent=1 // pred_fallthru
      _
    // Predicated region
    $region50: #{_decoder_forward.1} parent=1 // pred_check
      _
    $region51: #{_decoder_forward.1} parent=1 // pred_check_branch
      %101 = sbr.rel (0) target = $region53
    $region52: #{_decoder_forward.1} parent=1 // pred_region
      %103 = dma.done [#allocation11], 64
    $region53: #{_decoder_forward.1} parent=1 // pred_fallthru
      _
    // Predicated region
    $region54: #{_decoder_forward.1} parent=1 // pred_check
      _
    $region55: #{_decoder_forward.1} parent=1 // pred_check_branch
      %105 = sbr.rel (0) target = $region57
    $region56: #{_decoder_forward.1} parent=1 // pred_region
      %107 = dma.done [#allocation11], 8192
    $region57: #{_decoder_forward.1} parent=1 // pred_fallthru
      _
    %v109 = vld [vmem:[%s0] sm:$0xff]
    %v110 = vpack.c.bf16 %v109, %v109
    %v111 = vld [vmem:[#allocation5] sm:$0xff]
    %v112 = vld [vmem:[#allocation5 + $0x20] sm:$0xff]
    %v113 = vld [vmem:[#allocation5 + $0x40] sm:$0xff]
    %v114 = vld [vmem:[#allocation5 + $0x60] sm:$0xff]
    %v115 = vld [vmem:[%s2] sm:$0x3]
    %v117 = vperm.slane %v115, 0
    %v118 = vperm.slane %v115, 1
    %v125 = vunpack.c.l.b16 %v111
    %v126 = vunpack.c.h.b16 %v111
    %v127 = vunpack.c.l.b16 %v112
    %v128 = vunpack.c.h.b16 %v112
    %v129 = vunpack.c.l.b16 %v113
    %v130 = vunpack.c.h.b16 %v113
    %v131 = vunpack.c.l.b16 %v114
    %v132 = vunpack.c.h.b16 %v114
    %v133 = vpack.c.b16 %v127, %v125
    %v134 = vpack.c.b16 %v128, %v126
    %v135 = vpack.c.b16 %v131, %v129
    %v136 = vpack.c.b16 %v132, %v130
    %vm141 = vcmask 261120
    %v143 = vsel %vm141, %v110, 0
    %145 = vmatpush.bf16.msra.mxu0 0
    %146 = vmatpush.bf16.msra.mxu0 0
    %147 = vmatpush.bf16.msra.mxu0 0
    %148 = vmatpush.bf16.msra.mxu0 0
    %149 = vmatpush.bf16.msra.mxu0 0
    %150 = vmatpush.bf16.msra.mxu0 0
    %151 = vmatpush.bf16.msra.mxu0 %v135
    %152 = vmatpush.bf16.msra.mxu0 %v133
    %153 = vmatmul.bf16.gmra.mxu0 %v143
    %v154 = vpop.f32.mrf.mxu0
    %v155 = vadd.f32 %v117, %v154
    %v156 = vpop.f32.mrf.mxu0
    %157 = vdwg.mxu0
    %158 = vmatpush.bf16.msra.mxu0 0
    %159 = vmatpush.bf16.msra.mxu0 0
    %160 = vmatpush.bf16.msra.mxu0 0
    %161 = vmatpush.bf16.msra.mxu0 0
    %162 = vmatpush.bf16.msra.mxu0 0
    %163 = vmatpush.bf16.msra.mxu0 0
    %164 = vmatpush.bf16.msra.mxu0 %v136
    %165 = vmatpush.bf16.msra.mxu0 %v134
    %166 = vmatmul.bf16.gmra.mxu0 %v143
    %v167 = vpop.f32.mrf.mxu0
    %v168 = vadd.f32 %v118, %v167
    %v169 = vpop.f32.mrf.mxu0
    %170 = vdwg.mxu0
    %v171 = vmax.f32 %v155, 0.0
    %v172 = vmax.f32 %v168, 0.0
    %173 = vst [vmem:[#allocation2] sm:$0xff] %v171
    %174 = vst [vmem:[#allocation2 + $0x8] sm:$0xff] %v172
    %v175 = vld [vmem:[#allocation5 + $0x8] sm:$0xff]
    %v176 = vld [vmem:[#allocation5 + $0x28] sm:$0xff]
    %v177 = vld [vmem:[#allocation5 + $0x48] sm:$0xff]
    %v178 = vld [vmem:[#allocation5 + $0x68] sm:$0xff]
    %v179 = vld [vmem:[%s2 + $0x2] sm:$0x3]
    %v181 = vperm.slane %v179, 0
    %v182 = vperm.slane %v179, 1
    %v189 = vunpack.c.l.b16 %v175
    %v190 = vunpack.c.h.b16 %v175
    %v191 = vunpack.c.l.b16 %v176
    %v192 = vunpack.c.h.b16 %v176
    %v193 = vunpack.c.l.b16 %v177
    %v194 = vunpack.c.h.b16 %v177
    %v195 = vunpack.c.l.b16 %v178
    %v196 = vunpack.c.h.b16 %v178
    %v197 = vpack.c.b16 %v191, %v189
    %v198 = vpack.c.b16 %v192, %v190
    %v199 = vpack.c.b16 %v195, %v193
    %v200 = vpack.c.b16 %v196, %v194
    %205 = vmatpush.bf16.msra.mxu0 0
    %206 = vmatpush.bf16.msra.mxu0 0
    %207 = vmatpush.bf16.msra.mxu0 0
    %208 = vmatpush.bf16.msra.mxu0 0
    %209 = vmatpush.bf16.msra.mxu0 0
    %210 = vmatpush.bf16.msra.mxu0 0
    %211 = vmatpush.bf16.msra.mxu0 %v199
    %212 = vmatpush.bf16.msra.mxu0 %v197
    %213 = vmatmul.bf16.gmra.mxu0 %v143
    %v214 = vpop.f32.mrf.mxu0
    %v215 = vadd.f32 %v181, %v214
    %v216 = vpop.f32.mrf.mxu0
    %217 = vdwg.mxu0
    %218 = vmatpush.bf16.msra.mxu0 0
    %219 = vmatpush.bf16.msra.mxu0 0
    %220 = vmatpush.bf16.msra.mxu0 0
    %221 = vmatpush.bf16.msra.mxu0 0
    %222 = vmatpush.bf16.msra.mxu0 0
    %223 = vmatpush.bf16.msra.mxu0 0
    %224 = vmatpush.bf16.msra.mxu0 %v200
    %225 = vmatpush.bf16.msra.mxu0 %v198
    %226 = vmatmul.bf16.gmra.mxu0 %v143
    %v227 = vpop.f32.mrf.mxu0
    %v228 = vadd.f32 %v182, %v227
    %v229 = vpop.f32.mrf.mxu0
    %230 = vdwg.mxu0
    %v231 = vmax.f32 %v215, 0.0
    %v232 = vmax.f32 %v228, 0.0
    %233 = vst [vmem:[#allocation2 + $0x10] sm:$0xff] %v231
    %234 = vst [vmem:[#allocation2 + $0x18] sm:$0xff] %v232
    %v235 = vld [vmem:[#allocation5 + $0x10] sm:$0xff]
    %v236 = vld [vmem:[#allocation5 + $0x30] sm:$0xff]
    %v237 = vld [vmem:[#allocation5 + $0x50] sm:$0xff]
    %v238 = vld [vmem:[#allocation5 + $0x70] sm:$0xff]
    %v239 = vld [vmem:[%s2 + $0x4] sm:$0x3]
    %v241 = vperm.slane %v239, 0
    %v242 = vperm.slane %v239, 1
    %v249 = vunpack.c.l.b16 %v235
    %v250 = vunpack.c.h.b16 %v235
    %v251 = vunpack.c.l.b16 %v236
    %v252 = vunpack.c.h.b16 %v236
    %v253 = vunpack.c.l.b16 %v237
    %v254 = vunpack.c.h.b16 %v237
    %v255 = vunpack.c.l.b16 %v238
    %v256 = vunpack.c.h.b16 %v238
    %v257 = vpack.c.b16 %v251, %v249
    %v258 = vpack.c.b16 %v252, %v250
    %v259 = vpack.c.b16 %v255, %v253
    %v260 = vpack.c.b16 %v256, %v254
    %265 = vmatpush.bf16.msra.mxu0 0
    %266 = vmatpush.bf16.msra.mxu0 0
    %267 = vmatpush.bf16.msra.mxu0 0
    %268 = vmatpush.bf16.msra.mxu0 0
    %269 = vmatpush.bf16.msra.mxu0 0
    %270 = vmatpush.bf16.msra.mxu0 0
    %271 = vmatpush.bf16.msra.mxu0 %v259
    %272 = vmatpush.bf16.msra.mxu0 %v257
    %273 = vmatmul.bf16.gmra.mxu0 %v143
    %v274 = vpop.f32.mrf.mxu0
    %v275 = vadd.f32 %v241, %v274
    %v276 = vpop.f32.mrf.mxu0
    %277 = vdwg.mxu0
    %278 = vmatpush.bf16.msra.mxu0 0
    %279 = vmatpush.bf16.msra.mxu0 0
    %280 = vmatpush.bf16.msra.mxu0 0
    %281 = vmatpush.bf16.msra.mxu0 0
    %282 = vmatpush.bf16.msra.mxu0 0
    %283 = vmatpush.bf16.msra.mxu0 0
    %284 = vmatpush.bf16.msra.mxu0 %v260
    %285 = vmatpush.bf16.msra.mxu0 %v258
    %286 = vmatmul.bf16.gmra.mxu0 %v143
    %v287 = vpop.f32.mrf.mxu0
    %v288 = vadd.f32 %v242, %v287
    %v289 = vpop.f32.mrf.mxu0
    %290 = vdwg.mxu0
    %v291 = vmax.f32 %v275, 0.0
    %v292 = vmax.f32 %v288, 0.0
    %293 = vst [vmem:[#allocation2 + $0x20] sm:$0xff] %v291
    %294 = vst [vmem:[#allocation2 + $0x28] sm:$0xff] %v292
    %v295 = vld [vmem:[#allocation5 + $0x18] sm:$0xff]
    %v296 = vld [vmem:[#allocation5 + $0x38] sm:$0xff]
    %v297 = vld [vmem:[#allocation5 + $0x58] sm:$0xff]
    %v298 = vld [vmem:[#allocation5 + $0x78] sm:$0xff]
    %v299 = vld [vmem:[%s2 + $0x6] sm:$0x3]
    %v301 = vperm.slane %v299, 0
    %v302 = vperm.slane %v299, 1
    %v309 = vunpack.c.l.b16 %v295
    %v310 = vunpack.c.h.b16 %v295
    %v311 = vunpack.c.l.b16 %v296
    %v312 = vunpack.c.h.b16 %v296
    %v313 = vunpack.c.l.b16 %v297
    %v314 = vunpack.c.h.b16 %v297
    %v315 = vunpack.c.l.b16 %v298
    %v316 = vunpack.c.h.b16 %v298
    %v317 = vpack.c.b16 %v311, %v309
    %v318 = vpack.c.b16 %v312, %v310
    %v319 = vpack.c.b16 %v315, %v313
    %v320 = vpack.c.b16 %v316, %v314
    %325 = vmatpush.bf16.msra.mxu0 0
    %326 = vmatpush.bf16.msra.mxu0 0
    %327 = vmatpush.bf16.msra.mxu0 0
    %328 = vmatpush.bf16.msra.mxu0 0
    %329 = vmatpush.bf16.msra.mxu0 0
    %330 = vmatpush.bf16.msra.mxu0 0
    %331 = vmatpush.bf16.msra.mxu0 %v319
    %332 = vmatpush.bf16.msra.mxu0 %v317
    %333 = vmatmul.bf16.gmra.mxu0 %v143
    %v334 = vpop.f32.mrf.mxu0
    %v335 = vadd.f32 %v301, %v334
    %v336 = vpop.f32.mrf.mxu0
    %337 = vdwg.mxu0
    %338 = vmatpush.bf16.msra.mxu0 0
    %339 = vmatpush.bf16.msra.mxu0 0
    %340 = vmatpush.bf16.msra.mxu0 0
    %341 = vmatpush.bf16.msra.mxu0 0
    %342 = vmatpush.bf16.msra.mxu0 0
    %343 = vmatpush.bf16.msra.mxu0 0
    %344 = vmatpush.bf16.msra.mxu0 %v320
    %345 = vmatpush.bf16.msra.mxu0 %v318
    %346 = vmatmul.bf16.gmra.mxu0 %v143
    %v347 = vpop.f32.mrf.mxu0
    %v348 = vadd.f32 %v302, %v347
    %v349 = vpop.f32.mrf.mxu0
    %350 = vdwg.mxu0
    %v351 = vmax.f32 %v335, 0.0
    %v352 = vmax.f32 %v348, 0.0
    %353 = vst [vmem:[#allocation2 + $0x30] sm:$0xff] %v351
    %354 = vst [vmem:[#allocation2 + $0x38] sm:$0xff] %v352
    %355 = vst [vmem:[#allocation2 + $0x40] sm:$0xff] 0.0
    %356 = vst [vmem:[#allocation2 + $0x48] sm:$0xff] 0.0
    %v357 = vld [vmem:[#allocation2] sm:$0xff]
    %v358 = vld [vmem:[#allocation2 + $0x8] sm:$0xff]
    %v359 = vld [vmem:[#allocation2 + $0x10] sm:$0xff]
    %v360 = vld [vmem:[#allocation2 + $0x18] sm:$0xff]
    %v361 = vld [vmem:[#allocation2 + $0x20] sm:$0xff]
    %v362 = vld [vmem:[#allocation2 + $0x28] sm:$0xff]
    %v363 = vld [vmem:[#allocation2 + $0x30] sm:$0xff]
    %v364 = vld [vmem:[#allocation2 + $0x38] sm:$0xff]
    %v365 = vld [vmem:[#allocation2 + $0x10] sm:$0xff]
    %v366 = vld [vmem:[#allocation2 + $0x18] sm:$0xff]
    %v367 = vld [vmem:[#allocation2 + $0x20] sm:$0xff]
    %v368 = vld [vmem:[#allocation2 + $0x28] sm:$0xff]
    %v369 = vld [vmem:[#allocation2 + $0x30] sm:$0xff]
    %v370 = vld [vmem:[#allocation2 + $0x38] sm:$0xff]
    %v371 = vld [vmem:[#allocation2 + $0x40] sm:$0xff]
    %v372 = vld [vmem:[#allocation2 + $0x48] sm:$0xff]
    %v373 = vpack.c.bf16 %v358, %v357
    %v374 = vpack.c.bf16 %v360, %v359
    %v375 = vpack.c.bf16 %v362, %v361
    %v376 = vpack.c.bf16 %v364, %v363
    %v377 = vpack.c.bf16 %v366, %v365
    %v378 = vpack.c.bf16 %v368, %v367
    %v379 = vpack.c.bf16 %v370, %v369
    %v380 = vpack.c.bf16 %v372, %v371
    %v385 = vunpack.c.l.b16 %v373
    %v386 = vunpack.c.h.b16 %v373
    %v387 = vunpack.c.l.b16 %v374
    %v388 = vunpack.c.h.b16 %v374
    %v389 = vunpack.c.l.b16 %v375
    %v390 = vunpack.c.h.b16 %v375
    %v391 = vunpack.c.l.b16 %v376
    %v392 = vunpack.c.h.b16 %v376
    %v393 = vpack.c.b16 %v387, %v385
    %v394 = vpack.c.b16 %v388, %v386
    %v395 = vpack.c.b16 %v391, %v389
    %v396 = vpack.c.b16 %v392, %v390
    %v405 = vunpack.c.l.b16 %v377
    %v406 = vunpack.c.h.b16 %v377
    %v407 = vunpack.c.l.b16 %v378
    %v408 = vunpack.c.h.b16 %v378
    %v409 = vunpack.c.l.b16 %v379
    %v410 = vunpack.c.h.b16 %v379
    %v411 = vunpack.c.l.b16 %v380
    %v412 = vunpack.c.h.b16 %v380
    %v413 = vpack.c.b16 %v407, %v405
    %v414 = vpack.c.b16 %v408, %v406
    %v415 = vpack.c.b16 %v411, %v409
    %v416 = vpack.c.b16 %v412, %v410
    %v421 = vld [vmem:[#allocation7] sm:$0xff]
    %v422 = vld [vmem:[#allocation7 + $0x8] sm:$0xff]
    %v423 = vld [vmem:[#allocation7 + $0x10] sm:$0xff]
    %v424 = vld [vmem:[#allocation7 + $0x18] sm:$0xff]
    %v425 = vld [vmem:[#allocation7 + $0x20] sm:$0xff]
    %v426 = vld [vmem:[#allocation7 + $0x28] sm:$0xff]
    %v427 = vld [vmem:[#allocation7 + $0x30] sm:$0xff]
    %v428 = vld [vmem:[#allocation7 + $0x38] sm:$0xff]
    %v429 = vld [vmem:[#allocation7 + $0x40] sm:$0xff]
    %v430 = vld [vmem:[#allocation7 + $0x48] sm:$0xff]
    %v431 = vld [vmem:[#allocation7 + $0x50] sm:$0xff]
    %v432 = vld [vmem:[#allocation7 + $0x58] sm:$0xff]
    %v433 = vld [vmem:[#allocation7 + $0x60] sm:$0xff]
    %v434 = vld [vmem:[#allocation7 + $0x68] sm:$0xff]
    %v435 = vld [vmem:[#allocation7 + $0x70] sm:$0xff]
    %v436 = vld [vmem:[#allocation7 + $0x78] sm:$0xff]
    %v437 = vld [vmem:[#allocation7 + $0x80] sm:$0xff]
    %v438 = vld [vmem:[#allocation7 + $0x88] sm:$0xff]
    %v439 = vld [vmem:[#allocation7 + $0x90] sm:$0xff]
    %v440 = vld [vmem:[#allocation7 + $0x98] sm:$0xff]
    %v441 = vld [vmem:[#allocation7 + $0xa0] sm:$0xff]
    %v442 = vld [vmem:[#allocation7 + $0xa8] sm:$0xff]
    %v443 = vld [vmem:[#allocation7 + $0xb0] sm:$0xff]
    %v444 = vld [vmem:[#allocation7 + $0xb8] sm:$0xff]
    %v445 = vld [vmem:[#allocation7 + $0xc0] sm:$0xff]
    %v446 = vld [vmem:[#allocation7 + $0xc8] sm:$0xff]
    %v447 = vld [vmem:[#allocation7 + $0xd0] sm:$0xff]
    %v448 = vld [vmem:[#allocation7 + $0xd8] sm:$0xff]
    %v449 = vld [vmem:[#allocation7 + $0xe0] sm:$0xff]
    %v450 = vld [vmem:[#allocation7 + $0xe8] sm:$0xff]
    %v451 = vld [vmem:[#allocation7 + $0xf0] sm:$0xff]
    %v452 = vld [vmem:[#allocation7 + $0xf8] sm:$0xff]
    %v453 = vld [vmem:[#allocation7 + $0x100] sm:$0xff]
    %v454 = vld [vmem:[#allocation7 + $0x108] sm:$0xff]
    %v455 = vld [vmem:[#allocation7 + $0x110] sm:$0xff]
    %v456 = vld [vmem:[#allocation7 + $0x118] sm:$0xff]
    %v457 = vld [vmem:[#allocation7 + $0x120] sm:$0xff]
    %v458 = vld [vmem:[#allocation7 + $0x128] sm:$0xff]
    %v459 = vld [vmem:[#allocation7 + $0x130] sm:$0xff]
    %v460 = vld [vmem:[#allocation7 + $0x138] sm:$0xff]
    %v461 = vld [vmem:[#allocation7 + $0x140] sm:$0xff]
    %v462 = vld [vmem:[#allocation7 + $0x148] sm:$0xff]
    %v463 = vld [vmem:[#allocation7 + $0x150] sm:$0xff]
    %v464 = vld [vmem:[#allocation7 + $0x158] sm:$0xff]
    %v465 = vld [vmem:[#allocation7 + $0x160] sm:$0xff]
    %v466 = vld [vmem:[#allocation7 + $0x168] sm:$0xff]
    %v467 = vld [vmem:[#allocation7 + $0x170] sm:$0xff]
    %v468 = vld [vmem:[#allocation7 + $0x178] sm:$0xff]
    %v469 = vld [vmem:[#allocation7 + $0x180] sm:$0xff]
    %v470 = vld [vmem:[#allocation7 + $0x188] sm:$0xff]
    %v471 = vld [vmem:[#allocation7 + $0x190] sm:$0xff]
    %v472 = vld [vmem:[#allocation7 + $0x198] sm:$0xff]
    %v473 = vld [vmem:[#allocation7 + $0x1a0] sm:$0xff]
    %v474 = vld [vmem:[#allocation7 + $0x1a8] sm:$0xff]
    %v475 = vld [vmem:[#allocation7 + $0x1b0] sm:$0xff]
    %v476 = vld [vmem:[#allocation7 + $0x1b8] sm:$0xff]
    %v477 = vld [vmem:[#allocation7 + $0x1c0] sm:$0xff]
    %v478 = vld [vmem:[#allocation7 + $0x1c8] sm:$0xff]
    %v479 = vld [vmem:[#allocation7 + $0x1d0] sm:$0xff]
    %v480 = vld [vmem:[#allocation7 + $0x1d8] sm:$0xff]
    %v481 = vld [vmem:[#allocation7 + $0x1e0] sm:$0xff]
    %v482 = vld [vmem:[#allocation7 + $0x1e8] sm:$0xff]
    %v483 = vld [vmem:[#allocation7 + $0x1f0] sm:$0xff]
    %v484 = vld [vmem:[#allocation7 + $0x1f8] sm:$0xff]
    %v485 = vld [vmem:[#allocation7 + $0x200] sm:$0xff]
    %v486 = vld [vmem:[#allocation7 + $0x208] sm:$0xff]
    %v487 = vld [vmem:[#allocation7 + $0x210] sm:$0xff]
    %v488 = vld [vmem:[#allocation7 + $0x218] sm:$0xff]
    %v489 = vld [vmem:[#allocation7 + $0x220] sm:$0xff]
    %v490 = vld [vmem:[#allocation7 + $0x228] sm:$0xff]
    %v491 = vld [vmem:[#allocation7 + $0x230] sm:$0xff]
    %v492 = vld [vmem:[#allocation7 + $0x238] sm:$0xff]
    %v493 = vld [vmem:[#allocation7 + $0x240] sm:$0xff]
    %v494 = vld [vmem:[#allocation7 + $0x248] sm:$0xff]
    %v495 = vld [vmem:[#allocation7 + $0x250] sm:$0xff]
    %v496 = vld [vmem:[#allocation7 + $0x258] sm:$0xff]
    %v497 = vld [vmem:[#allocation7 + $0x260] sm:$0xff]
    %v498 = vld [vmem:[#allocation7 + $0x268] sm:$0xff]
    %v499 = vld [vmem:[#allocation7 + $0x270] sm:$0xff]
    %v500 = vld [vmem:[#allocation7 + $0x278] sm:$0xff]
    %v501 = vld [vmem:[#allocation7 + $0x280] sm:$0xff]
    %v502 = vld [vmem:[#allocation7 + $0x288] sm:$0xff]
    %v503 = vld [vmem:[#allocation7 + $0x290] sm:$0xff]
    %v504 = vld [vmem:[#allocation7 + $0x298] sm:$0xff]
    %v505 = vld [vmem:[#allocation7 + $0x2a0] sm:$0xff]
    %v506 = vld [vmem:[#allocation7 + $0x2a8] sm:$0xff]
    %v507 = vld [vmem:[#allocation7 + $0x2b0] sm:$0xff]
    %v508 = vld [vmem:[#allocation7 + $0x2b8] sm:$0xff]
    %v509 = vld [vmem:[#allocation7 + $0x2c0] sm:$0xff]
    %v510 = vld [vmem:[#allocation7 + $0x2c8] sm:$0xff]
    %v511 = vld [vmem:[#allocation7 + $0x2d0] sm:$0xff]
    %v512 = vld [vmem:[#allocation7 + $0x2d8] sm:$0xff]
    %v513 = vld [vmem:[#allocation7 + $0x2e0] sm:$0xff]
    %v514 = vld [vmem:[#allocation7 + $0x2e8] sm:$0xff]
    %v515 = vld [vmem:[#allocation7 + $0x2f0] sm:$0xff]
    %v516 = vld [vmem:[#allocation7 + $0x2f8] sm:$0xff]
    %v517 = vld [vmem:[#allocation7 + $0x300] sm:$0xff]
    %v518 = vld [vmem:[#allocation7 + $0x308] sm:$0xff]
    %v519 = vld [vmem:[#allocation7 + $0x310] sm:$0xff]
    %v520 = vld [vmem:[#allocation7 + $0x318] sm:$0xff]
    %v521 = vld [vmem:[#allocation7 + $0x320] sm:$0xff]
    %v522 = vld [vmem:[#allocation7 + $0x328] sm:$0xff]
    %v523 = vld [vmem:[#allocation7 + $0x330] sm:$0xff]
    %v524 = vld [vmem:[#allocation7 + $0x338] sm:$0xff]
    %v525 = vld [vmem:[#allocation7 + $0x340] sm:$0xff]
    %v526 = vld [vmem:[#allocation7 + $0x348] sm:$0xff]
    %v527 = vld [vmem:[#allocation7 + $0x350] sm:$0xff]
    %v528 = vld [vmem:[#allocation7 + $0x358] sm:$0xff]
    %v529 = vld [vmem:[#allocation7 + $0x360] sm:$0xff]
    %v530 = vld [vmem:[#allocation7 + $0x368] sm:$0xff]
    %v531 = vld [vmem:[#allocation7 + $0x370] sm:$0xff]
    %v532 = vld [vmem:[#allocation7 + $0x378] sm:$0xff]
    %v533 = vld [vmem:[#allocation7 + $0x380] sm:$0xff]
    %v534 = vld [vmem:[#allocation7 + $0x388] sm:$0xff]
    %v535 = vld [vmem:[#allocation7 + $0x390] sm:$0xff]
    %v536 = vld [vmem:[#allocation7 + $0x398] sm:$0xff]
    %v537 = vld [vmem:[#allocation7 + $0x3a0] sm:$0xff]
    %v538 = vld [vmem:[#allocation7 + $0x3a8] sm:$0xff]
    %v539 = vld [vmem:[#allocation7 + $0x3b0] sm:$0xff]
    %v540 = vld [vmem:[#allocation7 + $0x3b8] sm:$0xff]
    %v541 = vld [vmem:[#allocation7 + $0x3c0] sm:$0xff]
    %v542 = vld [vmem:[#allocation7 + $0x3c8] sm:$0xff]
    %v543 = vld [vmem:[#allocation7 + $0x3d0] sm:$0xff]
    %v544 = vld [vmem:[#allocation7 + $0x3d8] sm:$0xff]
    %v545 = vld [vmem:[#allocation7 + $0x3e0] sm:$0xff]
    %v546 = vld [vmem:[#allocation7 + $0x3e8] sm:$0xff]
    %v547 = vld [vmem:[#allocation7 + $0x3f0] sm:$0xff]
    %v548 = vld [vmem:[#allocation7 + $0x3f8] sm:$0xff]
    %v549 = vld [vmem:[%s4] sm:$0xf]
    %v551 = vperm.slane %v549, 0
    %v552 = vperm.slane %v549, 1
    %v553 = vperm.slane %v549, 2
    %v554 = vperm.slane %v549, 3
    %v687 = vunpack.c.l.b16 %v421
    %v688 = vunpack.c.h.b16 %v421
    %v689 = vunpack.c.l.b16 %v422
    %v690 = vunpack.c.h.b16 %v422
    %v691 = vunpack.c.l.b16 %v423
    %v692 = vunpack.c.h.b16 %v423
    %v693 = vunpack.c.l.b16 %v424
    %v694 = vunpack.c.h.b16 %v424
    %v695 = vunpack.c.l.b16 %v425
    %v696 = vunpack.c.h.b16 %v425
    %v697 = vunpack.c.l.b16 %v426
    %v698 = vunpack.c.h.b16 %v426
    %v699 = vunpack.c.l.b16 %v427
    %v700 = vunpack.c.h.b16 %v427
    %v701 = vunpack.c.l.b16 %v428
    %v702 = vunpack.c.h.b16 %v428
    %v703 = vunpack.c.l.b16 %v429
    %v704 = vunpack.c.h.b16 %v429
    %v705 = vunpack.c.l.b16 %v430
    %v706 = vunpack.c.h.b16 %v430
    %v707 = vunpack.c.l.b16 %v431
    %v708 = vunpack.c.h.b16 %v431
    %v709 = vunpack.c.l.b16 %v432
    %v710 = vunpack.c.h.b16 %v432
    %v711 = vunpack.c.l.b16 %v433
    %v712 = vunpack.c.h.b16 %v433
    %v713 = vunpack.c.l.b16 %v434
    %v714 = vunpack.c.h.b16 %v434
    %v715 = vunpack.c.l.b16 %v435
    %v716 = vunpack.c.h.b16 %v435
    %v717 = vunpack.c.l.b16 %v436
    %v718 = vunpack.c.h.b16 %v436
    %v719 = vunpack.c.l.b16 %v437
    %v720 = vunpack.c.h.b16 %v437
    %v721 = vunpack.c.l.b16 %v438
    %v722 = vunpack.c.h.b16 %v438
    %v723 = vunpack.c.l.b16 %v439
    %v724 = vunpack.c.h.b16 %v439
    %v725 = vunpack.c.l.b16 %v440
    %v726 = vunpack.c.h.b16 %v440
    %v727 = vunpack.c.l.b16 %v441
    %v728 = vunpack.c.h.b16 %v441
    %v729 = vunpack.c.l.b16 %v442
    %v730 = vunpack.c.h.b16 %v442
    %v731 = vunpack.c.l.b16 %v443
    %v732 = vunpack.c.h.b16 %v443
    %v733 = vunpack.c.l.b16 %v444
    %v734 = vunpack.c.h.b16 %v444
    %v735 = vunpack.c.l.b16 %v445
    %v736 = vunpack.c.h.b16 %v445
    %v737 = vunpack.c.l.b16 %v446
    %v738 = vunpack.c.h.b16 %v446
    %v739 = vunpack.c.l.b16 %v447
    %v740 = vunpack.c.h.b16 %v447
    %v741 = vunpack.c.l.b16 %v448
    %v742 = vunpack.c.h.b16 %v448
    %v743 = vunpack.c.l.b16 %v449
    %v744 = vunpack.c.h.b16 %v449
    %v745 = vunpack.c.l.b16 %v450
    %v746 = vunpack.c.h.b16 %v450
    %v747 = vunpack.c.l.b16 %v451
    %v748 = vunpack.c.h.b16 %v451
    %v749 = vunpack.c.l.b16 %v452
    %v750 = vunpack.c.h.b16 %v452
    %v751 = vunpack.c.l.b16 %v453
    %v752 = vunpack.c.h.b16 %v453
    %v753 = vunpack.c.l.b16 %v454
    %v754 = vunpack.c.h.b16 %v454
    %v755 = vunpack.c.l.b16 %v455
    %v756 = vunpack.c.h.b16 %v455
    %v757 = vunpack.c.l.b16 %v456
    %v758 = vunpack.c.h.b16 %v456
    %v759 = vunpack.c.l.b16 %v457
    %v760 = vunpack.c.h.b16 %v457
    %v761 = vunpack.c.l.b16 %v458
    %v762 = vunpack.c.h.b16 %v458
    %v763 = vunpack.c.l.b16 %v459
    %v764 = vunpack.c.h.b16 %v459
    %v765 = vunpack.c.l.b16 %v460
    %v766 = vunpack.c.h.b16 %v460
    %v767 = vunpack.c.l.b16 %v461
    %v768 = vunpack.c.h.b16 %v461
    %v769 = vunpack.c.l.b16 %v462
    %v770 = vunpack.c.h.b16 %v462
    %v771 = vunpack.c.l.b16 %v463
    %v772 = vunpack.c.h.b16 %v463
    %v773 = vunpack.c.l.b16 %v464
    %v774 = vunpack.c.h.b16 %v464
    %v775 = vunpack.c.l.b16 %v465
    %v776 = vunpack.c.h.b16 %v465
    %v777 = vunpack.c.l.b16 %v466
    %v778 = vunpack.c.h.b16 %v466
    %v779 = vunpack.c.l.b16 %v467
    %v780 = vunpack.c.h.b16 %v467
    %v781 = vunpack.c.l.b16 %v468
    %v782 = vunpack.c.h.b16 %v468
    %v783 = vunpack.c.l.b16 %v469
    %v784 = vunpack.c.h.b16 %v469
    %v785 = vunpack.c.l.b16 %v470
    %v786 = vunpack.c.h.b16 %v470
    %v787 = vunpack.c.l.b16 %v471
    %v788 = vunpack.c.h.b16 %v471
    %v789 = vunpack.c.l.b16 %v472
    %v790 = vunpack.c.h.b16 %v472
    %v791 = vunpack.c.l.b16 %v473
    %v792 = vunpack.c.h.b16 %v473
    %v793 = vunpack.c.l.b16 %v474
    %v794 = vunpack.c.h.b16 %v474
    %v795 = vunpack.c.l.b16 %v475
    %v796 = vunpack.c.h.b16 %v475
    %v797 = vunpack.c.l.b16 %v476
    %v798 = vunpack.c.h.b16 %v476
    %v799 = vunpack.c.l.b16 %v477
    %v800 = vunpack.c.h.b16 %v477
    %v801 = vunpack.c.l.b16 %v478
    %v802 = vunpack.c.h.b16 %v478
    %v803 = vunpack.c.l.b16 %v479
    %v804 = vunpack.c.h.b16 %v479
    %v805 = vunpack.c.l.b16 %v480
    %v806 = vunpack.c.h.b16 %v480
    %v807 = vunpack.c.l.b16 %v481
    %v808 = vunpack.c.h.b16 %v481
    %v809 = vunpack.c.l.b16 %v482
    %v810 = vunpack.c.h.b16 %v482
    %v811 = vunpack.c.l.b16 %v483
    %v812 = vunpack.c.h.b16 %v483
    %v813 = vunpack.c.l.b16 %v484
    %v814 = vunpack.c.h.b16 %v484
    %v815 = vunpack.c.l.b16 %v485
    %v816 = vunpack.c.h.b16 %v485
    %v817 = vunpack.c.l.b16 %v486
    %v818 = vunpack.c.h.b16 %v486
    %v819 = vunpack.c.l.b16 %v487
    %v820 = vunpack.c.h.b16 %v487
    %v821 = vunpack.c.l.b16 %v488
    %v822 = vunpack.c.h.b16 %v488
    %v823 = vunpack.c.l.b16 %v489
    %v824 = vunpack.c.h.b16 %v489
    %v825 = vunpack.c.l.b16 %v490
    %v826 = vunpack.c.h.b16 %v490
    %v827 = vunpack.c.l.b16 %v491
    %v828 = vunpack.c.h.b16 %v491
    %v829 = vunpack.c.l.b16 %v492
    %v830 = vunpack.c.h.b16 %v492
    %v831 = vunpack.c.l.b16 %v493
    %v832 = vunpack.c.h.b16 %v493
    %v833 = vunpack.c.l.b16 %v494
    %v834 = vunpack.c.h.b16 %v494
    %v835 = vunpack.c.l.b16 %v495
    %v836 = vunpack.c.h.b16 %v495
    %v837 = vunpack.c.l.b16 %v496
    %v838 = vunpack.c.h.b16 %v496
    %v839 = vunpack.c.l.b16 %v497
    %v840 = vunpack.c.h.b16 %v497
    %v841 = vunpack.c.l.b16 %v498
    %v842 = vunpack.c.h.b16 %v498
    %v843 = vunpack.c.l.b16 %v499
    %v844 = vunpack.c.h.b16 %v499
    %v845 = vunpack.c.l.b16 %v500
    %v846 = vunpack.c.h.b16 %v500
    %v847 = vunpack.c.l.b16 %v501
    %v848 = vunpack.c.h.b16 %v501
    %v849 = vunpack.c.l.b16 %v502
    %v850 = vunpack.c.h.b16 %v502
    %v851 = vunpack.c.l.b16 %v503
    %v852 = vunpack.c.h.b16 %v503
    %v853 = vunpack.c.l.b16 %v504
    %v854 = vunpack.c.h.b16 %v504
    %v855 = vunpack.c.l.b16 %v505
    %v856 = vunpack.c.h.b16 %v505
    %v857 = vunpack.c.l.b16 %v506
    %v858 = vunpack.c.h.b16 %v506
    %v859 = vunpack.c.l.b16 %v507
    %v860 = vunpack.c.h.b16 %v507
    %v861 = vunpack.c.l.b16 %v508
    %v862 = vunpack.c.h.b16 %v508
    %v863 = vunpack.c.l.b16 %v509
    %v864 = vunpack.c.h.b16 %v509
    %v865 = vunpack.c.l.b16 %v510
    %v866 = vunpack.c.h.b16 %v510
    %v867 = vunpack.c.l.b16 %v511
    %v868 = vunpack.c.h.b16 %v511
    %v869 = vunpack.c.l.b16 %v512
    %v870 = vunpack.c.h.b16 %v512
    %v871 = vunpack.c.l.b16 %v513
    %v872 = vunpack.c.h.b16 %v513
    %v873 = vunpack.c.l.b16 %v514
    %v874 = vunpack.c.h.b16 %v514
    %v875 = vunpack.c.l.b16 %v515
    %v876 = vunpack.c.h.b16 %v515
    %v877 = vunpack.c.l.b16 %v516
    %v878 = vunpack.c.h.b16 %v516
    %v879 = vunpack.c.l.b16 %v517
    %v880 = vunpack.c.h.b16 %v517
    %v881 = vunpack.c.l.b16 %v518
    %v882 = vunpack.c.h.b16 %v518
    %v883 = vunpack.c.l.b16 %v519
    %v884 = vunpack.c.h.b16 %v519
    %v885 = vunpack.c.l.b16 %v520
    %v886 = vunpack.c.h.b16 %v520
    %v887 = vunpack.c.l.b16 %v521
    %v888 = vunpack.c.h.b16 %v521
    %v889 = vunpack.c.l.b16 %v522
    %v890 = vunpack.c.h.b16 %v522
    %v891 = vunpack.c.l.b16 %v523
    %v892 = vunpack.c.h.b16 %v523
    %v893 = vunpack.c.l.b16 %v524
    %v894 = vunpack.c.h.b16 %v524
    %v895 = vunpack.c.l.b16 %v525
    %v896 = vunpack.c.h.b16 %v525
    %v897 = vunpack.c.l.b16 %v526
    %v898 = vunpack.c.h.b16 %v526
    %v899 = vunpack.c.l.b16 %v527
    %v900 = vunpack.c.h.b16 %v527
    %v901 = vunpack.c.l.b16 %v528
    %v902 = vunpack.c.h.b16 %v528
    %v903 = vunpack.c.l.b16 %v529
    %v904 = vunpack.c.h.b16 %v529
    %v905 = vunpack.c.l.b16 %v530
    %v906 = vunpack.c.h.b16 %v530
    %v907 = vunpack.c.l.b16 %v531
    %v908 = vunpack.c.h.b16 %v531
    %v909 = vunpack.c.l.b16 %v532
    %v910 = vunpack.c.h.b16 %v532
    %v911 = vunpack.c.l.b16 %v533
    %v912 = vunpack.c.h.b16 %v533
    %v913 = vunpack.c.l.b16 %v534
    %v914 = vunpack.c.h.b16 %v534
    %v915 = vunpack.c.l.b16 %v535
    %v916 = vunpack.c.h.b16 %v535
    %v917 = vunpack.c.l.b16 %v536
    %v918 = vunpack.c.h.b16 %v536
    %v919 = vunpack.c.l.b16 %v537
    %v920 = vunpack.c.h.b16 %v537
    %v921 = vunpack.c.l.b16 %v538
    %v922 = vunpack.c.h.b16 %v538
    %v923 = vunpack.c.l.b16 %v539
    %v924 = vunpack.c.h.b16 %v539
    %v925 = vunpack.c.l.b16 %v540
    %v926 = vunpack.c.h.b16 %v540
    %v927 = vunpack.c.l.b16 %v541
    %v928 = vunpack.c.h.b16 %v541
    %v929 = vunpack.c.l.b16 %v542
    %v930 = vunpack.c.h.b16 %v542
    %v931 = vunpack.c.l.b16 %v543
    %v932 = vunpack.c.h.b16 %v543
    %v933 = vunpack.c.l.b16 %v544
    %v934 = vunpack.c.h.b16 %v544
    %v935 = vunpack.c.l.b16 %v545
    %v936 = vunpack.c.h.b16 %v545
    %v937 = vunpack.c.l.b16 %v546
    %v938 = vunpack.c.h.b16 %v546
    %v939 = vunpack.c.l.b16 %v547
    %v940 = vunpack.c.h.b16 %v547
    %v941 = vunpack.c.l.b16 %v548
    %v942 = vunpack.c.h.b16 %v548
    %v943 = vpack.c.b16 %v691, %v687
    %v944 = vpack.c.b16 %v692, %v688
    %v945 = vpack.c.b16 %v693, %v689
    %v946 = vpack.c.b16 %v694, %v690
    %v947 = vpack.c.b16 %v699, %v695
    %v948 = vpack.c.b16 %v700, %v696
    %v949 = vpack.c.b16 %v701, %v697
    %v950 = vpack.c.b16 %v702, %v698
    %v951 = vpack.c.b16 %v707, %v703
    %v952 = vpack.c.b16 %v708, %v704
    %v953 = vpack.c.b16 %v709, %v705
    %v954 = vpack.c.b16 %v710, %v706
    %v955 = vpack.c.b16 %v715, %v711
    %v956 = vpack.c.b16 %v716, %v712
    %v957 = vpack.c.b16 %v717, %v713
    %v958 = vpack.c.b16 %v718, %v714
    %v959 = vpack.c.b16 %v723, %v719
    %v960 = vpack.c.b16 %v724, %v720
    %v961 = vpack.c.b16 %v725, %v721
    %v962 = vpack.c.b16 %v726, %v722
    %v963 = vpack.c.b16 %v731, %v727
    %v964 = vpack.c.b16 %v732, %v728
    %v965 = vpack.c.b16 %v733, %v729
    %v966 = vpack.c.b16 %v734, %v730
    %v967 = vpack.c.b16 %v739, %v735
    %v968 = vpack.c.b16 %v740, %v736
    %v969 = vpack.c.b16 %v741, %v737
    %v970 = vpack.c.b16 %v742, %v738
    %v971 = vpack.c.b16 %v747, %v743
    %v972 = vpack.c.b16 %v748, %v744
    %v973 = vpack.c.b16 %v749, %v745
    %v974 = vpack.c.b16 %v750, %v746
    %v975 = vpack.c.b16 %v755, %v751
    %v976 = vpack.c.b16 %v756, %v752
    %v977 = vpack.c.b16 %v757, %v753
    %v978 = vpack.c.b16 %v758, %v754
    %v979 = vpack.c.b16 %v763, %v759
    %v980 = vpack.c.b16 %v764, %v760
    %v981 = vpack.c.b16 %v765, %v761
    %v982 = vpack.c.b16 %v766, %v762
    %v983 = vpack.c.b16 %v771, %v767
    %v984 = vpack.c.b16 %v772, %v768
    %v985 = vpack.c.b16 %v773, %v769
    %v986 = vpack.c.b16 %v774, %v770
    %v987 = vpack.c.b16 %v779, %v775
    %v988 = vpack.c.b16 %v780, %v776
    %v989 = vpack.c.b16 %v781, %v777
    %v990 = vpack.c.b16 %v782, %v778
    %v991 = vpack.c.b16 %v787, %v783
    %v992 = vpack.c.b16 %v788, %v784
    %v993 = vpack.c.b16 %v789, %v785
    %v994 = vpack.c.b16 %v790, %v786
    %v995 = vpack.c.b16 %v795, %v791
    %v996 = vpack.c.b16 %v796, %v792
    %v997 = vpack.c.b16 %v797, %v793
    %v998 = vpack.c.b16 %v798, %v794
    %v999 = vpack.c.b16 %v803, %v799
    %v1000 = vpack.c.b16 %v804, %v800
    %v1001 = vpack.c.b16 %v805, %v801
    %v1002 = vpack.c.b16 %v806, %v802
    %v1003 = vpack.c.b16 %v811, %v807
    %v1004 = vpack.c.b16 %v812, %v808
    %v1005 = vpack.c.b16 %v813, %v809
    %v1006 = vpack.c.b16 %v814, %v810
    %v1007 = vpack.c.b16 %v819, %v815
    %v1008 = vpack.c.b16 %v820, %v816
    %v1009 = vpack.c.b16 %v821, %v817
    %v1010 = vpack.c.b16 %v822, %v818
    %v1011 = vpack.c.b16 %v827, %v823
    %v1012 = vpack.c.b16 %v828, %v824
    %v1013 = vpack.c.b16 %v829, %v825
    %v1014 = vpack.c.b16 %v830, %v826
    %v1015 = vpack.c.b16 %v835, %v831
    %v1016 = vpack.c.b16 %v836, %v832
    %v1017 = vpack.c.b16 %v837, %v833
    %v1018 = vpack.c.b16 %v838, %v834
    %v1019 = vpack.c.b16 %v843, %v839
    %v1020 = vpack.c.b16 %v844, %v840
    %v1021 = vpack.c.b16 %v845, %v841
    %v1022 = vpack.c.b16 %v846, %v842
    %v1023 = vpack.c.b16 %v851, %v847
    %v1024 = vpack.c.b16 %v852, %v848
    %v1025 = vpack.c.b16 %v853, %v849
    %v1026 = vpack.c.b16 %v854, %v850
    %v1027 = vpack.c.b16 %v859, %v855
    %v1028 = vpack.c.b16 %v860, %v856
    %v1029 = vpack.c.b16 %v861, %v857
    %v1030 = vpack.c.b16 %v862, %v858
    %v1031 = vpack.c.b16 %v867, %v863
    %v1032 = vpack.c.b16 %v868, %v864
    %v1033 = vpack.c.b16 %v869, %v865
    %v1034 = vpack.c.b16 %v870, %v866
    %v1035 = vpack.c.b16 %v875, %v871
    %v1036 = vpack.c.b16 %v876, %v872
    %v1037 = vpack.c.b16 %v877, %v873
    %v1038 = vpack.c.b16 %v878, %v874
    %v1039 = vpack.c.b16 %v883, %v879
    %v1040 = vpack.c.b16 %v884, %v880
    %v1041 = vpack.c.b16 %v885, %v881
    %v1042 = vpack.c.b16 %v886, %v882
    %v1043 = vpack.c.b16 %v891, %v887
    %v1044 = vpack.c.b16 %v892, %v888
    %v1045 = vpack.c.b16 %v893, %v889
    %v1046 = vpack.c.b16 %v894, %v890
    %v1047 = vpack.c.b16 %v899, %v895
    %v1048 = vpack.c.b16 %v900, %v896
    %v1049 = vpack.c.b16 %v901, %v897
    %v1050 = vpack.c.b16 %v902, %v898
    %v1051 = vpack.c.b16 %v907, %v903
    %v1052 = vpack.c.b16 %v908, %v904
    %v1053 = vpack.c.b16 %v909, %v905
    %v1054 = vpack.c.b16 %v910, %v906
    %v1055 = vpack.c.b16 %v915, %v911
    %v1056 = vpack.c.b16 %v916, %v912
    %v1057 = vpack.c.b16 %v917, %v913
    %v1058 = vpack.c.b16 %v918, %v914
    %v1059 = vpack.c.b16 %v923, %v919
    %v1060 = vpack.c.b16 %v924, %v920
    %v1061 = vpack.c.b16 %v925, %v921
    %v1062 = vpack.c.b16 %v926, %v922
    %v1063 = vpack.c.b16 %v931, %v927
    %v1064 = vpack.c.b16 %v932, %v928
    %v1065 = vpack.c.b16 %v933, %v929
    %v1066 = vpack.c.b16 %v934, %v930
    %v1067 = vpack.c.b16 %v939, %v935
    %v1068 = vpack.c.b16 %v940, %v936
    %v1069 = vpack.c.b16 %v941, %v937
    %v1070 = vpack.c.b16 %v942, %v938
    %1199 = vmatpush.bf16.msra.mxu0 %v971
    %1200 = vmatpush.bf16.msra.mxu0 %v967
    %1201 = vmatpush.bf16.msra.mxu0 %v963
    %1202 = vmatpush.bf16.msra.mxu0 %v959
    %1203 = vmatpush.bf16.msra.mxu0 %v955
    %1204 = vmatpush.bf16.msra.mxu0 %v951
    %1205 = vmatpush.bf16.msra.mxu0 %v947
    %1206 = vmatpush.bf16.msra.mxu0 %v943
    %1207 = vmatmul.bf16.gmra.mxu0 %v393
    %v1208 = vpop.f32.mrf.mxu0
    %v1209 = vadd.f32 %v551, %v1208
    %v1210 = vpop.f32.mrf.mxu0
    %v1211 = vadd.f32 %v551, %v1210
    %1212 = vmatmul.bf16.gmra.mxu0 %v395
    %v1213 = vpop.f32.mrf.mxu0
    %v1214 = vadd.f32 %v551, %v1213
    %v1215 = vpop.f32.mrf.mxu0
    %v1216 = vadd.f32 %v551, %v1215
    %1217 = vdwg.mxu0
    %1218 = vmatpush.bf16.msra.mxu0 %v1003
    %1219 = vmatpush.bf16.msra.mxu0 %v999
    %1220 = vmatpush.bf16.msra.mxu0 %v995
    %1221 = vmatpush.bf16.msra.mxu0 %v991
    %1222 = vmatpush.bf16.msra.mxu0 %v987
    %1223 = vmatpush.bf16.msra.mxu0 %v983
    %1224 = vmatpush.bf16.msra.mxu0 %v979
    %1225 = vmatpush.bf16.msra.mxu0 %v975
    %1226 = vmatmul.bf16.gmra.mxu0 %v394
    %v1227 = vpop.f32.mrf.mxu0
    %v1228 = vadd.f32 %v1209, %v1227
    %v1229 = vpop.f32.mrf.mxu0
    %v1230 = vadd.f32 %v1211, %v1229
    %1231 = vmatmul.bf16.gmra.mxu0 %v396
    %v1232 = vpop.f32.mrf.mxu0
    %v1233 = vadd.f32 %v1214, %v1232
    %v1234 = vpop.f32.mrf.mxu0
    %v1235 = vadd.f32 %v1216, %v1234
    %1236 = vdwg.mxu0
    %1237 = vmatpush.bf16.msra.mxu0 %v1035
    %1238 = vmatpush.bf16.msra.mxu0 %v1031
    %1239 = vmatpush.bf16.msra.mxu0 %v1027
    %1240 = vmatpush.bf16.msra.mxu0 %v1023
    %1241 = vmatpush.bf16.msra.mxu0 %v1019
    %1242 = vmatpush.bf16.msra.mxu0 %v1015
    %1243 = vmatpush.bf16.msra.mxu0 %v1011
    %1244 = vmatpush.bf16.msra.mxu0 %v1007
    %1245 = vmatmul.bf16.gmra.mxu0 %v413
    %v1246 = vpop.f32.mrf.mxu0
    %v1247 = vadd.f32 %v1228, %v1246
    %v1248 = vpop.f32.mrf.mxu0
    %v1249 = vadd.f32 %v1230, %v1248
    %1250 = vmatmul.bf16.gmra.mxu0 %v415
    %v1251 = vpop.f32.mrf.mxu0
    %v1252 = vadd.f32 %v1233, %v1251
    %v1253 = vpop.f32.mrf.mxu0
    %v1254 = vadd.f32 %v1235, %v1253
    %1255 = vdwg.mxu0
    %1256 = vmatpush.bf16.msra.mxu0 %v1067
    %1257 = vmatpush.bf16.msra.mxu0 %v1063
    %1258 = vmatpush.bf16.msra.mxu0 %v1059
    %1259 = vmatpush.bf16.msra.mxu0 %v1055
    %1260 = vmatpush.bf16.msra.mxu0 %v1051
    %1261 = vmatpush.bf16.msra.mxu0 %v1047
    %1262 = vmatpush.bf16.msra.mxu0 %v1043
    %1263 = vmatpush.bf16.msra.mxu0 %v1039
    %1264 = vmatmul.bf16.gmra.mxu0 %v414
    %v1265 = vpop.f32.mrf.mxu0
    %v1266 = vadd.f32 %v1247, %v1265
    %v1267 = vpop.f32.mrf.mxu0
    %v1268 = vadd.f32 %v1249, %v1267
    %1269 = vmatmul.bf16.gmra.mxu0 %v416
    %v1270 = vpop.f32.mrf.mxu0
    %v1271 = vadd.f32 %v1252, %v1270
    %v1272 = vpop.f32.mrf.mxu0
    %v1273 = vadd.f32 %v1254, %v1272
    %1274 = vdwg.mxu0
    %1275 = vmatpush.bf16.msra.mxu0 %v972
    %1276 = vmatpush.bf16.msra.mxu0 %v968
    %1277 = vmatpush.bf16.msra.mxu0 %v964
    %1278 = vmatpush.bf16.msra.mxu0 %v960
    %1279 = vmatpush.bf16.msra.mxu0 %v956
    %1280 = vmatpush.bf16.msra.mxu0 %v952
    %1281 = vmatpush.bf16.msra.mxu0 %v948
    %1282 = vmatpush.bf16.msra.mxu0 %v944
    %1283 = vmatmul.bf16.gmra.mxu0 %v393
    %v1284 = vpop.f32.mrf.mxu0
    %v1285 = vadd.f32 %v552, %v1284
    %v1286 = vpop.f32.mrf.mxu0
    %v1287 = vadd.f32 %v552, %v1286
    %1288 = vmatmul.bf16.gmra.mxu0 %v395
    %v1289 = vpop.f32.mrf.mxu0
    %v1290 = vadd.f32 %v552, %v1289
    %v1291 = vpop.f32.mrf.mxu0
    %v1292 = vadd.f32 %v552, %v1291
    %1293 = vdwg.mxu0
    %1294 = vmatpush.bf16.msra.mxu0 %v1004
    %1295 = vmatpush.bf16.msra.mxu0 %v1000
    %1296 = vmatpush.bf16.msra.mxu0 %v996
    %1297 = vmatpush.bf16.msra.mxu0 %v992
    %1298 = vmatpush.bf16.msra.mxu0 %v988
    %1299 = vmatpush.bf16.msra.mxu0 %v984
    %1300 = vmatpush.bf16.msra.mxu0 %v980
    %1301 = vmatpush.bf16.msra.mxu0 %v976
    %1302 = vmatmul.bf16.gmra.mxu0 %v394
    %v1303 = vpop.f32.mrf.mxu0
    %v1304 = vadd.f32 %v1285, %v1303
    %v1305 = vpop.f32.mrf.mxu0
    %v1306 = vadd.f32 %v1287, %v1305
    %1307 = vmatmul.bf16.gmra.mxu0 %v396
    %v1308 = vpop.f32.mrf.mxu0
    %v1309 = vadd.f32 %v1290, %v1308
    %v1310 = vpop.f32.mrf.mxu0
    %v1311 = vadd.f32 %v1292, %v1310
    %1312 = vdwg.mxu0
    %1313 = vmatpush.bf16.msra.mxu0 %v1036
    %1314 = vmatpush.bf16.msra.mxu0 %v1032
    %1315 = vmatpush.bf16.msra.mxu0 %v1028
    %1316 = vmatpush.bf16.msra.mxu0 %v1024
    %1317 = vmatpush.bf16.msra.mxu0 %v1020
    %1318 = vmatpush.bf16.msra.mxu0 %v1016
    %1319 = vmatpush.bf16.msra.mxu0 %v1012
    %1320 = vmatpush.bf16.msra.mxu0 %v1008
    %1321 = vmatmul.bf16.gmra.mxu0 %v413
    %v1322 = vpop.f32.mrf.mxu0
    %v1323 = vadd.f32 %v1304, %v1322
    %v1324 = vpop.f32.mrf.mxu0
    %v1325 = vadd.f32 %v1306, %v1324
    %1326 = vmatmul.bf16.gmra.mxu0 %v415
    %v1327 = vpop.f32.mrf.mxu0
    %v1328 = vadd.f32 %v1309, %v1327
    %v1329 = vpop.f32.mrf.mxu0
    %v1330 = vadd.f32 %v1311, %v1329
    %1331 = vdwg.mxu0
    %1332 = vmatpush.bf16.msra.mxu0 %v1068
    %1333 = vmatpush.bf16.msra.mxu0 %v1064
    %1334 = vmatpush.bf16.msra.mxu0 %v1060
    %1335 = vmatpush.bf16.msra.mxu0 %v1056
    %1336 = vmatpush.bf16.msra.mxu0 %v1052
    %1337 = vmatpush.bf16.msra.mxu0 %v1048
    %1338 = vmatpush.bf16.msra.mxu0 %v1044
    %1339 = vmatpush.bf16.msra.mxu0 %v1040
    %1340 = vmatmul.bf16.gmra.mxu0 %v414
    %v1341 = vpop.f32.mrf.mxu0
    %v1342 = vadd.f32 %v1323, %v1341
    %v1343 = vpop.f32.mrf.mxu0
    %v1344 = vadd.f32 %v1325, %v1343
    %1345 = vmatmul.bf16.gmra.mxu0 %v416
    %v1346 = vpop.f32.mrf.mxu0
    %v1347 = vadd.f32 %v1328, %v1346
    %v1348 = vpop.f32.mrf.mxu0
    %v1349 = vadd.f32 %v1330, %v1348
    %1350 = vdwg.mxu0
    %1351 = vmatpush.bf16.msra.mxu0 %v973
    %1352 = vmatpush.bf16.msra.mxu0 %v969
    %1353 = vmatpush.bf16.msra.mxu0 %v965
    %1354 = vmatpush.bf16.msra.mxu0 %v961
    %1355 = vmatpush.bf16.msra.mxu0 %v957
    %1356 = vmatpush.bf16.msra.mxu0 %v953
    %1357 = vmatpush.bf16.msra.mxu0 %v949
    %1358 = vmatpush.bf16.msra.mxu0 %v945
    %1359 = vmatmul.bf16.gmra.mxu0 %v393
    %v1360 = vpop.f32.mrf.mxu0
    %v1361 = vadd.f32 %v553, %v1360
    %v1362 = vpop.f32.mrf.mxu0
    %v1363 = vadd.f32 %v553, %v1362
    %1364 = vmatmul.bf16.gmra.mxu0 %v395
    %v1365 = vpop.f32.mrf.mxu0
    %v1366 = vadd.f32 %v553, %v1365
    %v1367 = vpop.f32.mrf.mxu0
    %1368 = vdwg.mxu0
    %1369 = vmatpush.bf16.msra.mxu0 %v1005
    %1370 = vmatpush.bf16.msra.mxu0 %v1001
    %1371 = vmatpush.bf16.msra.mxu0 %v997
    %1372 = vmatpush.bf16.msra.mxu0 %v993
    %1373 = vmatpush.bf16.msra.mxu0 %v989
    %1374 = vmatpush.bf16.msra.mxu0 %v985
    %1375 = vmatpush.bf16.msra.mxu0 %v981
    %1376 = vmatpush.bf16.msra.mxu0 %v977
    %1377 = vmatmul.bf16.gmra.mxu0 %v394
    %v1378 = vpop.f32.mrf.mxu0
    %v1379 = vadd.f32 %v1361, %v1378
    %v1380 = vpop.f32.mrf.mxu0
    %v1381 = vadd.f32 %v1363, %v1380
    %1382 = vmatmul.bf16.gmra.mxu0 %v396
    %v1383 = vpop.f32.mrf.mxu0
    %v1384 = vadd.f32 %v1366, %v1383
    %v1385 = vpop.f32.mrf.mxu0
    %1386 = vdwg.mxu0
    %1387 = vmatpush.bf16.msra.mxu0 %v1037
    %1388 = vmatpush.bf16.msra.mxu0 %v1033
    %1389 = vmatpush.bf16.msra.mxu0 %v1029
    %1390 = vmatpush.bf16.msra.mxu0 %v1025
    %1391 = vmatpush.bf16.msra.mxu0 %v1021
    %1392 = vmatpush.bf16.msra.mxu0 %v1017
    %1393 = vmatpush.bf16.msra.mxu0 %v1013
    %1394 = vmatpush.bf16.msra.mxu0 %v1009
    %1395 = vmatmul.bf16.gmra.mxu0 %v413
    %v1396 = vpop.f32.mrf.mxu0
    %v1397 = vadd.f32 %v1379, %v1396
    %v1398 = vpop.f32.mrf.mxu0
    %v1399 = vadd.f32 %v1381, %v1398
    %1400 = vmatmul.bf16.gmra.mxu0 %v415
    %v1401 = vpop.f32.mrf.mxu0
    %v1402 = vadd.f32 %v1384, %v1401
    %v1403 = vpop.f32.mrf.mxu0
    %1404 = vdwg.mxu0
    %1405 = vmatpush.bf16.msra.mxu0 %v1069
    %1406 = vmatpush.bf16.msra.mxu0 %v1065
    %1407 = vmatpush.bf16.msra.mxu0 %v1061
    %1408 = vmatpush.bf16.msra.mxu0 %v1057
    %1409 = vmatpush.bf16.msra.mxu0 %v1053
    %1410 = vmatpush.bf16.msra.mxu0 %v1049
    %1411 = vmatpush.bf16.msra.mxu0 %v1045
    %1412 = vmatpush.bf16.msra.mxu0 %v1041
    %1413 = vmatmul.bf16.gmra.mxu0 %v414
    %v1414 = vpop.f32.mrf.mxu0
    %v1415 = vadd.f32 %v1397, %v1414
    %v1416 = vpop.f32.mrf.mxu0
    %v1417 = vadd.f32 %v1399, %v1416
    %1418 = vmatmul.bf16.gmra.mxu0 %v416
    %v1419 = vpop.f32.mrf.mxu0
    %v1420 = vadd.f32 %v1402, %v1419
    %v1421 = vpop.f32.mrf.mxu0
    %1422 = vdwg.mxu0
    %1423 = vmatpush.bf16.msra.mxu0 %v974
    %1424 = vmatpush.bf16.msra.mxu0 %v970
    %1425 = vmatpush.bf16.msra.mxu0 %v966
    %1426 = vmatpush.bf16.msra.mxu0 %v962
    %1427 = vmatpush.bf16.msra.mxu0 %v958
    %1428 = vmatpush.bf16.msra.mxu0 %v954
    %1429 = vmatpush.bf16.msra.mxu0 %v950
    %1430 = vmatpush.bf16.msra.mxu0 %v946
    %1431 = vmatmul.bf16.gmra.mxu0 %v393
    %v1432 = vpop.f32.mrf.mxu0
    %v1433 = vadd.f32 %v554, %v1432
    %v1434 = vpop.f32.mrf.mxu0
    %v1435 = vadd.f32 %v554, %v1434
    %1436 = vmatmul.bf16.gmra.mxu0 %v395
    %v1437 = vpop.f32.mrf.mxu0
    %v1438 = vadd.f32 %v554, %v1437
    %v1439 = vpop.f32.mrf.mxu0
    %1440 = vdwg.mxu0
    %1441 = vmatpush.bf16.msra.mxu0 %v1006
    %1442 = vmatpush.bf16.msra.mxu0 %v1002
    %1443 = vmatpush.bf16.msra.mxu0 %v998
    %1444 = vmatpush.bf16.msra.mxu0 %v994
    %1445 = vmatpush.bf16.msra.mxu0 %v990
    %1446 = vmatpush.bf16.msra.mxu0 %v986
    %1447 = vmatpush.bf16.msra.mxu0 %v982
    %1448 = vmatpush.bf16.msra.mxu0 %v978
    %1449 = vmatmul.bf16.gmra.mxu0 %v394
    %v1450 = vpop.f32.mrf.mxu0
    %v1451 = vadd.f32 %v1433, %v1450
    %v1452 = vpop.f32.mrf.mxu0
    %v1453 = vadd.f32 %v1435, %v1452
    %1454 = vmatmul.bf16.gmra.mxu0 %v396
    %v1455 = vpop.f32.mrf.mxu0
    %v1456 = vadd.f32 %v1438, %v1455
    %v1457 = vpop.f32.mrf.mxu0
    %1458 = vdwg.mxu0
    %1459 = vmatpush.bf16.msra.mxu0 %v1038
    %1460 = vmatpush.bf16.msra.mxu0 %v1034
    %1461 = vmatpush.bf16.msra.mxu0 %v1030
    %1462 = vmatpush.bf16.msra.mxu0 %v1026
    %1463 = vmatpush.bf16.msra.mxu0 %v1022
    %1464 = vmatpush.bf16.msra.mxu0 %v1018
    %1465 = vmatpush.bf16.msra.mxu0 %v1014
    %1466 = vmatpush.bf16.msra.mxu0 %v1010
    %1467 = vmatmul.bf16.gmra.mxu0 %v413
    %v1468 = vpop.f32.mrf.mxu0
    %v1469 = vadd.f32 %v1451, %v1468
    %v1470 = vpop.f32.mrf.mxu0
    %v1471 = vadd.f32 %v1453, %v1470
    %1472 = vmatmul.bf16.gmra.mxu0 %v415
    %v1473 = vpop.f32.mrf.mxu0
    %v1474 = vadd.f32 %v1456, %v1473
    %v1475 = vpop.f32.mrf.mxu0
    %1476 = vdwg.mxu0
    %1477 = vmatpush.bf16.msra.mxu0 %v1070
    %1478 = vmatpush.bf16.msra.mxu0 %v1066
    %1479 = vmatpush.bf16.msra.mxu0 %v1062
    %1480 = vmatpush.bf16.msra.mxu0 %v1058
    %1481 = vmatpush.bf16.msra.mxu0 %v1054
    %1482 = vmatpush.bf16.msra.mxu0 %v1050
    %1483 = vmatpush.bf16.msra.mxu0 %v1046
    %1484 = vmatpush.bf16.msra.mxu0 %v1042
    %1485 = vmatmul.bf16.gmra.mxu0 %v414
    %v1486 = vpop.f32.mrf.mxu0
    %v1487 = vadd.f32 %v1469, %v1486
    %v1488 = vpop.f32.mrf.mxu0
    %v1489 = vadd.f32 %v1471, %v1488
    %1490 = vmatmul.bf16.gmra.mxu0 %v416
    %v1491 = vpop.f32.mrf.mxu0
    %v1492 = vadd.f32 %v1474, %v1491
    %v1493 = vpop.f32.mrf.mxu0
    %1494 = vdwg.mxu0
    %v1495 = vmax.f32 %v1266, 0.0
    %v1496 = vmax.f32 %v1342, 0.0
    %v1497 = vmax.f32 %v1415, 0.0
    %v1498 = vmax.f32 %v1487, 0.0
    %v1499 = vmax.f32 %v1268, 0.0
    %v1500 = vmax.f32 %v1344, 0.0
    %v1501 = vmax.f32 %v1417, 0.0
    %v1502 = vmax.f32 %v1489, 0.0
    %v1503 = vmax.f32 %v1271, 0.0
    %v1504 = vmax.f32 %v1347, 0.0
    %v1505 = vmax.f32 %v1420, 0.0
    %v1506 = vmax.f32 %v1492, 0.0
    %v1507 = vmax.f32 %v1273, 0.0
    %v1508 = vmax.f32 %v1349, 0.0
    %1509 = vst [vmem:[#allocation3] sm:$0xff] %v1495
    %1510 = vst [vmem:[#allocation3 + $0x8] sm:$0xff] %v1496
    %1511 = vst [vmem:[#allocation3 + $0x20] sm:$0xff] %v1499
    %1512 = vst [vmem:[#allocation3 + $0x28] sm:$0xff] %v1500
    %1513 = vst [vmem:[#allocation3 + $0x40] sm:$0xff] %v1503
    %1514 = vst [vmem:[#allocation3 + $0x48] sm:$0xff] %v1504
    %1515 = vst [vmem:[#allocation3 + $0x60] sm:$0xff] %v1507
    %1516 = vst [vmem:[#allocation3 + $0x68] sm:$0xff] %v1508
    %1517 = vst [vmem:[#allocation3 + $0x10] sm:$0xff] %v1497
    %1518 = vst [vmem:[#allocation3 + $0x18] sm:$0xff] %v1498
    %1519 = vst [vmem:[#allocation3 + $0x30] sm:$0xff] %v1501
    %1520 = vst [vmem:[#allocation3 + $0x38] sm:$0xff] %v1502
    %1521 = vst [vmem:[#allocation3 + $0x50] sm:$0xff] %v1505
    %1522 = vst [vmem:[#allocation3 + $0x58] sm:$0xff] %v1506
    %1523 = vst [vmem:[#allocation3 + $0x70] sm:$0xff] 0.0
    %1524 = vst [vmem:[#allocation3 + $0x78] sm:$0xff] 0.0
    %v1525 = vld [vmem:[#allocation3] sm:$0xff]
    %v1526 = vld [vmem:[#allocation3 + $0x8] sm:$0xff]
    %v1527 = vld [vmem:[#allocation3 + $0x10] sm:$0xff]
    %v1528 = vld [vmem:[#allocation3 + $0x18] sm:$0xff]
    %v1529 = vld [vmem:[#allocation3 + $0x20] sm:$0xff]
    %v1530 = vld [vmem:[#allocation3 + $0x28] sm:$0xff]
    %v1531 = vld [vmem:[#allocation3 + $0x30] sm:$0xff]
    %v1532 = vld [vmem:[#allocation3 + $0x38] sm:$0xff]
    %v1533 = vld [vmem:[#allocation3 + $0x40] sm:$0xff]
    %v1534 = vld [vmem:[#allocation3 + $0x48] sm:$0xff]
    %v1535 = vld [vmem:[#allocation3 + $0x50] sm:$0xff]
    %v1536 = vld [vmem:[#allocation3 + $0x58] sm:$0xff]
    %v1537 = vld [vmem:[#allocation3 + $0x60] sm:$0xff]
    %v1538 = vld [vmem:[#allocation3 + $0x68] sm:$0xff]
    %v1539 = vld [vmem:[#allocation3 + $0x10] sm:$0xff]
    %v1540 = vld [vmem:[#allocation3 + $0x18] sm:$0xff]
    %v1541 = vld [vmem:[#allocation3 + $0x20] sm:$0xff]
    %v1542 = vld [vmem:[#allocation3 + $0x28] sm:$0xff]
    %v1543 = vld [vmem:[#allocation3 + $0x30] sm:$0xff]
    %v1544 = vld [vmem:[#allocation3 + $0x38] sm:$0xff]
    %v1545 = vld [vmem:[#allocation3 + $0x40] sm:$0xff]
    %v1546 = vld [vmem:[#allocation3 + $0x48] sm:$0xff]
    %v1547 = vld [vmem:[#allocation3 + $0x50] sm:$0xff]
    %v1548 = vld [vmem:[#allocation3 + $0x58] sm:$0xff]
    %v1549 = vld [vmem:[#allocation3 + $0x60] sm:$0xff]
    %v1550 = vld [vmem:[#allocation3 + $0x68] sm:$0xff]
    %v1551 = vld [vmem:[#allocation3 + $0x70] sm:$0xff]
    %v1552 = vld [vmem:[#allocation3 + $0x78] sm:$0xff]
    %v1553 = vpack.c.bf16 %v1526, %v1525
    %v1554 = vpack.c.bf16 %v1528, %v1527
    %v1555 = vpack.c.bf16 %v1530, %v1529
    %v1556 = vpack.c.bf16 %v1532, %v1531
    %v1557 = vpack.c.bf16 %v1534, %v1533
    %v1558 = vpack.c.bf16 %v1536, %v1535
    %v1559 = vpack.c.bf16 %v1538, %v1537
    %v1560 = vpack.c.bf16 %v1540, %v1539
    %v1561 = vpack.c.bf16 %v1542, %v1541
    %v1562 = vpack.c.bf16 %v1544, %v1543
    %v1563 = vpack.c.bf16 %v1546, %v1545
    %v1564 = vpack.c.bf16 %v1548, %v1547
    %v1565 = vpack.c.bf16 %v1550, %v1549
    %v1566 = vpack.c.bf16 %v1552, %v1551
    %v1574 = vunpack.c.l.b16 %v1553
    %v1575 = vunpack.c.h.b16 %v1553
    %v1576 = vunpack.c.l.b16 %v1554
    %v1577 = vunpack.c.h.b16 %v1554
    %v1578 = vunpack.c.l.b16 %v1555
    %v1579 = vunpack.c.h.b16 %v1555
    %v1580 = vunpack.c.l.b16 %v1556
    %v1581 = vunpack.c.h.b16 %v1556
    %v1582 = vunpack.c.l.b16 %v1557
    %v1583 = vunpack.c.h.b16 %v1557
    %v1584 = vunpack.c.l.b16 %v1558
    %v1585 = vunpack.c.h.b16 %v1558
    %v1586 = vunpack.c.l.b16 %v1559
    %v1587 = vunpack.c.h.b16 %v1559
    %v1588 = vpack.c.b16 %v1576, %v1574
    %v1589 = vpack.c.b16 %v1577, %v1575
    %v1590 = vpack.c.b16 %v1580, %v1578
    %v1591 = vpack.c.b16 %v1581, %v1579
    %v1592 = vpack.c.b16 %v1584, %v1582
    %v1593 = vpack.c.b16 %v1585, %v1583
    %v1594 = vpack.c.b16 %v1586, %v1586
    %v1595 = vpack.c.b16 %v1587, %v1587
    %v1611 = vunpack.c.l.b16 %v1560
    %v1612 = vunpack.c.h.b16 %v1560
    %v1613 = vunpack.c.l.b16 %v1561
    %v1614 = vunpack.c.h.b16 %v1561
    %v1615 = vunpack.c.l.b16 %v1562
    %v1616 = vunpack.c.h.b16 %v1562
    %v1617 = vunpack.c.l.b16 %v1563
    %v1618 = vunpack.c.h.b16 %v1563
    %v1619 = vunpack.c.l.b16 %v1564
    %v1620 = vunpack.c.h.b16 %v1564
    %v1621 = vunpack.c.l.b16 %v1565
    %v1622 = vunpack.c.h.b16 %v1565
    %v1623 = vunpack.c.l.b16 %v1566
    %v1624 = vunpack.c.h.b16 %v1566
    %v1625 = vpack.c.b16 %v1613, %v1611
    %v1626 = vpack.c.b16 %v1614, %v1612
    %v1627 = vpack.c.b16 %v1617, %v1615
    %v1628 = vpack.c.b16 %v1618, %v1616
    %v1629 = vpack.c.b16 %v1621, %v1619
    %v1630 = vpack.c.b16 %v1622, %v1620
    %v1631 = vpack.c.b16 %v1623, %v1623
    %v1632 = vpack.c.b16 %v1624, %v1624
    %v1641 = vld [vmem:[#allocation9] sm:$0xff]
    %v1642 = vld [vmem:[#allocation9 + $0x8] sm:$0xff]
    %v1643 = vld [vmem:[#allocation9 + $0x10] sm:$0xff]
    %v1644 = vld [vmem:[#allocation9 + $0x18] sm:$0xff]
    %v1645 = vld [vmem:[#allocation9 + $0x20] sm:$0xff]
    %v1646 = vld [vmem:[#allocation9 + $0x28] sm:$0xff]
    %v1647 = vld [vmem:[#allocation9 + $0x30] sm:$0xff]
    %v1648 = vld [vmem:[#allocation9 + $0x38] sm:$0xff]
    %v1649 = vld [vmem:[#allocation9 + $0x40] sm:$0xff]
    %v1650 = vld [vmem:[#allocation9 + $0x48] sm:$0xff]
    %v1651 = vld [vmem:[#allocation9 + $0x50] sm:$0xff]
    %v1652 = vld [vmem:[#allocation9 + $0x58] sm:$0xff]
    %v1653 = vld [vmem:[#allocation9 + $0x60] sm:$0xff]
    %v1654 = vld [vmem:[#allocation9 + $0x68] sm:$0xff]
    %v1655 = vld [vmem:[#allocation9 + $0x70] sm:$0xff]
    %v1656 = vld [vmem:[#allocation9 + $0x78] sm:$0xff]
    %v1657 = vld [vmem:[#allocation9 + $0x80] sm:$0xff]
    %v1658 = vld [vmem:[#allocation9 + $0x88] sm:$0xff]
    %v1659 = vld [vmem:[#allocation9 + $0x90] sm:$0xff]
    %v1660 = vld [vmem:[#allocation9 + $0x98] sm:$0xff]
    %v1661 = vld [vmem:[#allocation9 + $0xa0] sm:$0xff]
    %v1662 = vld [vmem:[#allocation9 + $0xa8] sm:$0xff]
    %v1663 = vld [vmem:[#allocation9 + $0xb0] sm:$0xff]
    %v1664 = vld [vmem:[#allocation9 + $0xb8] sm:$0xff]
    %v1665 = vld [vmem:[#allocation9 + $0xc0] sm:$0xff]
    %v1666 = vld [vmem:[#allocation9 + $0xc8] sm:$0xff]
    %v1667 = vld [vmem:[#allocation9 + $0xd0] sm:$0xff]
    %v1668 = vld [vmem:[#allocation9 + $0xd8] sm:$0xff]
    %v1669 = vld [vmem:[#allocation9 + $0xe0] sm:$0xff]
    %v1670 = vld [vmem:[#allocation9 + $0xe8] sm:$0xff]
    %v1671 = vld [vmem:[#allocation9 + $0xf0] sm:$0xff]
    %v1672 = vld [vmem:[#allocation9 + $0xf8] sm:$0xff]
    %v1673 = vld [vmem:[#allocation9 + $0x100] sm:$0xff]
    %v1674 = vld [vmem:[#allocation9 + $0x108] sm:$0xff]
    %v1675 = vld [vmem:[#allocation9 + $0x110] sm:$0xff]
    %v1676 = vld [vmem:[#allocation9 + $0x118] sm:$0xff]
    %v1677 = vld [vmem:[#allocation9 + $0x120] sm:$0xff]
    %v1678 = vld [vmem:[#allocation9 + $0x128] sm:$0xff]
    %v1679 = vld [vmem:[#allocation9 + $0x130] sm:$0xff]
    %v1680 = vld [vmem:[#allocation9 + $0x138] sm:$0xff]
    %v1681 = vld [vmem:[#allocation9 + $0x140] sm:$0xff]
    %v1682 = vld [vmem:[#allocation9 + $0x148] sm:$0xff]
    %v1683 = vld [vmem:[#allocation9 + $0x150] sm:$0xff]
    %v1684 = vld [vmem:[#allocation9 + $0x158] sm:$0xff]
    %v1685 = vld [vmem:[#allocation9 + $0x160] sm:$0xff]
    %v1686 = vld [vmem:[#allocation9 + $0x168] sm:$0xff]
    %v1687 = vld [vmem:[#allocation9 + $0x170] sm:$0xff]
    %v1688 = vld [vmem:[#allocation9 + $0x178] sm:$0xff]
    %v1689 = vld [vmem:[#allocation9 + $0x180] sm:$0xff]
    %v1690 = vld [vmem:[#allocation9 + $0x188] sm:$0xff]
    %v1691 = vld [vmem:[#allocation9 + $0x190] sm:$0xff]
    %v1692 = vld [vmem:[#allocation9 + $0x198] sm:$0xff]
    %v1693 = vld [vmem:[#allocation9 + $0x1a0] sm:$0xff]
    %v1694 = vld [vmem:[#allocation9 + $0x1a8] sm:$0xff]
    %v1695 = vld [vmem:[#allocation9 + $0x1b0] sm:$0xff]
    %v1696 = vld [vmem:[#allocation9 + $0x1b8] sm:$0xff]
    %v1697 = vld [vmem:[#allocation9 + $0x1c0] sm:$0xff]
    %v1698 = vld [vmem:[#allocation9 + $0x1c8] sm:$0xff]
    %v1699 = vld [vmem:[#allocation9 + $0x1d0] sm:$0xff]
    %v1700 = vld [vmem:[#allocation9 + $0x1d8] sm:$0xff]
    %v1701 = vld [vmem:[#allocation9 + $0x1e0] sm:$0xff]
    %v1702 = vld [vmem:[#allocation9 + $0x1e8] sm:$0xff]
    %v1703 = vld [vmem:[#allocation9 + $0x1f0] sm:$0xff]
    %v1704 = vld [vmem:[#allocation9 + $0x1f8] sm:$0xff]
    %v1705 = vld [vmem:[#allocation9 + $0x200] sm:$0xff]
    %v1706 = vld [vmem:[#allocation9 + $0x208] sm:$0xff]
    %v1707 = vld [vmem:[#allocation9 + $0x210] sm:$0xff]
    %v1708 = vld [vmem:[#allocation9 + $0x218] sm:$0xff]
    %v1709 = vld [vmem:[#allocation9 + $0x220] sm:$0xff]
    %v1710 = vld [vmem:[#allocation9 + $0x228] sm:$0xff]
    %v1711 = vld [vmem:[#allocation9 + $0x230] sm:$0xff]
    %v1712 = vld [vmem:[#allocation9 + $0x238] sm:$0xff]
    %v1713 = vld [vmem:[#allocation9 + $0x240] sm:$0xff]
    %v1714 = vld [vmem:[#allocation9 + $0x248] sm:$0xff]
    %v1715 = vld [vmem:[#allocation9 + $0x250] sm:$0xff]
    %v1716 = vld [vmem:[#allocation9 + $0x258] sm:$0xff]
    %v1717 = vld [vmem:[#allocation9 + $0x260] sm:$0xff]
    %v1718 = vld [vmem:[#allocation9 + $0x268] sm:$0xff]
    %v1719 = vld [vmem:[#allocation9 + $0x270] sm:$0xff]
    %v1720 = vld [vmem:[#allocation9 + $0x278] sm:$0xff]
    %v1721 = vld [vmem:[#allocation9 + $0x280] sm:$0xff]
    %v1722 = vld [vmem:[#allocation9 + $0x288] sm:$0xff]
    %v1723 = vld [vmem:[#allocation9 + $0x290] sm:$0xff]
    %v1724 = vld [vmem:[#allocation9 + $0x298] sm:$0xff]
    %v1725 = vld [vmem:[#allocation9 + $0x2a0] sm:$0xff]
    %v1726 = vld [vmem:[#allocation9 + $0x2a8] sm:$0xff]
    %v1727 = vld [vmem:[#allocation9 + $0x2b0] sm:$0xff]
    %v1728 = vld [vmem:[#allocation9 + $0x2b8] sm:$0xff]
    %v1729 = vld [vmem:[#allocation9 + $0x2c0] sm:$0xff]
    %v1730 = vld [vmem:[#allocation9 + $0x2c8] sm:$0xff]
    %v1731 = vld [vmem:[#allocation9 + $0x2d0] sm:$0xff]
    %v1732 = vld [vmem:[#allocation9 + $0x2d8] sm:$0xff]
    %v1733 = vld [vmem:[#allocation9 + $0x2e0] sm:$0xff]
    %v1734 = vld [vmem:[#allocation9 + $0x2e8] sm:$0xff]
    %v1735 = vld [vmem:[#allocation9 + $0x2f0] sm:$0xff]
    %v1736 = vld [vmem:[#allocation9 + $0x2f8] sm:$0xff]
    %v1737 = vld [vmem:[#allocation9 + $0x300] sm:$0xff]
    %v1738 = vld [vmem:[#allocation9 + $0x308] sm:$0xff]
    %v1739 = vld [vmem:[#allocation9 + $0x310] sm:$0xff]
    %v1740 = vld [vmem:[#allocation9 + $0x318] sm:$0xff]
    %v1741 = vld [vmem:[#allocation9 + $0x320] sm:$0xff]
    %v1742 = vld [vmem:[#allocation9 + $0x328] sm:$0xff]
    %v1743 = vld [vmem:[#allocation9 + $0x330] sm:$0xff]
    %v1744 = vld [vmem:[#allocation9 + $0x338] sm:$0xff]
    %v1745 = vld [vmem:[#allocation9 + $0x340] sm:$0xff]
    %v1746 = vld [vmem:[#allocation9 + $0x348] sm:$0xff]
    %v1747 = vld [vmem:[#allocation9 + $0x350] sm:$0xff]
    %v1748 = vld [vmem:[#allocation9 + $0x358] sm:$0xff]
    %v1749 = vld [vmem:[#allocation9 + $0x360] sm:$0xff]
    %v1750 = vld [vmem:[#allocation9 + $0x368] sm:$0xff]
    %v1751 = vld [vmem:[#allocation9 + $0x370] sm:$0xff]
    %v1752 = vld [vmem:[#allocation9 + $0x378] sm:$0xff]
    %v1753 = vld [vmem:[#allocation9 + $0x380] sm:$0xff]
    %v1754 = vld [vmem:[#allocation9 + $0x388] sm:$0xff]
    %v1755 = vld [vmem:[#allocation9 + $0x390] sm:$0xff]
    %v1756 = vld [vmem:[#allocation9 + $0x398] sm:$0xff]
    %v1757 = vld [vmem:[#allocation9 + $0x3a0] sm:$0xff]
    %v1758 = vld [vmem:[#allocation9 + $0x3a8] sm:$0xff]
    %v1759 = vld [vmem:[#allocation9 + $0x3b0] sm:$0xff]
    %v1760 = vld [vmem:[#allocation9 + $0x3b8] sm:$0xff]
    %v1761 = vld [vmem:[#allocation9 + $0x3c0] sm:$0xff]
    %v1762 = vld [vmem:[#allocation9 + $0x3c8] sm:$0xff]
    %v1763 = vld [vmem:[#allocation9 + $0x3d0] sm:$0xff]
    %v1764 = vld [vmem:[#allocation9 + $0x3d8] sm:$0xff]
    %v1765 = vld [vmem:[#allocation9 + $0x3e0] sm:$0xff]
    %v1766 = vld [vmem:[#allocation9 + $0x3e8] sm:$0xff]
    %v1767 = vld [vmem:[#allocation9 + $0x3f0] sm:$0xff]
    %v1768 = vld [vmem:[#allocation9 + $0x3f8] sm:$0xff]
    %v1769 = vld [vmem:[#allocation10] sm:$0xf]
    %v1771 = vperm.slane %v1769, 0
    %v1772 = vperm.slane %v1769, 1
    %v1773 = vperm.slane %v1769, 2
    %v1774 = vperm.slane %v1769, 3
    %v1907 = vunpack.c.l.b16 %v1641
    %v1908 = vunpack.c.h.b16 %v1641
    %v1909 = vunpack.c.l.b16 %v1642
    %v1910 = vunpack.c.h.b16 %v1642
    %v1911 = vunpack.c.l.b16 %v1643
    %v1912 = vunpack.c.h.b16 %v1643
    %v1913 = vunpack.c.l.b16 %v1644
    %v1914 = vunpack.c.h.b16 %v1644
    %v1915 = vunpack.c.l.b16 %v1645
    %v1916 = vunpack.c.h.b16 %v1645
    %v1917 = vunpack.c.l.b16 %v1646
    %v1918 = vunpack.c.h.b16 %v1646
    %v1919 = vunpack.c.l.b16 %v1647
    %v1920 = vunpack.c.h.b16 %v1647
    %v1921 = vunpack.c.l.b16 %v1648
    %v1922 = vunpack.c.h.b16 %v1648
    %v1923 = vunpack.c.l.b16 %v1649
    %v1924 = vunpack.c.h.b16 %v1649
    %v1925 = vunpack.c.l.b16 %v1650
    %v1926 = vunpack.c.h.b16 %v1650
    %v1927 = vunpack.c.l.b16 %v1651
    %v1928 = vunpack.c.h.b16 %v1651
    %v1929 = vunpack.c.l.b16 %v1652
    %v1930 = vunpack.c.h.b16 %v1652
    %v1931 = vunpack.c.l.b16 %v1653
    %v1932 = vunpack.c.h.b16 %v1653
    %v1933 = vunpack.c.l.b16 %v1654
    %v1934 = vunpack.c.h.b16 %v1654
    %v1935 = vunpack.c.l.b16 %v1655
    %v1936 = vunpack.c.h.b16 %v1655
    %v1937 = vunpack.c.l.b16 %v1656
    %v1938 = vunpack.c.h.b16 %v1656
    %v1939 = vunpack.c.l.b16 %v1657
    %v1940 = vunpack.c.h.b16 %v1657
    %v1941 = vunpack.c.l.b16 %v1658
    %v1942 = vunpack.c.h.b16 %v1658
    %v1943 = vunpack.c.l.b16 %v1659
    %v1944 = vunpack.c.h.b16 %v1659
    %v1945 = vunpack.c.l.b16 %v1660
    %v1946 = vunpack.c.h.b16 %v1660
    %v1947 = vunpack.c.l.b16 %v1661
    %v1948 = vunpack.c.h.b16 %v1661
    %v1949 = vunpack.c.l.b16 %v1662
    %v1950 = vunpack.c.h.b16 %v1662
    %v1951 = vunpack.c.l.b16 %v1663
    %v1952 = vunpack.c.h.b16 %v1663
    %v1953 = vunpack.c.l.b16 %v1664
    %v1954 = vunpack.c.h.b16 %v1664
    %v1955 = vunpack.c.l.b16 %v1665
    %v1956 = vunpack.c.h.b16 %v1665
    %v1957 = vunpack.c.l.b16 %v1666
    %v1958 = vunpack.c.h.b16 %v1666
    %v1959 = vunpack.c.l.b16 %v1667
    %v1960 = vunpack.c.h.b16 %v1667
    %v1961 = vunpack.c.l.b16 %v1668
    %v1962 = vunpack.c.h.b16 %v1668
    %v1963 = vunpack.c.l.b16 %v1669
    %v1964 = vunpack.c.h.b16 %v1669
    %v1965 = vunpack.c.l.b16 %v1670
    %v1966 = vunpack.c.h.b16 %v1670
    %v1967 = vunpack.c.l.b16 %v1671
    %v1968 = vunpack.c.h.b16 %v1671
    %v1969 = vunpack.c.l.b16 %v1672
    %v1970 = vunpack.c.h.b16 %v1672
    %v1971 = vunpack.c.l.b16 %v1673
    %v1972 = vunpack.c.h.b16 %v1673
    %v1973 = vunpack.c.l.b16 %v1674
    %v1974 = vunpack.c.h.b16 %v1674
    %v1975 = vunpack.c.l.b16 %v1675
    %v1976 = vunpack.c.h.b16 %v1675
    %v1977 = vunpack.c.l.b16 %v1676
    %v1978 = vunpack.c.h.b16 %v1676
    %v1979 = vunpack.c.l.b16 %v1677
    %v1980 = vunpack.c.h.b16 %v1677
    %v1981 = vunpack.c.l.b16 %v1678
    %v1982 = vunpack.c.h.b16 %v1678
    %v1983 = vunpack.c.l.b16 %v1679
    %v1984 = vunpack.c.h.b16 %v1679
    %v1985 = vunpack.c.l.b16 %v1680
    %v1986 = vunpack.c.h.b16 %v1680
    %v1987 = vunpack.c.l.b16 %v1681
    %v1988 = vunpack.c.h.b16 %v1681
    %v1989 = vunpack.c.l.b16 %v1682
    %v1990 = vunpack.c.h.b16 %v1682
    %v1991 = vunpack.c.l.b16 %v1683
    %v1992 = vunpack.c.h.b16 %v1683
    %v1993 = vunpack.c.l.b16 %v1684
    %v1994 = vunpack.c.h.b16 %v1684
    %v1995 = vunpack.c.l.b16 %v1685
    %v1996 = vunpack.c.h.b16 %v1685
    %v1997 = vunpack.c.l.b16 %v1686
    %v1998 = vunpack.c.h.b16 %v1686
    %v1999 = vunpack.c.l.b16 %v1687
    %v2000 = vunpack.c.h.b16 %v1687
    %v2001 = vunpack.c.l.b16 %v1688
    %v2002 = vunpack.c.h.b16 %v1688
    %v2003 = vunpack.c.l.b16 %v1689
    %v2004 = vunpack.c.h.b16 %v1689
    %v2005 = vunpack.c.l.b16 %v1690
    %v2006 = vunpack.c.h.b16 %v1690
    %v2007 = vunpack.c.l.b16 %v1691
    %v2008 = vunpack.c.h.b16 %v1691
    %v2009 = vunpack.c.l.b16 %v1692
    %v2010 = vunpack.c.h.b16 %v1692
    %v2011 = vunpack.c.l.b16 %v1693
    %v2012 = vunpack.c.h.b16 %v1693
    %v2013 = vunpack.c.l.b16 %v1694
    %v2014 = vunpack.c.h.b16 %v1694
    %v2015 = vunpack.c.l.b16 %v1695
    %v2016 = vunpack.c.h.b16 %v1695
    %v2017 = vunpack.c.l.b16 %v1696
    %v2018 = vunpack.c.h.b16 %v1696
    %v2019 = vunpack.c.l.b16 %v1697
    %v2020 = vunpack.c.h.b16 %v1697
    %v2021 = vunpack.c.l.b16 %v1698
    %v2022 = vunpack.c.h.b16 %v1698
    %v2023 = vunpack.c.l.b16 %v1699
    %v2024 = vunpack.c.h.b16 %v1699
    %v2025 = vunpack.c.l.b16 %v1700
    %v2026 = vunpack.c.h.b16 %v1700
    %v2027 = vunpack.c.l.b16 %v1701
    %v2028 = vunpack.c.h.b16 %v1701
    %v2029 = vunpack.c.l.b16 %v1702
    %v2030 = vunpack.c.h.b16 %v1702
    %v2031 = vunpack.c.l.b16 %v1703
    %v2032 = vunpack.c.h.b16 %v1703
    %v2033 = vunpack.c.l.b16 %v1704
    %v2034 = vunpack.c.h.b16 %v1704
    %v2035 = vunpack.c.l.b16 %v1705
    %v2036 = vunpack.c.h.b16 %v1705
    %v2037 = vunpack.c.l.b16 %v1706
    %v2038 = vunpack.c.h.b16 %v1706
    %v2039 = vunpack.c.l.b16 %v1707
    %v2040 = vunpack.c.h.b16 %v1707
    %v2041 = vunpack.c.l.b16 %v1708
    %v2042 = vunpack.c.h.b16 %v1708
    %v2043 = vunpack.c.l.b16 %v1709
    %v2044 = vunpack.c.h.b16 %v1709
    %v2045 = vunpack.c.l.b16 %v1710
    %v2046 = vunpack.c.h.b16 %v1710
    %v2047 = vunpack.c.l.b16 %v1711
    %v2048 = vunpack.c.h.b16 %v1711
    %v2049 = vunpack.c.l.b16 %v1712
    %v2050 = vunpack.c.h.b16 %v1712
    %v2051 = vunpack.c.l.b16 %v1713
    %v2052 = vunpack.c.h.b16 %v1713
    %v2053 = vunpack.c.l.b16 %v1714
    %v2054 = vunpack.c.h.b16 %v1714
    %v2055 = vunpack.c.l.b16 %v1715
    %v2056 = vunpack.c.h.b16 %v1715
    %v2057 = vunpack.c.l.b16 %v1716
    %v2058 = vunpack.c.h.b16 %v1716
    %v2059 = vunpack.c.l.b16 %v1717
    %v2060 = vunpack.c.h.b16 %v1717
    %v2061 = vunpack.c.l.b16 %v1718
    %v2062 = vunpack.c.h.b16 %v1718
    %v2063 = vunpack.c.l.b16 %v1719
    %v2064 = vunpack.c.h.b16 %v1719
    %v2065 = vunpack.c.l.b16 %v1720
    %v2066 = vunpack.c.h.b16 %v1720
    %v2067 = vunpack.c.l.b16 %v1721
    %v2068 = vunpack.c.h.b16 %v1721
    %v2069 = vunpack.c.l.b16 %v1722
    %v2070 = vunpack.c.h.b16 %v1722
    %v2071 = vunpack.c.l.b16 %v1723
    %v2072 = vunpack.c.h.b16 %v1723
    %v2073 = vunpack.c.l.b16 %v1724
    %v2074 = vunpack.c.h.b16 %v1724
    %v2075 = vunpack.c.l.b16 %v1725
    %v2076 = vunpack.c.h.b16 %v1725
    %v2077 = vunpack.c.l.b16 %v1726
    %v2078 = vunpack.c.h.b16 %v1726
    %v2079 = vunpack.c.l.b16 %v1727
    %v2080 = vunpack.c.h.b16 %v1727
    %v2081 = vunpack.c.l.b16 %v1728
    %v2082 = vunpack.c.h.b16 %v1728
    %v2083 = vunpack.c.l.b16 %v1729
    %v2084 = vunpack.c.h.b16 %v1729
    %v2085 = vunpack.c.l.b16 %v1730
    %v2086 = vunpack.c.h.b16 %v1730
    %v2087 = vunpack.c.l.b16 %v1731
    %v2088 = vunpack.c.h.b16 %v1731
    %v2089 = vunpack.c.l.b16 %v1732
    %v2090 = vunpack.c.h.b16 %v1732
    %v2091 = vunpack.c.l.b16 %v1733
    %v2092 = vunpack.c.h.b16 %v1733
    %v2093 = vunpack.c.l.b16 %v1734
    %v2094 = vunpack.c.h.b16 %v1734
    %v2095 = vunpack.c.l.b16 %v1735
    %v2096 = vunpack.c.h.b16 %v1735
    %v2097 = vunpack.c.l.b16 %v1736
    %v2098 = vunpack.c.h.b16 %v1736
    %v2099 = vunpack.c.l.b16 %v1737
    %v2100 = vunpack.c.h.b16 %v1737
    %v2101 = vunpack.c.l.b16 %v1738
    %v2102 = vunpack.c.h.b16 %v1738
    %v2103 = vunpack.c.l.b16 %v1739
    %v2104 = vunpack.c.h.b16 %v1739
    %v2105 = vunpack.c.l.b16 %v1740
    %v2106 = vunpack.c.h.b16 %v1740
    %v2107 = vunpack.c.l.b16 %v1741
    %v2108 = vunpack.c.h.b16 %v1741
    %v2109 = vunpack.c.l.b16 %v1742
    %v2110 = vunpack.c.h.b16 %v1742
    %v2111 = vunpack.c.l.b16 %v1743
    %v2112 = vunpack.c.h.b16 %v1743
    %v2113 = vunpack.c.l.b16 %v1744
    %v2114 = vunpack.c.h.b16 %v1744
    %v2115 = vunpack.c.l.b16 %v1745
    %v2116 = vunpack.c.h.b16 %v1745
    %v2117 = vunpack.c.l.b16 %v1746
    %v2118 = vunpack.c.h.b16 %v1746
    %v2119 = vunpack.c.l.b16 %v1747
    %v2120 = vunpack.c.h.b16 %v1747
    %v2121 = vunpack.c.l.b16 %v1748
    %v2122 = vunpack.c.h.b16 %v1748
    %v2123 = vunpack.c.l.b16 %v1749
    %v2124 = vunpack.c.h.b16 %v1749
    %v2125 = vunpack.c.l.b16 %v1750
    %v2126 = vunpack.c.h.b16 %v1750
    %v2127 = vunpack.c.l.b16 %v1751
    %v2128 = vunpack.c.h.b16 %v1751
    %v2129 = vunpack.c.l.b16 %v1752
    %v2130 = vunpack.c.h.b16 %v1752
    %v2131 = vunpack.c.l.b16 %v1753
    %v2132 = vunpack.c.h.b16 %v1753
    %v2133 = vunpack.c.l.b16 %v1754
    %v2134 = vunpack.c.h.b16 %v1754
    %v2135 = vunpack.c.l.b16 %v1755
    %v2136 = vunpack.c.h.b16 %v1755
    %v2137 = vunpack.c.l.b16 %v1756
    %v2138 = vunpack.c.h.b16 %v1756
    %v2139 = vunpack.c.l.b16 %v1757
    %v2140 = vunpack.c.h.b16 %v1757
    %v2141 = vunpack.c.l.b16 %v1758
    %v2142 = vunpack.c.h.b16 %v1758
    %v2143 = vunpack.c.l.b16 %v1759
    %v2144 = vunpack.c.h.b16 %v1759
    %v2145 = vunpack.c.l.b16 %v1760
    %v2146 = vunpack.c.h.b16 %v1760
    %v2147 = vunpack.c.l.b16 %v1761
    %v2148 = vunpack.c.h.b16 %v1761
    %v2149 = vunpack.c.l.b16 %v1762
    %v2150 = vunpack.c.h.b16 %v1762
    %v2151 = vunpack.c.l.b16 %v1763
    %v2152 = vunpack.c.h.b16 %v1763
    %v2153 = vunpack.c.l.b16 %v1764
    %v2154 = vunpack.c.h.b16 %v1764
    %v2155 = vunpack.c.l.b16 %v1765
    %v2156 = vunpack.c.h.b16 %v1765
    %v2157 = vunpack.c.l.b16 %v1766
    %v2158 = vunpack.c.h.b16 %v1766
    %v2159 = vunpack.c.l.b16 %v1767
    %v2160 = vunpack.c.h.b16 %v1767
    %v2161 = vunpack.c.l.b16 %v1768
    %v2162 = vunpack.c.h.b16 %v1768
    %v2163 = vpack.c.b16 %v1911, %v1907
    %v2164 = vpack.c.b16 %v1912, %v1908
    %v2165 = vpack.c.b16 %v1913, %v1909
    %v2166 = vpack.c.b16 %v1914, %v1910
    %v2167 = vpack.c.b16 %v1919, %v1915
    %v2168 = vpack.c.b16 %v1920, %v1916
    %v2169 = vpack.c.b16 %v1921, %v1917
    %v2170 = vpack.c.b16 %v1922, %v1918
    %v2171 = vpack.c.b16 %v1927, %v1923
    %v2172 = vpack.c.b16 %v1928, %v1924
    %v2173 = vpack.c.b16 %v1929, %v1925
    %v2174 = vpack.c.b16 %v1930, %v1926
    %v2175 = vpack.c.b16 %v1935, %v1931
    %v2176 = vpack.c.b16 %v1936, %v1932
    %v2177 = vpack.c.b16 %v1937, %v1933
    %v2178 = vpack.c.b16 %v1938, %v1934
    %v2179 = vpack.c.b16 %v1943, %v1939
    %v2180 = vpack.c.b16 %v1944, %v1940
    %v2181 = vpack.c.b16 %v1945, %v1941
    %v2182 = vpack.c.b16 %v1946, %v1942
    %v2183 = vpack.c.b16 %v1951, %v1947
    %v2184 = vpack.c.b16 %v1952, %v1948
    %v2185 = vpack.c.b16 %v1953, %v1949
    %v2186 = vpack.c.b16 %v1954, %v1950
    %v2187 = vpack.c.b16 %v1959, %v1955
    %v2188 = vpack.c.b16 %v1960, %v1956
    %v2189 = vpack.c.b16 %v1961, %v1957
    %v2190 = vpack.c.b16 %v1962, %v1958
    %v2191 = vpack.c.b16 %v1967, %v1963
    %v2192 = vpack.c.b16 %v1968, %v1964
    %v2193 = vpack.c.b16 %v1969, %v1965
    %v2194 = vpack.c.b16 %v1970, %v1966
    %v2195 = vpack.c.b16 %v1975, %v1971
    %v2196 = vpack.c.b16 %v1976, %v1972
    %v2197 = vpack.c.b16 %v1977, %v1973
    %v2198 = vpack.c.b16 %v1978, %v1974
    %v2199 = vpack.c.b16 %v1983, %v1979
    %v2200 = vpack.c.b16 %v1984, %v1980
    %v2201 = vpack.c.b16 %v1985, %v1981
    %v2202 = vpack.c.b16 %v1986, %v1982
    %v2203 = vpack.c.b16 %v1991, %v1987
    %v2204 = vpack.c.b16 %v1992, %v1988
    %v2205 = vpack.c.b16 %v1993, %v1989
    %v2206 = vpack.c.b16 %v1994, %v1990
    %v2207 = vpack.c.b16 %v1999, %v1995
    %v2208 = vpack.c.b16 %v2000, %v1996
    %v2209 = vpack.c.b16 %v2001, %v1997
    %v2210 = vpack.c.b16 %v2002, %v1998
    %v2211 = vpack.c.b16 %v2007, %v2003
    %v2212 = vpack.c.b16 %v2008, %v2004
    %v2213 = vpack.c.b16 %v2009, %v2005
    %v2214 = vpack.c.b16 %v2010, %v2006
    %v2215 = vpack.c.b16 %v2015, %v2011
    %v2216 = vpack.c.b16 %v2016, %v2012
    %v2217 = vpack.c.b16 %v2017, %v2013
    %v2218 = vpack.c.b16 %v2018, %v2014
    %v2219 = vpack.c.b16 %v2023, %v2019
    %v2220 = vpack.c.b16 %v2024, %v2020
    %v2221 = vpack.c.b16 %v2025, %v2021
    %v2222 = vpack.c.b16 %v2026, %v2022
    %v2223 = vpack.c.b16 %v2031, %v2027
    %v2224 = vpack.c.b16 %v2032, %v2028
    %v2225 = vpack.c.b16 %v2033, %v2029
    %v2226 = vpack.c.b16 %v2034, %v2030
    %v2227 = vpack.c.b16 %v2039, %v2035
    %v2228 = vpack.c.b16 %v2040, %v2036
    %v2229 = vpack.c.b16 %v2041, %v2037
    %v2230 = vpack.c.b16 %v2042, %v2038
    %v2231 = vpack.c.b16 %v2047, %v2043
    %v2232 = vpack.c.b16 %v2048, %v2044
    %v2233 = vpack.c.b16 %v2049, %v2045
    %v2234 = vpack.c.b16 %v2050, %v2046
    %v2235 = vpack.c.b16 %v2055, %v2051
    %v2236 = vpack.c.b16 %v2056, %v2052
    %v2237 = vpack.c.b16 %v2057, %v2053
    %v2238 = vpack.c.b16 %v2058, %v2054
    %v2239 = vpack.c.b16 %v2063, %v2059
    %v2240 = vpack.c.b16 %v2064, %v2060
    %v2241 = vpack.c.b16 %v2065, %v2061
    %v2242 = vpack.c.b16 %v2066, %v2062
    %v2243 = vpack.c.b16 %v2071, %v2067
    %v2244 = vpack.c.b16 %v2072, %v2068
    %v2245 = vpack.c.b16 %v2073, %v2069
    %v2246 = vpack.c.b16 %v2074, %v2070
    %v2247 = vpack.c.b16 %v2079, %v2075
    %v2248 = vpack.c.b16 %v2080, %v2076
    %v2249 = vpack.c.b16 %v2081, %v2077
    %v2250 = vpack.c.b16 %v2082, %v2078
    %v2251 = vpack.c.b16 %v2087, %v2083
    %v2252 = vpack.c.b16 %v2088, %v2084
    %v2253 = vpack.c.b16 %v2089, %v2085
    %v2254 = vpack.c.b16 %v2090, %v2086
    %v2255 = vpack.c.b16 %v2095, %v2091
    %v2256 = vpack.c.b16 %v2096, %v2092
    %v2257 = vpack.c.b16 %v2097, %v2093
    %v2258 = vpack.c.b16 %v2098, %v2094
    %v2259 = vpack.c.b16 %v2103, %v2099
    %v2260 = vpack.c.b16 %v2104, %v2100
    %v2261 = vpack.c.b16 %v2105, %v2101
    %v2262 = vpack.c.b16 %v2106, %v2102
    %v2263 = vpack.c.b16 %v2111, %v2107
    %v2264 = vpack.c.b16 %v2112, %v2108
    %v2265 = vpack.c.b16 %v2113, %v2109
    %v2266 = vpack.c.b16 %v2114, %v2110
    %v2267 = vpack.c.b16 %v2119, %v2115
    %v2268 = vpack.c.b16 %v2120, %v2116
    %v2269 = vpack.c.b16 %v2121, %v2117
    %v2270 = vpack.c.b16 %v2122, %v2118
    %v2271 = vpack.c.b16 %v2127, %v2123
    %v2272 = vpack.c.b16 %v2128, %v2124
    %v2273 = vpack.c.b16 %v2129, %v2125
    %v2274 = vpack.c.b16 %v2130, %v2126
    %v2275 = vpack.c.b16 %v2135, %v2131
    %v2276 = vpack.c.b16 %v2136, %v2132
    %v2277 = vpack.c.b16 %v2137, %v2133
    %v2278 = vpack.c.b16 %v2138, %v2134
    %v2279 = vpack.c.b16 %v2143, %v2139
    %v2280 = vpack.c.b16 %v2144, %v2140
    %v2281 = vpack.c.b16 %v2145, %v2141
    %v2282 = vpack.c.b16 %v2146, %v2142
    %v2283 = vpack.c.b16 %v2151, %v2147
    %v2284 = vpack.c.b16 %v2152, %v2148
    %v2285 = vpack.c.b16 %v2153, %v2149
    %v2286 = vpack.c.b16 %v2154, %v2150
    %v2287 = vpack.c.b16 %v2159, %v2155
    %v2288 = vpack.c.b16 %v2160, %v2156
    %v2289 = vpack.c.b16 %v2161, %v2157
    %v2290 = vpack.c.b16 %v2162, %v2158
    %2419 = vmatpush.bf16.msra.mxu0 %v2191
    %2420 = vmatpush.bf16.msra.mxu0 %v2187
    %2421 = vmatpush.bf16.msra.mxu0 %v2183
    %2422 = vmatpush.bf16.msra.mxu0 %v2179
    %2423 = vmatpush.bf16.msra.mxu0 %v2175
    %2424 = vmatpush.bf16.msra.mxu0 %v2171
    %2425 = vmatpush.bf16.msra.mxu0 %v2167
    %2426 = vmatpush.bf16.msra.mxu0 %v2163
    %2427 = vmatmul.bf16.gmra.mxu0 %v1588
    %v2428 = vpop.f32.mrf.mxu0
    %v2429 = vadd.f32 %v1771, %v2428
    %v2430 = vpop.f32.mrf.mxu0
    %v2431 = vadd.f32 %v1771, %v2430
    %2432 = vmatmul.bf16.gmra.mxu0 %v1590
    %v2433 = vpop.f32.mrf.mxu0
    %v2434 = vadd.f32 %v1771, %v2433
    %v2435 = vpop.f32.mrf.mxu0
    %v2436 = vadd.f32 %v1771, %v2435
    %2437 = vmatmul.bf16.gmra.mxu0 %v1592
    %v2438 = vpop.f32.mrf.mxu0
    %v2439 = vadd.f32 %v1771, %v2438
    %v2440 = vpop.f32.mrf.mxu0
    %v2441 = vadd.f32 %v1771, %v2440
    %2442 = vmatmul.bf16.gmra.mxu0 %v1594
    %v2443 = vpop.f32.mrf.mxu0
    %v2444 = vadd.f32 %v1771, %v2443
    %v2445 = vpop.f32.mrf.mxu0
    %2446 = vdwg.mxu0
    %2447 = vmatpush.bf16.msra.mxu0 %v2223
    %2448 = vmatpush.bf16.msra.mxu0 %v2219
    %2449 = vmatpush.bf16.msra.mxu0 %v2215
    %2450 = vmatpush.bf16.msra.mxu0 %v2211
    %2451 = vmatpush.bf16.msra.mxu0 %v2207
    %2452 = vmatpush.bf16.msra.mxu0 %v2203
    %2453 = vmatpush.bf16.msra.mxu0 %v2199
    %2454 = vmatpush.bf16.msra.mxu0 %v2195
    %2455 = vmatmul.bf16.gmra.mxu0 %v1589
    %v2456 = vpop.f32.mrf.mxu0
    %v2457 = vadd.f32 %v2429, %v2456
    %v2458 = vpop.f32.mrf.mxu0
    %v2459 = vadd.f32 %v2431, %v2458
    %2460 = vmatmul.bf16.gmra.mxu0 %v1591
    %v2461 = vpop.f32.mrf.mxu0
    %v2462 = vadd.f32 %v2434, %v2461
    %v2463 = vpop.f32.mrf.mxu0
    %v2464 = vadd.f32 %v2436, %v2463
    %2465 = vmatmul.bf16.gmra.mxu0 %v1593
    %v2466 = vpop.f32.mrf.mxu0
    %v2467 = vadd.f32 %v2439, %v2466
    %v2468 = vpop.f32.mrf.mxu0
    %v2469 = vadd.f32 %v2441, %v2468
    %2470 = vmatmul.bf16.gmra.mxu0 %v1595
    %v2471 = vpop.f32.mrf.mxu0
    %v2472 = vadd.f32 %v2444, %v2471
    %v2473 = vpop.f32.mrf.mxu0
    %2474 = vdwg.mxu0
    %2475 = vmatpush.bf16.msra.mxu0 %v2255
    %2476 = vmatpush.bf16.msra.mxu0 %v2251
    %2477 = vmatpush.bf16.msra.mxu0 %v2247
    %2478 = vmatpush.bf16.msra.mxu0 %v2243
    %2479 = vmatpush.bf16.msra.mxu0 %v2239
    %2480 = vmatpush.bf16.msra.mxu0 %v2235
    %2481 = vmatpush.bf16.msra.mxu0 %v2231
    %2482 = vmatpush.bf16.msra.mxu0 %v2227
    %2483 = vmatmul.bf16.gmra.mxu0 %v1625
    %v2484 = vpop.f32.mrf.mxu0
    %v2485 = vadd.f32 %v2457, %v2484
    %v2486 = vpop.f32.mrf.mxu0
    %v2487 = vadd.f32 %v2459, %v2486
    %2488 = vmatmul.bf16.gmra.mxu0 %v1627
    %v2489 = vpop.f32.mrf.mxu0
    %v2490 = vadd.f32 %v2462, %v2489
    %v2491 = vpop.f32.mrf.mxu0
    %v2492 = vadd.f32 %v2464, %v2491
    %2493 = vmatmul.bf16.gmra.mxu0 %v1629
    %v2494 = vpop.f32.mrf.mxu0
    %v2495 = vadd.f32 %v2467, %v2494
    %v2496 = vpop.f32.mrf.mxu0
    %v2497 = vadd.f32 %v2469, %v2496
    %2498 = vmatmul.bf16.gmra.mxu0 %v1631
    %v2499 = vpop.f32.mrf.mxu0
    %v2500 = vadd.f32 %v2472, %v2499
    %v2501 = vpop.f32.mrf.mxu0
    %2502 = vdwg.mxu0
    %2503 = vmatpush.bf16.msra.mxu0 %v2287
    %2504 = vmatpush.bf16.msra.mxu0 %v2283
    %2505 = vmatpush.bf16.msra.mxu0 %v2279
    %2506 = vmatpush.bf16.msra.mxu0 %v2275
    %2507 = vmatpush.bf16.msra.mxu0 %v2271
    %2508 = vmatpush.bf16.msra.mxu0 %v2267
    %2509 = vmatpush.bf16.msra.mxu0 %v2263
    %2510 = vmatpush.bf16.msra.mxu0 %v2259
    %2511 = vmatmul.bf16.gmra.mxu0 %v1626
    %v2512 = vpop.f32.mrf.mxu0
    %v2513 = vadd.f32 %v2485, %v2512
    %v2514 = vpop.f32.mrf.mxu0
    %v2515 = vadd.f32 %v2487, %v2514
    %2516 = vmatmul.bf16.gmra.mxu0 %v1628
    %v2517 = vpop.f32.mrf.mxu0
    %v2518 = vadd.f32 %v2490, %v2517
    %v2519 = vpop.f32.mrf.mxu0
    %v2520 = vadd.f32 %v2492, %v2519
    %2521 = vmatmul.bf16.gmra.mxu0 %v1630
    %v2522 = vpop.f32.mrf.mxu0
    %v2523 = vadd.f32 %v2495, %v2522
    %v2524 = vpop.f32.mrf.mxu0
    %v2525 = vadd.f32 %v2497, %v2524
    %2526 = vmatmul.bf16.gmra.mxu0 %v1632
    %v2527 = vpop.f32.mrf.mxu0
    %v2528 = vadd.f32 %v2500, %v2527
    %v2529 = vpop.f32.mrf.mxu0
    %2530 = vdwg.mxu0
    %2531 = vmatpush.bf16.msra.mxu0 %v2192
    %2532 = vmatpush.bf16.msra.mxu0 %v2188
    %2533 = vmatpush.bf16.msra.mxu0 %v2184
    %2534 = vmatpush.bf16.msra.mxu0 %v2180
    %2535 = vmatpush.bf16.msra.mxu0 %v2176
    %2536 = vmatpush.bf16.msra.mxu0 %v2172
    %2537 = vmatpush.bf16.msra.mxu0 %v2168
    %2538 = vmatpush.bf16.msra.mxu0 %v2164
    %2539 = vmatmul.bf16.gmra.mxu0 %v1588
    %v2540 = vpop.f32.mrf.mxu0
    %v2541 = vadd.f32 %v1772, %v2540
    %v2542 = vpop.f32.mrf.mxu0
    %v2543 = vadd.f32 %v1772, %v2542
    %2544 = vmatmul.bf16.gmra.mxu0 %v1590
    %v2545 = vpop.f32.mrf.mxu0
    %v2546 = vadd.f32 %v1772, %v2545
    %v2547 = vpop.f32.mrf.mxu0
    %v2548 = vadd.f32 %v1772, %v2547
    %2549 = vmatmul.bf16.gmra.mxu0 %v1592
    %v2550 = vpop.f32.mrf.mxu0
    %v2551 = vadd.f32 %v1772, %v2550
    %v2552 = vpop.f32.mrf.mxu0
    %v2553 = vadd.f32 %v1772, %v2552
    %2554 = vmatmul.bf16.gmra.mxu0 %v1594
    %v2555 = vpop.f32.mrf.mxu0
    %v2556 = vadd.f32 %v1772, %v2555
    %v2557 = vpop.f32.mrf.mxu0
    %2558 = vdwg.mxu0
    %2559 = vmatpush.bf16.msra.mxu0 %v2224
    %2560 = vmatpush.bf16.msra.mxu0 %v2220
    %2561 = vmatpush.bf16.msra.mxu0 %v2216
    %2562 = vmatpush.bf16.msra.mxu0 %v2212
    %2563 = vmatpush.bf16.msra.mxu0 %v2208
    %2564 = vmatpush.bf16.msra.mxu0 %v2204
    %2565 = vmatpush.bf16.msra.mxu0 %v2200
    %2566 = vmatpush.bf16.msra.mxu0 %v2196
    %2567 = vmatmul.bf16.gmra.mxu0 %v1589
    %v2568 = vpop.f32.mrf.mxu0
    %v2569 = vadd.f32 %v2541, %v2568
    %v2570 = vpop.f32.mrf.mxu0
    %v2571 = vadd.f32 %v2543, %v2570
    %2572 = vmatmul.bf16.gmra.mxu0 %v1591
    %v2573 = vpop.f32.mrf.mxu0
    %v2574 = vadd.f32 %v2546, %v2573
    %v2575 = vpop.f32.mrf.mxu0
    %v2576 = vadd.f32 %v2548, %v2575
    %2577 = vmatmul.bf16.gmra.mxu0 %v1593
    %v2578 = vpop.f32.mrf.mxu0
    %v2579 = vadd.f32 %v2551, %v2578
    %v2580 = vpop.f32.mrf.mxu0
    %v2581 = vadd.f32 %v2553, %v2580
    %2582 = vmatmul.bf16.gmra.mxu0 %v1595
    %v2583 = vpop.f32.mrf.mxu0
    %v2584 = vadd.f32 %v2556, %v2583
    %v2585 = vpop.f32.mrf.mxu0
    %2586 = vdwg.mxu0
    %2587 = vmatpush.bf16.msra.mxu0 %v2256
    %2588 = vmatpush.bf16.msra.mxu0 %v2252
    %2589 = vmatpush.bf16.msra.mxu0 %v2248
    %2590 = vmatpush.bf16.msra.mxu0 %v2244
    %2591 = vmatpush.bf16.msra.mxu0 %v2240
    %2592 = vmatpush.bf16.msra.mxu0 %v2236
    %2593 = vmatpush.bf16.msra.mxu0 %v2232
    %2594 = vmatpush.bf16.msra.mxu0 %v2228
    %2595 = vmatmul.bf16.gmra.mxu0 %v1625
    %v2596 = vpop.f32.mrf.mxu0
    %v2597 = vadd.f32 %v2569, %v2596
    %v2598 = vpop.f32.mrf.mxu0
    %v2599 = vadd.f32 %v2571, %v2598
    %2600 = vmatmul.bf16.gmra.mxu0 %v1627
    %v2601 = vpop.f32.mrf.mxu0
    %v2602 = vadd.f32 %v2574, %v2601
    %v2603 = vpop.f32.mrf.mxu0
    %v2604 = vadd.f32 %v2576, %v2603
    %2605 = vmatmul.bf16.gmra.mxu0 %v1629
    %v2606 = vpop.f32.mrf.mxu0
    %v2607 = vadd.f32 %v2579, %v2606
    %v2608 = vpop.f32.mrf.mxu0
    %v2609 = vadd.f32 %v2581, %v2608
    %2610 = vmatmul.bf16.gmra.mxu0 %v1631
    %v2611 = vpop.f32.mrf.mxu0
    %v2612 = vadd.f32 %v2584, %v2611
    %v2613 = vpop.f32.mrf.mxu0
    %2614 = vdwg.mxu0
    %2615 = vmatpush.bf16.msra.mxu0 %v2288
    %2616 = vmatpush.bf16.msra.mxu0 %v2284
    %2617 = vmatpush.bf16.msra.mxu0 %v2280
    %2618 = vmatpush.bf16.msra.mxu0 %v2276
    %2619 = vmatpush.bf16.msra.mxu0 %v2272
    %2620 = vmatpush.bf16.msra.mxu0 %v2268
    %2621 = vmatpush.bf16.msra.mxu0 %v2264
    %2622 = vmatpush.bf16.msra.mxu0 %v2260
    %2623 = vmatmul.bf16.gmra.mxu0 %v1626
    %v2624 = vpop.f32.mrf.mxu0
    %v2625 = vadd.f32 %v2597, %v2624
    %v2626 = vpop.f32.mrf.mxu0
    %v2627 = vadd.f32 %v2599, %v2626
    %2628 = vmatmul.bf16.gmra.mxu0 %v1628
    %v2629 = vpop.f32.mrf.mxu0
    %v2630 = vadd.f32 %v2602, %v2629
    %v2631 = vpop.f32.mrf.mxu0
    %v2632 = vadd.f32 %v2604, %v2631
    %2633 = vmatmul.bf16.gmra.mxu0 %v1630
    %v2634 = vpop.f32.mrf.mxu0
    %v2635 = vadd.f32 %v2607, %v2634
    %v2636 = vpop.f32.mrf.mxu0
    %v2637 = vadd.f32 %v2609, %v2636
    %2638 = vmatmul.bf16.gmra.mxu0 %v1632
    %v2639 = vpop.f32.mrf.mxu0
    %v2640 = vadd.f32 %v2612, %v2639
    %v2641 = vpop.f32.mrf.mxu0
    %2642 = vdwg.mxu0
    %2643 = vmatpush.bf16.msra.mxu0 %v2193
    %2644 = vmatpush.bf16.msra.mxu0 %v2189
    %2645 = vmatpush.bf16.msra.mxu0 %v2185
    %2646 = vmatpush.bf16.msra.mxu0 %v2181
    %2647 = vmatpush.bf16.msra.mxu0 %v2177
    %2648 = vmatpush.bf16.msra.mxu0 %v2173
    %2649 = vmatpush.bf16.msra.mxu0 %v2169
    %2650 = vmatpush.bf16.msra.mxu0 %v2165
    %2651 = vmatmul.bf16.gmra.mxu0 %v1588
    %v2652 = vpop.f32.mrf.mxu0
    %v2653 = vadd.f32 %v1773, %v2652
    %v2654 = vpop.f32.mrf.mxu0
    %v2655 = vadd.f32 %v1773, %v2654
    %2656 = vmatmul.bf16.gmra.mxu0 %v1590
    %v2657 = vpop.f32.mrf.mxu0
    %v2658 = vadd.f32 %v1773, %v2657
    %v2659 = vpop.f32.mrf.mxu0
    %v2660 = vadd.f32 %v1773, %v2659
    %2661 = vmatmul.bf16.gmra.mxu0 %v1592
    %v2662 = vpop.f32.mrf.mxu0
    %v2663 = vadd.f32 %v1773, %v2662
    %v2664 = vpop.f32.mrf.mxu0
    %v2665 = vadd.f32 %v1773, %v2664
    %2666 = vmatmul.bf16.gmra.mxu0 %v1594
    %v2667 = vpop.f32.mrf.mxu0
    %v2668 = vadd.f32 %v1773, %v2667
    %v2669 = vpop.f32.mrf.mxu0
    %2670 = vdwg.mxu0
    %2671 = vmatpush.bf16.msra.mxu0 %v2225
    %2672 = vmatpush.bf16.msra.mxu0 %v2221
    %2673 = vmatpush.bf16.msra.mxu0 %v2217
    %2674 = vmatpush.bf16.msra.mxu0 %v2213
    %2675 = vmatpush.bf16.msra.mxu0 %v2209
    %2676 = vmatpush.bf16.msra.mxu0 %v2205
    %2677 = vmatpush.bf16.msra.mxu0 %v2201
    %2678 = vmatpush.bf16.msra.mxu0 %v2197
    %2679 = vmatmul.bf16.gmra.mxu0 %v1589
    %v2680 = vpop.f32.mrf.mxu0
    %v2681 = vadd.f32 %v2653, %v2680
    %v2682 = vpop.f32.mrf.mxu0
    %v2683 = vadd.f32 %v2655, %v2682
    %2684 = vmatmul.bf16.gmra.mxu0 %v1591
    %v2685 = vpop.f32.mrf.mxu0
    %v2686 = vadd.f32 %v2658, %v2685
    %v2687 = vpop.f32.mrf.mxu0
    %v2688 = vadd.f32 %v2660, %v2687
    %2689 = vmatmul.bf16.gmra.mxu0 %v1593
    %v2690 = vpop.f32.mrf.mxu0
    %v2691 = vadd.f32 %v2663, %v2690
    %v2692 = vpop.f32.mrf.mxu0
    %v2693 = vadd.f32 %v2665, %v2692
    %2694 = vmatmul.bf16.gmra.mxu0 %v1595
    %v2695 = vpop.f32.mrf.mxu0
    %v2696 = vadd.f32 %v2668, %v2695
    %v2697 = vpop.f32.mrf.mxu0
    %2698 = vdwg.mxu0
    %2699 = vmatpush.bf16.msra.mxu0 %v2257
    %2700 = vmatpush.bf16.msra.mxu0 %v2253
    %2701 = vmatpush.bf16.msra.mxu0 %v2249
    %2702 = vmatpush.bf16.msra.mxu0 %v2245
    %2703 = vmatpush.bf16.msra.mxu0 %v2241
    %2704 = vmatpush.bf16.msra.mxu0 %v2237
    %2705 = vmatpush.bf16.msra.mxu0 %v2233
    %2706 = vmatpush.bf16.msra.mxu0 %v2229
    %2707 = vmatmul.bf16.gmra.mxu0 %v1625
    %v2708 = vpop.f32.mrf.mxu0
    %v2709 = vadd.f32 %v2681, %v2708
    %v2710 = vpop.f32.mrf.mxu0
    %v2711 = vadd.f32 %v2683, %v2710
    %2712 = vmatmul.bf16.gmra.mxu0 %v1627
    %v2713 = vpop.f32.mrf.mxu0
    %v2714 = vadd.f32 %v2686, %v2713
    %v2715 = vpop.f32.mrf.mxu0
    %v2716 = vadd.f32 %v2688, %v2715
    %2717 = vmatmul.bf16.gmra.mxu0 %v1629
    %v2718 = vpop.f32.mrf.mxu0
    %v2719 = vadd.f32 %v2691, %v2718
    %v2720 = vpop.f32.mrf.mxu0
    %v2721 = vadd.f32 %v2693, %v2720
    %2722 = vmatmul.bf16.gmra.mxu0 %v1631
    %v2723 = vpop.f32.mrf.mxu0
    %v2724 = vadd.f32 %v2696, %v2723
    %v2725 = vpop.f32.mrf.mxu0
    %2726 = vdwg.mxu0
    %2727 = vmatpush.bf16.msra.mxu0 %v2289
    %2728 = vmatpush.bf16.msra.mxu0 %v2285
    %2729 = vmatpush.bf16.msra.mxu0 %v2281
    %2730 = vmatpush.bf16.msra.mxu0 %v2277
    %2731 = vmatpush.bf16.msra.mxu0 %v2273
    %2732 = vmatpush.bf16.msra.mxu0 %v2269
    %2733 = vmatpush.bf16.msra.mxu0 %v2265
    %2734 = vmatpush.bf16.msra.mxu0 %v2261
    %2735 = vmatmul.bf16.gmra.mxu0 %v1626
    %v2736 = vpop.f32.mrf.mxu0
    %v2737 = vadd.f32 %v2709, %v2736
    %v2738 = vpop.f32.mrf.mxu0
    %v2739 = vadd.f32 %v2711, %v2738
    %2740 = vmatmul.bf16.gmra.mxu0 %v1628
    %v2741 = vpop.f32.mrf.mxu0
    %v2742 = vadd.f32 %v2714, %v2741
    %v2743 = vpop.f32.mrf.mxu0
    %v2744 = vadd.f32 %v2716, %v2743
    %2745 = vmatmul.bf16.gmra.mxu0 %v1630
    %v2746 = vpop.f32.mrf.mxu0
    %v2747 = vadd.f32 %v2719, %v2746
    %v2748 = vpop.f32.mrf.mxu0
    %v2749 = vadd.f32 %v2721, %v2748
    %2750 = vmatmul.bf16.gmra.mxu0 %v1632
    %v2751 = vpop.f32.mrf.mxu0
    %v2752 = vadd.f32 %v2724, %v2751
    %v2753 = vpop.f32.mrf.mxu0
    %2754 = vdwg.mxu0
    %2755 = vmatpush.bf16.msra.mxu0 %v2194
    %2756 = vmatpush.bf16.msra.mxu0 %v2190
    %2757 = vmatpush.bf16.msra.mxu0 %v2186
    %2758 = vmatpush.bf16.msra.mxu0 %v2182
    %2759 = vmatpush.bf16.msra.mxu0 %v2178
    %2760 = vmatpush.bf16.msra.mxu0 %v2174
    %2761 = vmatpush.bf16.msra.mxu0 %v2170
    %2762 = vmatpush.bf16.msra.mxu0 %v2166
    %2763 = vmatmul.bf16.gmra.mxu0 %v1588
    %v2764 = vpop.f32.mrf.mxu0
    %v2765 = vadd.f32 %v1774, %v2764
    %v2766 = vpop.f32.mrf.mxu0
    %v2767 = vadd.f32 %v1774, %v2766
    %2768 = vmatmul.bf16.gmra.mxu0 %v1590
    %v2769 = vpop.f32.mrf.mxu0
    %v2770 = vadd.f32 %v1774, %v2769
    %v2771 = vpop.f32.mrf.mxu0
    %v2772 = vadd.f32 %v1774, %v2771
    %2773 = vmatmul.bf16.gmra.mxu0 %v1592
    %v2774 = vpop.f32.mrf.mxu0
    %v2775 = vadd.f32 %v1774, %v2774
    %v2776 = vpop.f32.mrf.mxu0
    %v2777 = vadd.f32 %v1774, %v2776
    %2778 = vmatmul.bf16.gmra.mxu0 %v1594
    %v2779 = vpop.f32.mrf.mxu0
    %v2780 = vadd.f32 %v1774, %v2779
    %v2781 = vpop.f32.mrf.mxu0
    %2782 = vdwg.mxu0
    %2783 = vmatpush.bf16.msra.mxu0 %v2226
    %2784 = vmatpush.bf16.msra.mxu0 %v2222
    %2785 = vmatpush.bf16.msra.mxu0 %v2218
    %2786 = vmatpush.bf16.msra.mxu0 %v2214
    %2787 = vmatpush.bf16.msra.mxu0 %v2210
    %2788 = vmatpush.bf16.msra.mxu0 %v2206
    %2789 = vmatpush.bf16.msra.mxu0 %v2202
    %2790 = vmatpush.bf16.msra.mxu0 %v2198
    %2791 = vmatmul.bf16.gmra.mxu0 %v1589
    %v2792 = vpop.f32.mrf.mxu0
    %v2793 = vadd.f32 %v2765, %v2792
    %v2794 = vpop.f32.mrf.mxu0
    %v2795 = vadd.f32 %v2767, %v2794
    %2796 = vmatmul.bf16.gmra.mxu0 %v1591
    %v2797 = vpop.f32.mrf.mxu0
    %v2798 = vadd.f32 %v2770, %v2797
    %v2799 = vpop.f32.mrf.mxu0
    %v2800 = vadd.f32 %v2772, %v2799
    %2801 = vmatmul.bf16.gmra.mxu0 %v1593
    %v2802 = vpop.f32.mrf.mxu0
    %v2803 = vadd.f32 %v2775, %v2802
    %v2804 = vpop.f32.mrf.mxu0
    %v2805 = vadd.f32 %v2777, %v2804
    %2806 = vmatmul.bf16.gmra.mxu0 %v1595
    %v2807 = vpop.f32.mrf.mxu0
    %v2808 = vadd.f32 %v2780, %v2807
    %v2809 = vpop.f32.mrf.mxu0
    %2810 = vdwg.mxu0
    %2811 = vmatpush.bf16.msra.mxu0 %v2258
    %2812 = vmatpush.bf16.msra.mxu0 %v2254
    %2813 = vmatpush.bf16.msra.mxu0 %v2250
    %2814 = vmatpush.bf16.msra.mxu0 %v2246
    %2815 = vmatpush.bf16.msra.mxu0 %v2242
    %2816 = vmatpush.bf16.msra.mxu0 %v2238
    %2817 = vmatpush.bf16.msra.mxu0 %v2234
    %2818 = vmatpush.bf16.msra.mxu0 %v2230
    %2819 = vmatmul.bf16.gmra.mxu0 %v1625
    %v2820 = vpop.f32.mrf.mxu0
    %v2821 = vadd.f32 %v2793, %v2820
    %v2822 = vpop.f32.mrf.mxu0
    %v2823 = vadd.f32 %v2795, %v2822
    %2824 = vmatmul.bf16.gmra.mxu0 %v1627
    %v2825 = vpop.f32.mrf.mxu0
    %v2826 = vadd.f32 %v2798, %v2825
    %v2827 = vpop.f32.mrf.mxu0
    %v2828 = vadd.f32 %v2800, %v2827
    %2829 = vmatmul.bf16.gmra.mxu0 %v1629
    %v2830 = vpop.f32.mrf.mxu0
    %v2831 = vadd.f32 %v2803, %v2830
    %v2832 = vpop.f32.mrf.mxu0
    %v2833 = vadd.f32 %v2805, %v2832
    %2834 = vmatmul.bf16.gmra.mxu0 %v1631
    %v2835 = vpop.f32.mrf.mxu0
    %v2836 = vadd.f32 %v2808, %v2835
    %v2837 = vpop.f32.mrf.mxu0
    %2838 = vdwg.mxu0
    %2839 = vmatpush.bf16.msra.mxu0 %v2290
    %2840 = vmatpush.bf16.msra.mxu0 %v2286
    %2841 = vmatpush.bf16.msra.mxu0 %v2282
    %2842 = vmatpush.bf16.msra.mxu0 %v2278
    %2843 = vmatpush.bf16.msra.mxu0 %v2274
    %2844 = vmatpush.bf16.msra.mxu0 %v2270
    %2845 = vmatpush.bf16.msra.mxu0 %v2266
    %2846 = vmatpush.bf16.msra.mxu0 %v2262
    %2847 = vmatmul.bf16.gmra.mxu0 %v1626
    %v2848 = vpop.f32.mrf.mxu0
    %v2849 = vadd.f32 %v2821, %v2848
    %v2850 = vpop.f32.mrf.mxu0
    %v2851 = vadd.f32 %v2823, %v2850
    %2852 = vmatmul.bf16.gmra.mxu0 %v1628
    %v2853 = vpop.f32.mrf.mxu0
    %v2854 = vadd.f32 %v2826, %v2853
    %v2855 = vpop.f32.mrf.mxu0
    %v2856 = vadd.f32 %v2828, %v2855
    %2857 = vmatmul.bf16.gmra.mxu0 %v1630
    %v2858 = vpop.f32.mrf.mxu0
    %v2859 = vadd.f32 %v2831, %v2858
    %v2860 = vpop.f32.mrf.mxu0
    %v2861 = vadd.f32 %v2833, %v2860
    %2862 = vmatmul.bf16.gmra.mxu0 %v1632
    %v2863 = vpop.f32.mrf.mxu0
    %v2864 = vadd.f32 %v2836, %v2863
    %v2865 = vpop.f32.mrf.mxu0
    %2866 = vdwg.mxu0
    %v2867 = vmax.f32 %v2513, 0.0
    %v2868 = vmax.f32 %v2625, 0.0
    %v2869 = vmax.f32 %v2737, 0.0
    %v2870 = vmax.f32 %v2849, 0.0
    %v2871 = vmax.f32 %v2515, 0.0
    %v2872 = vmax.f32 %v2627, 0.0
    %v2873 = vmax.f32 %v2739, 0.0
    %v2874 = vmax.f32 %v2851, 0.0
    %v2875 = vmax.f32 %v2518, 0.0
    %v2876 = vmax.f32 %v2630, 0.0
    %v2877 = vmax.f32 %v2742, 0.0
    %v2878 = vmax.f32 %v2854, 0.0
    %v2879 = vmax.f32 %v2520, 0.0
    %v2880 = vmax.f32 %v2632, 0.0
    %v2881 = vmax.f32 %v2744, 0.0
    %v2882 = vmax.f32 %v2856, 0.0
    %v2883 = vmax.f32 %v2523, 0.0
    %v2884 = vmax.f32 %v2635, 0.0
    %v2885 = vmax.f32 %v2747, 0.0
    %v2886 = vmax.f32 %v2859, 0.0
    %v2887 = vmax.f32 %v2525, 0.0
    %v2888 = vmax.f32 %v2637, 0.0
    %v2889 = vmax.f32 %v2749, 0.0
    %v2890 = vmax.f32 %v2861, 0.0
    %v2891 = vmax.f32 %v2528, 0.0
    %v2892 = vmax.f32 %v2640, 0.0
    %v2893 = vmax.f32 %v2752, 0.0
    %v2894 = vmax.f32 %v2864, 0.0
    %2895 = vst [vmem:[#allocation4] sm:$0xff] %v2867
    %2896 = vst [vmem:[#allocation4 + $0x8] sm:$0xff] %v2868
    %2897 = vst [vmem:[#allocation4 + $0x10] sm:$0xff] %v2869
    %2898 = vst [vmem:[#allocation4 + $0x18] sm:$0xff] %v2870
    %2899 = vst [vmem:[#allocation4 + $0x20] sm:$0xff] %v2871
    %2900 = vst [vmem:[#allocation4 + $0x28] sm:$0xff] %v2872
    %2901 = vst [vmem:[#allocation4 + $0x30] sm:$0xff] %v2873
    %2902 = vst [vmem:[#allocation4 + $0x38] sm:$0xff] %v2874
    %2903 = vst [vmem:[#allocation4 + $0x40] sm:$0xff] %v2875
    %2904 = vst [vmem:[#allocation4 + $0x48] sm:$0xff] %v2876
    %2905 = vst [vmem:[#allocation4 + $0x50] sm:$0xff] %v2877
    %2906 = vst [vmem:[#allocation4 + $0x58] sm:$0xff] %v2878
    %2907 = vst [vmem:[#allocation4 + $0x60] sm:$0xff] %v2879
    %2908 = vst [vmem:[#allocation4 + $0x68] sm:$0xff] %v2880
    %2909 = vst [vmem:[#allocation4 + $0x70] sm:$0xff] %v2881
    %2910 = vst [vmem:[#allocation4 + $0x78] sm:$0xff] %v2882
    %2911 = vst [vmem:[#allocation4 + $0x80] sm:$0xff] %v2883
    %2912 = vst [vmem:[#allocation4 + $0x88] sm:$0xff] %v2884
    %2913 = vst [vmem:[#allocation4 + $0x90] sm:$0xff] %v2885
    %2914 = vst [vmem:[#allocation4 + $0x98] sm:$0xff] %v2886
    %2915 = vst [vmem:[#allocation4 + $0xa0] sm:$0xff] %v2887
    %2916 = vst [vmem:[#allocation4 + $0xa8] sm:$0xff] %v2888
    %2917 = vst [vmem:[#allocation4 + $0xb0] sm:$0xff] %v2889
    %2918 = vst [vmem:[#allocation4 + $0xb8] sm:$0xff] %v2890
    %2919 = vst [vmem:[#allocation4 + $0xc0] sm:$0xff] %v2891
    %2920 = vst [vmem:[#allocation4 + $0xc8] sm:$0xff] %v2892
    %2921 = vst [vmem:[#allocation4 + $0xd0] sm:$0xff] %v2893
    %2922 = vst [vmem:[#allocation4 + $0xd8] sm:$0xff] %v2894
    %2923 = vst [vmem:[#allocation4 + $0xe0] sm:$0xff] 0.0
    %2924 = vst [vmem:[#allocation4 + $0xe8] sm:$0xff] 0.0
    %v2925 = vld [vmem:[#allocation4] sm:$0xff]
    %v2926 = vld [vmem:[#allocation4 + $0x8] sm:$0xff]
    %v2927 = vld [vmem:[#allocation4 + $0x10] sm:$0xff]
    %v2928 = vld [vmem:[#allocation4 + $0x18] sm:$0xff]
    %v2929 = vld [vmem:[#allocation4 + $0x20] sm:$0xff]
    %v2930 = vld [vmem:[#allocation4 + $0x28] sm:$0xff]
    %v2931 = vld [vmem:[#allocation4 + $0x30] sm:$0xff]
    %v2932 = vld [vmem:[#allocation4 + $0x38] sm:$0xff]
    %v2933 = vld [vmem:[#allocation4 + $0x40] sm:$0xff]
    %v2934 = vld [vmem:[#allocation4 + $0x48] sm:$0xff]
    %v2935 = vld [vmem:[#allocation4 + $0x50] sm:$0xff]
    %v2936 = vld [vmem:[#allocation4 + $0x58] sm:$0xff]
    %v2937 = vld [vmem:[#allocation4 + $0x60] sm:$0xff]
    %v2938 = vld [vmem:[#allocation4 + $0x68] sm:$0xff]
    %v2939 = vld [vmem:[#allocation4 + $0x70] sm:$0xff]
    %v2940 = vld [vmem:[#allocation4 + $0x78] sm:$0xff]
    %v2941 = vld [vmem:[#allocation4 + $0x80] sm:$0xff]
    %v2942 = vld [vmem:[#allocation4 + $0x88] sm:$0xff]
    %v2943 = vld [vmem:[#allocation4 + $0x90] sm:$0xff]
    %v2944 = vld [vmem:[#allocation4 + $0x98] sm:$0xff]
    %v2945 = vld [vmem:[#allocation4 + $0xa0] sm:$0xff]
    %v2946 = vld [vmem:[#allocation4 + $0xa8] sm:$0xff]
    %v2947 = vld [vmem:[#allocation4 + $0xb0] sm:$0xff]
    %v2948 = vld [vmem:[#allocation4 + $0xb8] sm:$0xff]
    %v2949 = vld [vmem:[#allocation4 + $0xc0] sm:$0xff]
    %v2950 = vld [vmem:[#allocation4 + $0xc8] sm:$0xff]
    %v2951 = vld [vmem:[#allocation4 + $0xd0] sm:$0xff]
    %v2952 = vld [vmem:[#allocation4 + $0xd8] sm:$0xff]
    %v2953 = vld [vmem:[#allocation4 + $0x10] sm:$0xff]
    %v2954 = vld [vmem:[#allocation4 + $0x18] sm:$0xff]
    %v2955 = vld [vmem:[#allocation4 + $0x20] sm:$0xff]
    %v2956 = vld [vmem:[#allocation4 + $0x28] sm:$0xff]
    %v2957 = vld [vmem:[#allocation4 + $0x30] sm:$0xff]
    %v2958 = vld [vmem:[#allocation4 + $0x38] sm:$0xff]
    %v2959 = vld [vmem:[#allocation4 + $0x40] sm:$0xff]
    %v2960 = vld [vmem:[#allocation4 + $0x48] sm:$0xff]
    %v2961 = vld [vmem:[#allocation4 + $0x50] sm:$0xff]
    %v2962 = vld [vmem:[#allocation4 + $0x58] sm:$0xff]
    %v2963 = vld [vmem:[#allocation4 + $0x60] sm:$0xff]
    %v2964 = vld [vmem:[#allocation4 + $0x68] sm:$0xff]
    %v2965 = vld [vmem:[#allocation4 + $0x70] sm:$0xff]
    %v2966 = vld [vmem:[#allocation4 + $0x78] sm:$0xff]
    %v2967 = vld [vmem:[#allocation4 + $0x80] sm:$0xff]
    %v2968 = vld [vmem:[#allocation4 + $0x88] sm:$0xff]
    %v2969 = vld [vmem:[#allocation4 + $0x90] sm:$0xff]
    %v2970 = vld [vmem:[#allocation4 + $0x98] sm:$0xff]
    %v2971 = vld [vmem:[#allocation4 + $0xa0] sm:$0xff]
    %v2972 = vld [vmem:[#allocation4 + $0xa8] sm:$0xff]
    %v2973 = vld [vmem:[#allocation4 + $0xb0] sm:$0xff]
    %v2974 = vld [vmem:[#allocation4 + $0xb8] sm:$0xff]
    %v2975 = vld [vmem:[#allocation4 + $0xc0] sm:$0xff]
    %v2976 = vld [vmem:[#allocation4 + $0xc8] sm:$0xff]
    %v2977 = vld [vmem:[#allocation4 + $0xd0] sm:$0xff]
    %v2978 = vld [vmem:[#allocation4 + $0xd8] sm:$0xff]
    %v2979 = vld [vmem:[#allocation4 + $0xe0] sm:$0xff]
    %v2980 = vld [vmem:[#allocation4 + $0xe8] sm:$0xff]
    %v2981 = vpack.c.bf16 %v2926, %v2925
    %v2982 = vpack.c.bf16 %v2928, %v2927
    %v2983 = vpack.c.bf16 %v2930, %v2929
    %v2984 = vpack.c.bf16 %v2932, %v2931
    %v2985 = vpack.c.bf16 %v2934, %v2933
    %v2986 = vpack.c.bf16 %v2936, %v2935
    %v2987 = vpack.c.bf16 %v2938, %v2937
    %v2988 = vpack.c.bf16 %v2940, %v2939
    %v2989 = vpack.c.bf16 %v2942, %v2941
    %v2990 = vpack.c.bf16 %v2944, %v2943
    %v2991 = vpack.c.bf16 %v2946, %v2945
    %v2992 = vpack.c.bf16 %v2948, %v2947
    %v2993 = vpack.c.bf16 %v2950, %v2949
    %v2994 = vpack.c.bf16 %v2952, %v2951
    %v2995 = vpack.c.bf16 %v2954, %v2953
    %v2996 = vpack.c.bf16 %v2956, %v2955
    %v2997 = vpack.c.bf16 %v2958, %v2957
    %v2998 = vpack.c.bf16 %v2960, %v2959
    %v2999 = vpack.c.bf16 %v2962, %v2961
    %v3000 = vpack.c.bf16 %v2964, %v2963
    %v3001 = vpack.c.bf16 %v2966, %v2965
    %v3002 = vpack.c.bf16 %v2968, %v2967
    %v3003 = vpack.c.bf16 %v2970, %v2969
    %v3004 = vpack.c.bf16 %v2972, %v2971
    %v3005 = vpack.c.bf16 %v2974, %v2973
    %v3006 = vpack.c.bf16 %v2976, %v2975
    %v3007 = vpack.c.bf16 %v2978, %v2977
    %v3008 = vpack.c.bf16 %v2980, %v2979
    %v3023 = vunpack.c.l.b16 %v2981
    %v3024 = vunpack.c.h.b16 %v2981
    %v3025 = vunpack.c.l.b16 %v2982
    %v3026 = vunpack.c.h.b16 %v2982
    %v3027 = vunpack.c.l.b16 %v2983
    %v3028 = vunpack.c.h.b16 %v2983
    %v3029 = vunpack.c.l.b16 %v2984
    %v3030 = vunpack.c.h.b16 %v2984
    %v3031 = vunpack.c.l.b16 %v2985
    %v3032 = vunpack.c.h.b16 %v2985
    %v3033 = vunpack.c.l.b16 %v2986
    %v3034 = vunpack.c.h.b16 %v2986
    %v3035 = vunpack.c.l.b16 %v2987
    %v3036 = vunpack.c.h.b16 %v2987
    %v3037 = vunpack.c.l.b16 %v2988
    %v3038 = vunpack.c.h.b16 %v2988
    %v3039 = vunpack.c.l.b16 %v2989
    %v3040 = vunpack.c.h.b16 %v2989
    %v3041 = vunpack.c.l.b16 %v2990
    %v3042 = vunpack.c.h.b16 %v2990
    %v3043 = vunpack.c.l.b16 %v2991
    %v3044 = vunpack.c.h.b16 %v2991
    %v3045 = vunpack.c.l.b16 %v2992
    %v3046 = vunpack.c.h.b16 %v2992
    %v3047 = vunpack.c.l.b16 %v2993
    %v3048 = vunpack.c.h.b16 %v2993
    %v3049 = vunpack.c.l.b16 %v2994
    %v3050 = vunpack.c.h.b16 %v2994
    %v3051 = vpack.c.b16 %v3025, %v3023
    %v3052 = vpack.c.b16 %v3026, %v3024
    %v3053 = vpack.c.b16 %v3029, %v3027
    %v3054 = vpack.c.b16 %v3030, %v3028
    %v3055 = vpack.c.b16 %v3033, %v3031
    %v3056 = vpack.c.b16 %v3034, %v3032
    %v3057 = vpack.c.b16 %v3037, %v3035
    %v3058 = vpack.c.b16 %v3038, %v3036
    %v3059 = vpack.c.b16 %v3041, %v3039
    %v3060 = vpack.c.b16 %v3042, %v3040
    %v3061 = vpack.c.b16 %v3045, %v3043
    %v3062 = vpack.c.b16 %v3046, %v3044
    %v3063 = vpack.c.b16 %v3049, %v3047
    %v3064 = vpack.c.b16 %v3050, %v3048
    %v3093 = vunpack.c.l.b16 %v2995
    %v3094 = vunpack.c.h.b16 %v2995
    %v3095 = vunpack.c.l.b16 %v2996
    %v3096 = vunpack.c.h.b16 %v2996
    %v3097 = vunpack.c.l.b16 %v2997
    %v3098 = vunpack.c.h.b16 %v2997
    %v3099 = vunpack.c.l.b16 %v2998
    %v3100 = vunpack.c.h.b16 %v2998
    %v3101 = vunpack.c.l.b16 %v2999
    %v3102 = vunpack.c.h.b16 %v2999
    %v3103 = vunpack.c.l.b16 %v3000
    %v3104 = vunpack.c.h.b16 %v3000
    %v3105 = vunpack.c.l.b16 %v3001
    %v3106 = vunpack.c.h.b16 %v3001
    %v3107 = vunpack.c.l.b16 %v3002
    %v3108 = vunpack.c.h.b16 %v3002
    %v3109 = vunpack.c.l.b16 %v3003
    %v3110 = vunpack.c.h.b16 %v3003
    %v3111 = vunpack.c.l.b16 %v3004
    %v3112 = vunpack.c.h.b16 %v3004
    %v3113 = vunpack.c.l.b16 %v3005
    %v3114 = vunpack.c.h.b16 %v3005
    %v3115 = vunpack.c.l.b16 %v3006
    %v3116 = vunpack.c.h.b16 %v3006
    %v3117 = vunpack.c.l.b16 %v3007
    %v3118 = vunpack.c.h.b16 %v3007
    %v3119 = vunpack.c.l.b16 %v3008
    %v3120 = vunpack.c.h.b16 %v3008
    %v3121 = vpack.c.b16 %v3095, %v3093
    %v3122 = vpack.c.b16 %v3096, %v3094
    %v3123 = vpack.c.b16 %v3099, %v3097
    %v3124 = vpack.c.b16 %v3100, %v3098
    %v3125 = vpack.c.b16 %v3103, %v3101
    %v3126 = vpack.c.b16 %v3104, %v3102
    %v3127 = vpack.c.b16 %v3107, %v3105
    %v3128 = vpack.c.b16 %v3108, %v3106
    %v3129 = vpack.c.b16 %v3111, %v3109
    %v3130 = vpack.c.b16 %v3112, %v3110
    %v3131 = vpack.c.b16 %v3115, %v3113
    %v3132 = vpack.c.b16 %v3116, %v3114
    %v3133 = vpack.c.b16 %v3119, %v3117
    %v3134 = vpack.c.b16 %v3120, %v3118
    %v3149 = vld [vmem:[#allocation12] sm:$0xff]
    %v3150 = vld [vmem:[#allocation12 + $0x8] sm:$0xff]
    %v3151 = vld [vmem:[#allocation12 + $0x10] sm:$0xff]
    %v3152 = vld [vmem:[#allocation12 + $0x18] sm:$0xff]
    %v3153 = vld [vmem:[#allocation12 + $0x20] sm:$0xff]
    %v3154 = vld [vmem:[#allocation12 + $0x28] sm:$0xff]
    %v3155 = vld [vmem:[#allocation12 + $0x30] sm:$0xff]
    %v3156 = vld [vmem:[#allocation12 + $0x38] sm:$0xff]
    %v3157 = vld [vmem:[#allocation12 + $0x40] sm:$0xff]
    %v3158 = vld [vmem:[#allocation12 + $0x48] sm:$0xff]
    %v3159 = vld [vmem:[#allocation12 + $0x50] sm:$0xff]
    %v3160 = vld [vmem:[#allocation12 + $0x58] sm:$0xff]
    %v3161 = vld [vmem:[#allocation12 + $0x60] sm:$0xff]
    %v3162 = vld [vmem:[#allocation12 + $0x68] sm:$0xff]
    %v3163 = vld [vmem:[#allocation12 + $0x70] sm:$0xff]
    %v3164 = vld [vmem:[#allocation12 + $0x78] sm:$0xff]
    %v3165 = vld [vmem:[#allocation12 + $0x80] sm:$0xff]
    %v3166 = vld [vmem:[#allocation12 + $0x88] sm:$0xff]
    %v3167 = vld [vmem:[#allocation12 + $0x90] sm:$0xff]
    %v3168 = vld [vmem:[#allocation12 + $0x98] sm:$0xff]
    %v3169 = vld [vmem:[#allocation12 + $0xa0] sm:$0xff]
    %v3170 = vld [vmem:[#allocation12 + $0xa8] sm:$0xff]
    %v3171 = vld [vmem:[#allocation12 + $0xb0] sm:$0xff]
    %v3172 = vld [vmem:[#allocation12 + $0xb8] sm:$0xff]
    %v3173 = vld [vmem:[#allocation12 + $0xc0] sm:$0xff]
    %v3174 = vld [vmem:[#allocation12 + $0xc8] sm:$0xff]
    %v3175 = vld [vmem:[#allocation12 + $0xd0] sm:$0xff]
    %v3176 = vld [vmem:[#allocation12 + $0xd8] sm:$0xff]
    %v3177 = vld [vmem:[#allocation12 + $0xe0] sm:$0xff]
    %v3178 = vld [vmem:[#allocation12 + $0xe8] sm:$0xff]
    %v3179 = vld [vmem:[#allocation12 + $0xf0] sm:$0xff]
    %v3180 = vld [vmem:[#allocation12 + $0xf8] sm:$0xff]
    %v3181 = vld [vmem:[#allocation12 + $0x100] sm:$0xff]
    %v3182 = vld [vmem:[#allocation12 + $0x108] sm:$0xff]
    %v3183 = vld [vmem:[#allocation12 + $0x110] sm:$0xff]
    %v3184 = vld [vmem:[#allocation12 + $0x118] sm:$0xff]
    %v3185 = vld [vmem:[#allocation12 + $0x120] sm:$0xff]
    %v3186 = vld [vmem:[#allocation12 + $0x128] sm:$0xff]
    %v3187 = vld [vmem:[#allocation12 + $0x130] sm:$0xff]
    %v3188 = vld [vmem:[#allocation12 + $0x138] sm:$0xff]
    %v3189 = vld [vmem:[#allocation12 + $0x140] sm:$0xff]
    %v3190 = vld [vmem:[#allocation12 + $0x148] sm:$0xff]
    %v3191 = vld [vmem:[#allocation12 + $0x150] sm:$0xff]
    %v3192 = vld [vmem:[#allocation12 + $0x158] sm:$0xff]
    %v3193 = vld [vmem:[#allocation12 + $0x160] sm:$0xff]
    %v3194 = vld [vmem:[#allocation12 + $0x168] sm:$0xff]
    %v3195 = vld [vmem:[#allocation12 + $0x170] sm:$0xff]
    %v3196 = vld [vmem:[#allocation12 + $0x178] sm:$0xff]
    %v3197 = vld [vmem:[#allocation12 + $0x180] sm:$0xff]
    %v3198 = vld [vmem:[#allocation12 + $0x188] sm:$0xff]
    %v3199 = vld [vmem:[#allocation12 + $0x190] sm:$0xff]
    %v3200 = vld [vmem:[#allocation12 + $0x198] sm:$0xff]
    %v3201 = vld [vmem:[#allocation12 + $0x1a0] sm:$0xff]
    %v3202 = vld [vmem:[#allocation12 + $0x1a8] sm:$0xff]
    %v3203 = vld [vmem:[#allocation12 + $0x1b0] sm:$0xff]
    %v3204 = vld [vmem:[#allocation12 + $0x1b8] sm:$0xff]
    %v3205 = vld [vmem:[#allocation12 + $0x1c0] sm:$0xff]
    %v3206 = vld [vmem:[#allocation12 + $0x1c8] sm:$0xff]
    %v3207 = vld [vmem:[#allocation12 + $0x1d0] sm:$0xff]
    %v3208 = vld [vmem:[#allocation12 + $0x1d8] sm:$0xff]
    %v3209 = vld [vmem:[#allocation12 + $0x1e0] sm:$0xff]
    %v3210 = vld [vmem:[#allocation12 + $0x1e8] sm:$0xff]
    %v3211 = vld [vmem:[#allocation12 + $0x1f0] sm:$0xff]
    %v3212 = vld [vmem:[#allocation12 + $0x1f8] sm:$0xff]
    %v3213 = vld [vmem:[%s8] sm:$0x3]
    %v3215 = vperm.slane %v3213, 0
    %v3216 = vperm.slane %v3213, 1
    %v3283 = vunpack.c.l.b16 %v3149
    %v3284 = vunpack.c.h.b16 %v3149
    %v3285 = vunpack.c.l.b16 %v3150
    %v3286 = vunpack.c.h.b16 %v3150
    %v3287 = vunpack.c.l.b16 %v3151
    %v3288 = vunpack.c.h.b16 %v3151
    %v3289 = vunpack.c.l.b16 %v3152
    %v3290 = vunpack.c.h.b16 %v3152
    %v3291 = vunpack.c.l.b16 %v3153
    %v3292 = vunpack.c.h.b16 %v3153
    %v3293 = vunpack.c.l.b16 %v3154
    %v3294 = vunpack.c.h.b16 %v3154
    %v3295 = vunpack.c.l.b16 %v3155
    %v3296 = vunpack.c.h.b16 %v3155
    %v3297 = vunpack.c.l.b16 %v3156
    %v3298 = vunpack.c.h.b16 %v3156
    %v3299 = vunpack.c.l.b16 %v3157
    %v3300 = vunpack.c.h.b16 %v3157
    %v3301 = vunpack.c.l.b16 %v3158
    %v3302 = vunpack.c.h.b16 %v3158
    %v3303 = vunpack.c.l.b16 %v3159
    %v3304 = vunpack.c.h.b16 %v3159
    %v3305 = vunpack.c.l.b16 %v3160
    %v3306 = vunpack.c.h.b16 %v3160
    %v3307 = vunpack.c.l.b16 %v3161
    %v3308 = vunpack.c.h.b16 %v3161
    %v3309 = vunpack.c.l.b16 %v3162
    %v3310 = vunpack.c.h.b16 %v3162
    %v3311 = vunpack.c.l.b16 %v3163
    %v3312 = vunpack.c.h.b16 %v3163
    %v3313 = vunpack.c.l.b16 %v3164
    %v3314 = vunpack.c.h.b16 %v3164
    %v3315 = vunpack.c.l.b16 %v3165
    %v3316 = vunpack.c.h.b16 %v3165
    %v3317 = vunpack.c.l.b16 %v3166
    %v3318 = vunpack.c.h.b16 %v3166
    %v3319 = vunpack.c.l.b16 %v3167
    %v3320 = vunpack.c.h.b16 %v3167
    %v3321 = vunpack.c.l.b16 %v3168
    %v3322 = vunpack.c.h.b16 %v3168
    %v3323 = vunpack.c.l.b16 %v3169
    %v3324 = vunpack.c.h.b16 %v3169
    %v3325 = vunpack.c.l.b16 %v3170
    %v3326 = vunpack.c.h.b16 %v3170
    %v3327 = vunpack.c.l.b16 %v3171
    %v3328 = vunpack.c.h.b16 %v3171
    %v3329 = vunpack.c.l.b16 %v3172
    %v3330 = vunpack.c.h.b16 %v3172
    %v3331 = vunpack.c.l.b16 %v3173
    %v3332 = vunpack.c.h.b16 %v3173
    %v3333 = vunpack.c.l.b16 %v3174
    %v3334 = vunpack.c.h.b16 %v3174
    %v3335 = vunpack.c.l.b16 %v3175
    %v3336 = vunpack.c.h.b16 %v3175
    %v3337 = vunpack.c.l.b16 %v3176
    %v3338 = vunpack.c.h.b16 %v3176
    %v3339 = vunpack.c.l.b16 %v3177
    %v3340 = vunpack.c.h.b16 %v3177
    %v3341 = vunpack.c.l.b16 %v3178
    %v3342 = vunpack.c.h.b16 %v3178
    %v3343 = vunpack.c.l.b16 %v3179
    %v3344 = vunpack.c.h.b16 %v3179
    %v3345 = vunpack.c.l.b16 %v3180
    %v3346 = vunpack.c.h.b16 %v3180
    %v3347 = vunpack.c.l.b16 %v3181
    %v3348 = vunpack.c.h.b16 %v3181
    %v3349 = vunpack.c.l.b16 %v3182
    %v3350 = vunpack.c.h.b16 %v3182
    %v3351 = vunpack.c.l.b16 %v3183
    %v3352 = vunpack.c.h.b16 %v3183
    %v3353 = vunpack.c.l.b16 %v3184
    %v3354 = vunpack.c.h.b16 %v3184
    %v3355 = vunpack.c.l.b16 %v3185
    %v3356 = vunpack.c.h.b16 %v3185
    %v3357 = vunpack.c.l.b16 %v3186
    %v3358 = vunpack.c.h.b16 %v3186
    %v3359 = vunpack.c.l.b16 %v3187
    %v3360 = vunpack.c.h.b16 %v3187
    %v3361 = vunpack.c.l.b16 %v3188
    %v3362 = vunpack.c.h.b16 %v3188
    %v3363 = vunpack.c.l.b16 %v3189
    %v3364 = vunpack.c.h.b16 %v3189
    %v3365 = vunpack.c.l.b16 %v3190
    %v3366 = vunpack.c.h.b16 %v3190
    %v3367 = vunpack.c.l.b16 %v3191
    %v3368 = vunpack.c.h.b16 %v3191
    %v3369 = vunpack.c.l.b16 %v3192
    %v3370 = vunpack.c.h.b16 %v3192
    %v3371 = vunpack.c.l.b16 %v3193
    %v3372 = vunpack.c.h.b16 %v3193
    %v3373 = vunpack.c.l.b16 %v3194
    %v3374 = vunpack.c.h.b16 %v3194
    %v3375 = vunpack.c.l.b16 %v3195
    %v3376 = vunpack.c.h.b16 %v3195
    %v3377 = vunpack.c.l.b16 %v3196
    %v3378 = vunpack.c.h.b16 %v3196
    %v3379 = vunpack.c.l.b16 %v3197
    %v3380 = vunpack.c.h.b16 %v3197
    %v3381 = vunpack.c.l.b16 %v3198
    %v3382 = vunpack.c.h.b16 %v3198
    %v3383 = vunpack.c.l.b16 %v3199
    %v3384 = vunpack.c.h.b16 %v3199
    %v3385 = vunpack.c.l.b16 %v3200
    %v3386 = vunpack.c.h.b16 %v3200
    %v3387 = vunpack.c.l.b16 %v3201
    %v3388 = vunpack.c.h.b16 %v3201
    %v3389 = vunpack.c.l.b16 %v3202
    %v3390 = vunpack.c.h.b16 %v3202
    %v3391 = vunpack.c.l.b16 %v3203
    %v3392 = vunpack.c.h.b16 %v3203
    %v3393 = vunpack.c.l.b16 %v3204
    %v3394 = vunpack.c.h.b16 %v3204
    %v3395 = vunpack.c.l.b16 %v3205
    %v3396 = vunpack.c.h.b16 %v3205
    %v3397 = vunpack.c.l.b16 %v3206
    %v3398 = vunpack.c.h.b16 %v3206
    %v3399 = vunpack.c.l.b16 %v3207
    %v3400 = vunpack.c.h.b16 %v3207
    %v3401 = vunpack.c.l.b16 %v3208
    %v3402 = vunpack.c.h.b16 %v3208
    %v3403 = vunpack.c.l.b16 %v3209
    %v3404 = vunpack.c.h.b16 %v3209
    %v3405 = vunpack.c.l.b16 %v3210
    %v3406 = vunpack.c.h.b16 %v3210
    %v3407 = vunpack.c.l.b16 %v3211
    %v3408 = vunpack.c.h.b16 %v3211
    %v3409 = vunpack.c.l.b16 %v3212
    %v3410 = vunpack.c.h.b16 %v3212
    %v3411 = vpack.c.b16 %v3285, %v3283
    %v3412 = vpack.c.b16 %v3286, %v3284
    %v3413 = vpack.c.b16 %v3289, %v3287
    %v3414 = vpack.c.b16 %v3290, %v3288
    %v3415 = vpack.c.b16 %v3293, %v3291
    %v3416 = vpack.c.b16 %v3294, %v3292
    %v3417 = vpack.c.b16 %v3297, %v3295
    %v3418 = vpack.c.b16 %v3298, %v3296
    %v3419 = vpack.c.b16 %v3301, %v3299
    %v3420 = vpack.c.b16 %v3302, %v3300
    %v3421 = vpack.c.b16 %v3305, %v3303
    %v3422 = vpack.c.b16 %v3306, %v3304
    %v3423 = vpack.c.b16 %v3309, %v3307
    %v3424 = vpack.c.b16 %v3310, %v3308
    %v3425 = vpack.c.b16 %v3313, %v3311
    %v3426 = vpack.c.b16 %v3314, %v3312
    %v3427 = vpack.c.b16 %v3317, %v3315
    %v3428 = vpack.c.b16 %v3318, %v3316
    %v3429 = vpack.c.b16 %v3321, %v3319
    %v3430 = vpack.c.b16 %v3322, %v3320
    %v3431 = vpack.c.b16 %v3325, %v3323
    %v3432 = vpack.c.b16 %v3326, %v3324
    %v3433 = vpack.c.b16 %v3329, %v3327
    %v3434 = vpack.c.b16 %v3330, %v3328
    %v3435 = vpack.c.b16 %v3333, %v3331
    %v3436 = vpack.c.b16 %v3334, %v3332
    %v3437 = vpack.c.b16 %v3337, %v3335
    %v3438 = vpack.c.b16 %v3338, %v3336
    %v3439 = vpack.c.b16 %v3341, %v3339
    %v3440 = vpack.c.b16 %v3342, %v3340
    %v3441 = vpack.c.b16 %v3345, %v3343
    %v3442 = vpack.c.b16 %v3346, %v3344
    %v3443 = vpack.c.b16 %v3349, %v3347
    %v3444 = vpack.c.b16 %v3350, %v3348
    %v3445 = vpack.c.b16 %v3353, %v3351
    %v3446 = vpack.c.b16 %v3354, %v3352
    %v3447 = vpack.c.b16 %v3357, %v3355
    %v3448 = vpack.c.b16 %v3358, %v3356
    %v3449 = vpack.c.b16 %v3361, %v3359
    %v3450 = vpack.c.b16 %v3362, %v3360
    %v3451 = vpack.c.b16 %v3365, %v3363
    %v3452 = vpack.c.b16 %v3366, %v3364
    %v3453 = vpack.c.b16 %v3369, %v3367
    %v3454 = vpack.c.b16 %v3370, %v3368
    %v3455 = vpack.c.b16 %v3373, %v3371
    %v3456 = vpack.c.b16 %v3374, %v3372
    %v3457 = vpack.c.b16 %v3377, %v3375
    %v3458 = vpack.c.b16 %v3378, %v3376
    %v3459 = vpack.c.b16 %v3381, %v3379
    %v3460 = vpack.c.b16 %v3382, %v3380
    %v3461 = vpack.c.b16 %v3385, %v3383
    %v3462 = vpack.c.b16 %v3386, %v3384
    %v3463 = vpack.c.b16 %v3389, %v3387
    %v3464 = vpack.c.b16 %v3390, %v3388
    %v3465 = vpack.c.b16 %v3393, %v3391
    %v3466 = vpack.c.b16 %v3394, %v3392
    %v3467 = vpack.c.b16 %v3397, %v3395
    %v3468 = vpack.c.b16 %v3398, %v3396
    %v3469 = vpack.c.b16 %v3401, %v3399
    %v3470 = vpack.c.b16 %v3402, %v3400
    %v3471 = vpack.c.b16 %v3405, %v3403
    %v3472 = vpack.c.b16 %v3406, %v3404
    %v3473 = vpack.c.b16 %v3409, %v3407
    %v3474 = vpack.c.b16 %v3410, %v3408
    %3539 = vmatpush.bf16.msra.mxu0 %v3425
    %3540 = vmatpush.bf16.msra.mxu0 %v3423
    %3541 = vmatpush.bf16.msra.mxu0 %v3421
    %3542 = vmatpush.bf16.msra.mxu0 %v3419
    %3543 = vmatpush.bf16.msra.mxu0 %v3417
    %3544 = vmatpush.bf16.msra.mxu0 %v3415
    %3545 = vmatpush.bf16.msra.mxu0 %v3413
    %3546 = vmatpush.bf16.msra.mxu0 %v3411
    %3547 = vmatmul.bf16.gmra.mxu0 %v3051
    %v3548 = vpop.f32.mrf.mxu0
    %v3549 = vadd.f32 %v3215, %v3548
    %v3550 = vpop.f32.mrf.mxu0
    %v3551 = vadd.f32 %v3215, %v3550
    %3552 = vmatmul.bf16.gmra.mxu0 %v3053
    %v3553 = vpop.f32.mrf.mxu0
    %v3554 = vadd.f32 %v3215, %v3553
    %v3555 = vpop.f32.mrf.mxu0
    %v3556 = vadd.f32 %v3215, %v3555
    %3557 = vmatmul.bf16.gmra.mxu0 %v3055
    %v3558 = vpop.f32.mrf.mxu0
    %v3559 = vadd.f32 %v3215, %v3558
    %v3560 = vpop.f32.mrf.mxu0
    %v3561 = vadd.f32 %v3215, %v3560
    %3562 = vmatmul.bf16.gmra.mxu0 %v3057
    %v3563 = vpop.f32.mrf.mxu0
    %v3564 = vadd.f32 %v3215, %v3563
    %v3565 = vpop.f32.mrf.mxu0
    %v3566 = vadd.f32 %v3215, %v3565
    %3567 = vmatmul.bf16.gmra.mxu0 %v3059
    %v3568 = vpop.f32.mrf.mxu0
    %v3569 = vadd.f32 %v3215, %v3568
    %v3570 = vpop.f32.mrf.mxu0
    %v3571 = vadd.f32 %v3215, %v3570
    %3572 = vmatmul.bf16.gmra.mxu0 %v3061
    %v3573 = vpop.f32.mrf.mxu0
    %v3574 = vadd.f32 %v3215, %v3573
    %v3575 = vpop.f32.mrf.mxu0
    %v3576 = vadd.f32 %v3215, %v3575
    %3577 = vmatmul.bf16.gmra.mxu0 %v3063
    %v3578 = vpop.f32.mrf.mxu0
    %v3579 = vadd.f32 %v3215, %v3578
    %v3580 = vpop.f32.mrf.mxu0
    %v3581 = vadd.f32 %v3215, %v3580
    %3582 = vdwg.mxu0
    %3583 = vmatpush.bf16.msra.mxu0 %v3441
    %3584 = vmatpush.bf16.msra.mxu0 %v3439
    %3585 = vmatpush.bf16.msra.mxu0 %v3437
    %3586 = vmatpush.bf16.msra.mxu0 %v3435
    %3587 = vmatpush.bf16.msra.mxu0 %v3433
    %3588 = vmatpush.bf16.msra.mxu0 %v3431
    %3589 = vmatpush.bf16.msra.mxu0 %v3429
    %3590 = vmatpush.bf16.msra.mxu0 %v3427
    %3591 = vmatmul.bf16.gmra.mxu0 %v3052
    %v3592 = vpop.f32.mrf.mxu0
    %v3593 = vadd.f32 %v3549, %v3592
    %v3594 = vpop.f32.mrf.mxu0
    %v3595 = vadd.f32 %v3551, %v3594
    %3596 = vmatmul.bf16.gmra.mxu0 %v3054
    %v3597 = vpop.f32.mrf.mxu0
    %v3598 = vadd.f32 %v3554, %v3597
    %v3599 = vpop.f32.mrf.mxu0
    %v3600 = vadd.f32 %v3556, %v3599
    %3601 = vmatmul.bf16.gmra.mxu0 %v3056
    %v3602 = vpop.f32.mrf.mxu0
    %v3603 = vadd.f32 %v3559, %v3602
    %v3604 = vpop.f32.mrf.mxu0
    %v3605 = vadd.f32 %v3561, %v3604
    %3606 = vmatmul.bf16.gmra.mxu0 %v3058
    %v3607 = vpop.f32.mrf.mxu0
    %v3608 = vadd.f32 %v3564, %v3607
    %v3609 = vpop.f32.mrf.mxu0
    %v3610 = vadd.f32 %v3566, %v3609
    %3611 = vmatmul.bf16.gmra.mxu0 %v3060
    %v3612 = vpop.f32.mrf.mxu0
    %v3613 = vadd.f32 %v3569, %v3612
    %v3614 = vpop.f32.mrf.mxu0
    %v3615 = vadd.f32 %v3571, %v3614
    %3616 = vmatmul.bf16.gmra.mxu0 %v3062
    %v3617 = vpop.f32.mrf.mxu0
    %v3618 = vadd.f32 %v3574, %v3617
    %v3619 = vpop.f32.mrf.mxu0
    %v3620 = vadd.f32 %v3576, %v3619
    %3621 = vmatmul.bf16.gmra.mxu0 %v3064
    %v3622 = vpop.f32.mrf.mxu0
    %v3623 = vadd.f32 %v3579, %v3622
    %v3624 = vpop.f32.mrf.mxu0
    %v3625 = vadd.f32 %v3581, %v3624
    %3626 = vdwg.mxu0
    %3627 = vmatpush.bf16.msra.mxu0 %v3457
    %3628 = vmatpush.bf16.msra.mxu0 %v3455
    %3629 = vmatpush.bf16.msra.mxu0 %v3453
    %3630 = vmatpush.bf16.msra.mxu0 %v3451
    %3631 = vmatpush.bf16.msra.mxu0 %v3449
    %3632 = vmatpush.bf16.msra.mxu0 %v3447
    %3633 = vmatpush.bf16.msra.mxu0 %v3445
    %3634 = vmatpush.bf16.msra.mxu0 %v3443
    %3635 = vmatmul.bf16.gmra.mxu0 %v3121
    %v3636 = vpop.f32.mrf.mxu0
    %v3637 = vadd.f32 %v3593, %v3636
    %v3638 = vpop.f32.mrf.mxu0
    %v3639 = vadd.f32 %v3595, %v3638
    %3640 = vmatmul.bf16.gmra.mxu0 %v3123
    %v3641 = vpop.f32.mrf.mxu0
    %v3642 = vadd.f32 %v3598, %v3641
    %v3643 = vpop.f32.mrf.mxu0
    %v3644 = vadd.f32 %v3600, %v3643
    %3645 = vmatmul.bf16.gmra.mxu0 %v3125
    %v3646 = vpop.f32.mrf.mxu0
    %v3647 = vadd.f32 %v3603, %v3646
    %v3648 = vpop.f32.mrf.mxu0
    %v3649 = vadd.f32 %v3605, %v3648
    %3650 = vmatmul.bf16.gmra.mxu0 %v3127
    %v3651 = vpop.f32.mrf.mxu0
    %v3652 = vadd.f32 %v3608, %v3651
    %v3653 = vpop.f32.mrf.mxu0
    %v3654 = vadd.f32 %v3610, %v3653
    %3655 = vmatmul.bf16.gmra.mxu0 %v3129
    %v3656 = vpop.f32.mrf.mxu0
    %v3657 = vadd.f32 %v3613, %v3656
    %v3658 = vpop.f32.mrf.mxu0
    %v3659 = vadd.f32 %v3615, %v3658
    %3660 = vmatmul.bf16.gmra.mxu0 %v3131
    %v3661 = vpop.f32.mrf.mxu0
    %v3662 = vadd.f32 %v3618, %v3661
    %v3663 = vpop.f32.mrf.mxu0
    %v3664 = vadd.f32 %v3620, %v3663
    %3665 = vmatmul.bf16.gmra.mxu0 %v3133
    %v3666 = vpop.f32.mrf.mxu0
    %v3667 = vadd.f32 %v3623, %v3666
    %v3668 = vpop.f32.mrf.mxu0
    %v3669 = vadd.f32 %v3625, %v3668
    %3670 = vdwg.mxu0
    %3671 = vmatpush.bf16.msra.mxu0 %v3473
    %3672 = vmatpush.bf16.msra.mxu0 %v3471
    %3673 = vmatpush.bf16.msra.mxu0 %v3469
    %3674 = vmatpush.bf16.msra.mxu0 %v3467
    %3675 = vmatpush.bf16.msra.mxu0 %v3465
    %3676 = vmatpush.bf16.msra.mxu0 %v3463
    %3677 = vmatpush.bf16.msra.mxu0 %v3461
    %3678 = vmatpush.bf16.msra.mxu0 %v3459
    %3679 = vmatmul.bf16.gmra.mxu0 %v3122
    %v3680 = vpop.f32.mrf.mxu0
    %v3681 = vadd.f32 %v3637, %v3680
    %v3682 = vpop.f32.mrf.mxu0
    %v3683 = vadd.f32 %v3639, %v3682
    %3684 = vmatmul.bf16.gmra.mxu0 %v3124
    %v3685 = vpop.f32.mrf.mxu0
    %v3686 = vadd.f32 %v3642, %v3685
    %v3687 = vpop.f32.mrf.mxu0
    %v3688 = vadd.f32 %v3644, %v3687
    %3689 = vmatmul.bf16.gmra.mxu0 %v3126
    %v3690 = vpop.f32.mrf.mxu0
    %v3691 = vadd.f32 %v3647, %v3690
    %v3692 = vpop.f32.mrf.mxu0
    %v3693 = vadd.f32 %v3649, %v3692
    %3694 = vmatmul.bf16.gmra.mxu0 %v3128
    %v3695 = vpop.f32.mrf.mxu0
    %v3696 = vadd.f32 %v3652, %v3695
    %v3697 = vpop.f32.mrf.mxu0
    %v3698 = vadd.f32 %v3654, %v3697
    %3699 = vmatmul.bf16.gmra.mxu0 %v3130
    %v3700 = vpop.f32.mrf.mxu0
    %v3701 = vadd.f32 %v3657, %v3700
    %v3702 = vpop.f32.mrf.mxu0
    %v3703 = vadd.f32 %v3659, %v3702
    %3704 = vmatmul.bf16.gmra.mxu0 %v3132
    %v3705 = vpop.f32.mrf.mxu0
    %v3706 = vadd.f32 %v3662, %v3705
    %v3707 = vpop.f32.mrf.mxu0
    %v3708 = vadd.f32 %v3664, %v3707
    %3709 = vmatmul.bf16.gmra.mxu0 %v3134
    %v3710 = vpop.f32.mrf.mxu0
    %v3711 = vadd.f32 %v3667, %v3710
    %v3712 = vpop.f32.mrf.mxu0
    %v3713 = vadd.f32 %v3669, %v3712
    %3714 = vdwg.mxu0
    %3715 = vmatpush.bf16.msra.mxu0 %v3426
    %3716 = vmatpush.bf16.msra.mxu0 %v3424
    %3717 = vmatpush.bf16.msra.mxu0 %v3422
    %3718 = vmatpush.bf16.msra.mxu0 %v3420
    %3719 = vmatpush.bf16.msra.mxu0 %v3418
    %3720 = vmatpush.bf16.msra.mxu0 %v3416
    %3721 = vmatpush.bf16.msra.mxu0 %v3414
    %3722 = vmatpush.bf16.msra.mxu0 %v3412
    %3723 = vmatmul.bf16.gmra.mxu0 %v3051
    %v3724 = vpop.f32.mrf.mxu0
    %v3725 = vadd.f32 %v3216, %v3724
    %v3726 = vpop.f32.mrf.mxu0
    %v3727 = vadd.f32 %v3216, %v3726
    %3728 = vmatmul.bf16.gmra.mxu0 %v3053
    %v3729 = vpop.f32.mrf.mxu0
    %v3730 = vadd.f32 %v3216, %v3729
    %v3731 = vpop.f32.mrf.mxu0
    %v3732 = vadd.f32 %v3216, %v3731
    %3733 = vmatmul.bf16.gmra.mxu0 %v3055
    %v3734 = vpop.f32.mrf.mxu0
    %v3735 = vadd.f32 %v3216, %v3734
    %v3736 = vpop.f32.mrf.mxu0
    %v3737 = vadd.f32 %v3216, %v3736
    %3738 = vmatmul.bf16.gmra.mxu0 %v3057
    %v3739 = vpop.f32.mrf.mxu0
    %v3740 = vadd.f32 %v3216, %v3739
    %v3741 = vpop.f32.mrf.mxu0
    %v3742 = vadd.f32 %v3216, %v3741
    %3743 = vmatmul.bf16.gmra.mxu0 %v3059
    %v3744 = vpop.f32.mrf.mxu0
    %v3745 = vadd.f32 %v3216, %v3744
    %v3746 = vpop.f32.mrf.mxu0
    %v3747 = vadd.f32 %v3216, %v3746
    %3748 = vmatmul.bf16.gmra.mxu0 %v3061
    %v3749 = vpop.f32.mrf.mxu0
    %v3750 = vadd.f32 %v3216, %v3749
    %v3751 = vpop.f32.mrf.mxu0
    %v3752 = vadd.f32 %v3216, %v3751
    %3753 = vmatmul.bf16.gmra.mxu0 %v3063
    %v3754 = vpop.f32.mrf.mxu0
    %v3755 = vadd.f32 %v3216, %v3754
    %v3756 = vpop.f32.mrf.mxu0
    %v3757 = vadd.f32 %v3216, %v3756
    %3758 = vdwg.mxu0
    %3759 = vmatpush.bf16.msra.mxu0 %v3442
    %3760 = vmatpush.bf16.msra.mxu0 %v3440
    %3761 = vmatpush.bf16.msra.mxu0 %v3438
    %3762 = vmatpush.bf16.msra.mxu0 %v3436
    %3763 = vmatpush.bf16.msra.mxu0 %v3434
    %3764 = vmatpush.bf16.msra.mxu0 %v3432
    %3765 = vmatpush.bf16.msra.mxu0 %v3430
    %3766 = vmatpush.bf16.msra.mxu0 %v3428
    %3767 = vmatmul.bf16.gmra.mxu0 %v3052
    %v3768 = vpop.f32.mrf.mxu0
    %v3769 = vadd.f32 %v3725, %v3768
    %v3770 = vpop.f32.mrf.mxu0
    %v3771 = vadd.f32 %v3727, %v3770
    %3772 = vmatmul.bf16.gmra.mxu0 %v3054
    %v3773 = vpop.f32.mrf.mxu0
    %v3774 = vadd.f32 %v3730, %v3773
    %v3775 = vpop.f32.mrf.mxu0
    %v3776 = vadd.f32 %v3732, %v3775
    %3777 = vmatmul.bf16.gmra.mxu0 %v3056
    %v3778 = vpop.f32.mrf.mxu0
    %v3779 = vadd.f32 %v3735, %v3778
    %v3780 = vpop.f32.mrf.mxu0
    %v3781 = vadd.f32 %v3737, %v3780
    %3782 = vmatmul.bf16.gmra.mxu0 %v3058
    %v3783 = vpop.f32.mrf.mxu0
    %v3784 = vadd.f32 %v3740, %v3783
    %v3785 = vpop.f32.mrf.mxu0
    %v3786 = vadd.f32 %v3742, %v3785
    %3787 = vmatmul.bf16.gmra.mxu0 %v3060
    %v3788 = vpop.f32.mrf.mxu0
    %v3789 = vadd.f32 %v3745, %v3788
    %v3790 = vpop.f32.mrf.mxu0
    %v3791 = vadd.f32 %v3747, %v3790
    %3792 = vmatmul.bf16.gmra.mxu0 %v3062
    %v3793 = vpop.f32.mrf.mxu0
    %v3794 = vadd.f32 %v3750, %v3793
    %v3795 = vpop.f32.mrf.mxu0
    %v3796 = vadd.f32 %v3752, %v3795
    %3797 = vmatmul.bf16.gmra.mxu0 %v3064
    %v3798 = vpop.f32.mrf.mxu0
    %v3799 = vadd.f32 %v3755, %v3798
    %v3800 = vpop.f32.mrf.mxu0
    %v3801 = vadd.f32 %v3757, %v3800
    %3802 = vdwg.mxu0
    %3803 = vmatpush.bf16.msra.mxu0 %v3458
    %3804 = vmatpush.bf16.msra.mxu0 %v3456
    %3805 = vmatpush.bf16.msra.mxu0 %v3454
    %3806 = vmatpush.bf16.msra.mxu0 %v3452
    %3807 = vmatpush.bf16.msra.mxu0 %v3450
    %3808 = vmatpush.bf16.msra.mxu0 %v3448
    %3809 = vmatpush.bf16.msra.mxu0 %v3446
    %3810 = vmatpush.bf16.msra.mxu0 %v3444
    %3811 = vmatmul.bf16.gmra.mxu0 %v3121
    %v3812 = vpop.f32.mrf.mxu0
    %v3813 = vadd.f32 %v3769, %v3812
    %v3814 = vpop.f32.mrf.mxu0
    %v3815 = vadd.f32 %v3771, %v3814
    %3816 = vmatmul.bf16.gmra.mxu0 %v3123
    %v3817 = vpop.f32.mrf.mxu0
    %v3818 = vadd.f32 %v3774, %v3817
    %v3819 = vpop.f32.mrf.mxu0
    %v3820 = vadd.f32 %v3776, %v3819
    %3821 = vmatmul.bf16.gmra.mxu0 %v3125
    %v3822 = vpop.f32.mrf.mxu0
    %v3823 = vadd.f32 %v3779, %v3822
    %v3824 = vpop.f32.mrf.mxu0
    %v3825 = vadd.f32 %v3781, %v3824
    %3826 = vmatmul.bf16.gmra.mxu0 %v3127
    %v3827 = vpop.f32.mrf.mxu0
    %v3828 = vadd.f32 %v3784, %v3827
    %v3829 = vpop.f32.mrf.mxu0
    %v3830 = vadd.f32 %v3786, %v3829
    %3831 = vmatmul.bf16.gmra.mxu0 %v3129
    %v3832 = vpop.f32.mrf.mxu0
    %v3833 = vadd.f32 %v3789, %v3832
    %v3834 = vpop.f32.mrf.mxu0
    %v3835 = vadd.f32 %v3791, %v3834
    %3836 = vmatmul.bf16.gmra.mxu0 %v3131
    %v3837 = vpop.f32.mrf.mxu0
    %v3838 = vadd.f32 %v3794, %v3837
    %v3839 = vpop.f32.mrf.mxu0
    %v3840 = vadd.f32 %v3796, %v3839
    %3841 = vmatmul.bf16.gmra.mxu0 %v3133
    %v3842 = vpop.f32.mrf.mxu0
    %v3843 = vadd.f32 %v3799, %v3842
    %v3844 = vpop.f32.mrf.mxu0
    %v3845 = vadd.f32 %v3801, %v3844
    %3846 = vdwg.mxu0
    %3847 = vmatpush.bf16.msra.mxu0 %v3474
    %3848 = vmatpush.bf16.msra.mxu0 %v3472
    %3849 = vmatpush.bf16.msra.mxu0 %v3470
    %3850 = vmatpush.bf16.msra.mxu0 %v3468
    %3851 = vmatpush.bf16.msra.mxu0 %v3466
    %3852 = vmatpush.bf16.msra.mxu0 %v3464
    %3853 = vmatpush.bf16.msra.mxu0 %v3462
    %3854 = vmatpush.bf16.msra.mxu0 %v3460
    %3855 = vmatmul.bf16.gmra.mxu0 %v3122
    %v3856 = vpop.f32.mrf.mxu0
    %v3857 = vadd.f32 %v3813, %v3856
    %v3858 = vpop.f32.mrf.mxu0
    %v3859 = vadd.f32 %v3815, %v3858
    %3860 = vmatmul.bf16.gmra.mxu0 %v3124
    %v3861 = vpop.f32.mrf.mxu0
    %v3862 = vadd.f32 %v3818, %v3861
    %v3863 = vpop.f32.mrf.mxu0
    %v3864 = vadd.f32 %v3820, %v3863
    %3865 = vmatmul.bf16.gmra.mxu0 %v3126
    %v3866 = vpop.f32.mrf.mxu0
    %v3867 = vadd.f32 %v3823, %v3866
    %v3868 = vpop.f32.mrf.mxu0
    %v3869 = vadd.f32 %v3825, %v3868
    %3870 = vmatmul.bf16.gmra.mxu0 %v3128
    %v3871 = vpop.f32.mrf.mxu0
    %v3872 = vadd.f32 %v3828, %v3871
    %v3873 = vpop.f32.mrf.mxu0
    %v3874 = vadd.f32 %v3830, %v3873
    %3875 = vmatmul.bf16.gmra.mxu0 %v3130
    %v3876 = vpop.f32.mrf.mxu0
    %v3877 = vadd.f32 %v3833, %v3876
    %v3878 = vpop.f32.mrf.mxu0
    %v3879 = vadd.f32 %v3835, %v3878
    %3880 = vmatmul.bf16.gmra.mxu0 %v3132
    %v3881 = vpop.f32.mrf.mxu0
    %v3882 = vadd.f32 %v3838, %v3881
    %v3883 = vpop.f32.mrf.mxu0
    %v3884 = vadd.f32 %v3840, %v3883
    %3885 = vmatmul.bf16.gmra.mxu0 %v3134
    %v3886 = vpop.f32.mrf.mxu0
    %v3887 = vadd.f32 %v3843, %v3886
    %v3888 = vpop.f32.mrf.mxu0
    %v3889 = vadd.f32 %v3845, %v3888
    %3890 = vdwg.mxu0
    %v3891 = vxor.u32 %v3681, 2147483648
    %v3892 = vxor.u32 %v3857, 2147483648
    %v3893 = vxor.u32 %v3683, 2147483648
    %v3894 = vxor.u32 %v3859, 2147483648
    %v3895 = vxor.u32 %v3686, 2147483648
    %v3896 = vxor.u32 %v3862, 2147483648
    %v3897 = vxor.u32 %v3688, 2147483648
    %v3898 = vxor.u32 %v3864, 2147483648
    %v3899 = vxor.u32 %v3691, 2147483648
    %v3900 = vxor.u32 %v3867, 2147483648
    %v3901 = vxor.u32 %v3693, 2147483648
    %v3902 = vxor.u32 %v3869, 2147483648
    %v3903 = vxor.u32 %v3696, 2147483648
    %v3904 = vxor.u32 %v3872, 2147483648
    %v3905 = vxor.u32 %v3698, 2147483648
    %v3906 = vxor.u32 %v3874, 2147483648
    %v3907 = vxor.u32 %v3701, 2147483648
    %v3908 = vxor.u32 %v3877, 2147483648
    %v3909 = vxor.u32 %v3703, 2147483648
    %v3910 = vxor.u32 %v3879, 2147483648
    %v3911 = vxor.u32 %v3706, 2147483648
    %v3912 = vxor.u32 %v3882, 2147483648
    %v3913 = vxor.u32 %v3708, 2147483648
    %v3914 = vxor.u32 %v3884, 2147483648
    %v3915 = vxor.u32 %v3711, 2147483648
    %v3916 = vxor.u32 %v3887, 2147483648
    %v3917 = vxor.u32 %v3713, 2147483648
    %v3918 = vxor.u32 %v3889, 2147483648
    %v3919 = vmul.f32 %v3891, 1.442695
    %v3920 = vpow.pop %v3919
    %v3921 = vmul.f32 %v3892, 1.442695
    %v3922 = vpow.pop %v3921
    %v3923 = vmul.f32 %v3893, 1.442695
    %v3924 = vpow.pop %v3923
    %v3925 = vmul.f32 %v3894, 1.442695
    %v3926 = vpow.pop %v3925
    %v3927 = vmul.f32 %v3895, 1.442695
    %v3928 = vpow.pop %v3927
    %v3929 = vmul.f32 %v3896, 1.442695
    %v3930 = vpow.pop %v3929
    %v3931 = vmul.f32 %v3897, 1.442695
    %v3932 = vpow.pop %v3931
    %v3933 = vmul.f32 %v3898, 1.442695
    %v3934 = vpow.pop %v3933
    %v3935 = vmul.f32 %v3899, 1.442695
    %v3936 = vpow.pop %v3935
    %v3937 = vmul.f32 %v3900, 1.442695
    %v3938 = vpow.pop %v3937
    %v3939 = vmul.f32 %v3901, 1.442695
    %v3940 = vpow.pop %v3939
    %v3941 = vmul.f32 %v3902, 1.442695
    %v3942 = vpow.pop %v3941
    %v3943 = vmul.f32 %v3903, 1.442695
    %v3944 = vpow.pop %v3943
    %v3945 = vmul.f32 %v3904, 1.442695
    %v3946 = vpow.pop %v3945
    %v3947 = vmul.f32 %v3905, 1.442695
    %v3948 = vpow.pop %v3947
    %v3949 = vmul.f32 %v3906, 1.442695
    %v3950 = vpow.pop %v3949
    %v3951 = vmul.f32 %v3907, 1.442695
    %v3952 = vpow.pop %v3951
    %v3953 = vmul.f32 %v3908, 1.442695
    %v3954 = vpow.pop %v3953
    %v3955 = vmul.f32 %v3909, 1.442695
    %v3956 = vpow.pop %v3955
    %v3957 = vmul.f32 %v3910, 1.442695
    %v3958 = vpow.pop %v3957
    %v3959 = vmul.f32 %v3911, 1.442695
    %v3960 = vpow.pop %v3959
    %v3961 = vmul.f32 %v3912, 1.442695
    %v3962 = vpow.pop %v3961
    %v3963 = vmul.f32 %v3913, 1.442695
    %v3964 = vpow.pop %v3963
    %v3965 = vmul.f32 %v3914, 1.442695
    %v3966 = vpow.pop %v3965
    %v3967 = vmul.f32 %v3915, 1.442695
    %v3968 = vpow.pop %v3967
    %v3969 = vmul.f32 %v3916, 1.442695
    %v3970 = vpow.pop %v3969
    %v3971 = vmul.f32 %v3917, 1.442695
    %v3972 = vpow.pop %v3971
    %v3973 = vmul.f32 %v3918, 1.442695
    %v3974 = vpow.pop %v3973
    %v3975 = vadd.f32 %v3920, 1.0
    %v3976 = vadd.f32 %v3922, 1.0
    %v3977 = vadd.f32 %v3924, 1.0
    %v3978 = vadd.f32 %v3926, 1.0
    %v3979 = vadd.f32 %v3928, 1.0
    %v3980 = vadd.f32 %v3930, 1.0
    %v3981 = vadd.f32 %v3932, 1.0
    %v3982 = vadd.f32 %v3934, 1.0
    %v3983 = vadd.f32 %v3936, 1.0
    %v3984 = vadd.f32 %v3938, 1.0
    %v3985 = vadd.f32 %v3940, 1.0
    %v3986 = vadd.f32 %v3942, 1.0
    %v3987 = vadd.f32 %v3944, 1.0
    %v3988 = vadd.f32 %v3946, 1.0
    %v3989 = vadd.f32 %v3948, 1.0
    %v3990 = vadd.f32 %v3950, 1.0
    %v3991 = vadd.f32 %v3952, 1.0
    %v3992 = vadd.f32 %v3954, 1.0
    %v3993 = vadd.f32 %v3956, 1.0
    %v3994 = vadd.f32 %v3958, 1.0
    %v3995 = vadd.f32 %v3960, 1.0
    %v3996 = vadd.f32 %v3962, 1.0
    %v3997 = vadd.f32 %v3964, 1.0
    %v3998 = vadd.f32 %v3966, 1.0
    %v3999 = vadd.f32 %v3968, 1.0
    %v4000 = vadd.f32 %v3970, 1.0
    %v4001 = vadd.f32 %v3972, 1.0
    %v4002 = vadd.f32 %v3974, 1.0
    %v4003 = vrcp.pop %v3975
    %v4004 = vmul.f32 %v3975, %v4003
    %v4005 = vsub.f32 1.0, %v4004
    %v4006 = vmul.f32 %v4003, %v4005
    %v4007 = vadd.f32 %v4003, %v4006
    %vm4008 = vweird.f32 %v3975
    %vm4009 = vweird.f32 %v4003
    %vm4010 = vmor %vm4008, %vm4009
    %v4011 = vsel %vm4010, %v4003, %v4007
    %v4012 = vand.u32 2147483647, %v3975
    %vm4013 = vcmp.eq.f32.partialorder %v4012, 8.507059e+37
    %v4014 = vand.u32 %v3975, 2147483648
    %v4015 = vor.u32 1.1754944e-38, %v4014
    %v4016 = vsel %vm4013, %v4015, %v4011
    %v4017 = vmul.f32 1.0, %v4016
    %v4018 = vrcp.pop %v3976
    %v4019 = vmul.f32 %v3976, %v4018
    %v4020 = vsub.f32 1.0, %v4019
    %v4021 = vmul.f32 %v4018, %v4020
    %v4022 = vadd.f32 %v4018, %v4021
    %vm4023 = vweird.f32 %v3976
    %vm4024 = vweird.f32 %v4018
    %vm4025 = vmor %vm4023, %vm4024
    %v4026 = vsel %vm4025, %v4018, %v4022
    %v4027 = vand.u32 2147483647, %v3976
    %vm4028 = vcmp.eq.f32.partialorder %v4027, 8.507059e+37
    %v4029 = vand.u32 %v3976, 2147483648
    %v4030 = vor.u32 1.1754944e-38, %v4029
    %v4031 = vsel %vm4028, %v4030, %v4026
    %v4032 = vmul.f32 1.0, %v4031
    %v4033 = vrcp.pop %v3977
    %v4034 = vmul.f32 %v3977, %v4033
    %v4035 = vsub.f32 1.0, %v4034
    %v4036 = vmul.f32 %v4033, %v4035
    %v4037 = vadd.f32 %v4033, %v4036
    %vm4038 = vweird.f32 %v3977
    %vm4039 = vweird.f32 %v4033
    %vm4040 = vmor %vm4038, %vm4039
    %v4041 = vsel %vm4040, %v4033, %v4037
    %v4042 = vand.u32 2147483647, %v3977
    %vm4043 = vcmp.eq.f32.partialorder %v4042, 8.507059e+37
    %v4044 = vand.u32 %v3977, 2147483648
    %v4045 = vor.u32 1.1754944e-38, %v4044
    %v4046 = vsel %vm4043, %v4045, %v4041
    %v4047 = vmul.f32 1.0, %v4046
    %v4048 = vrcp.pop %v3978
    %v4049 = vmul.f32 %v3978, %v4048
    %v4050 = vsub.f32 1.0, %v4049
    %v4051 = vmul.f32 %v4048, %v4050
    %v4052 = vadd.f32 %v4048, %v4051
    %vm4053 = vweird.f32 %v3978
    %vm4054 = vweird.f32 %v4048
    %vm4055 = vmor %vm4053, %vm4054
    %v4056 = vsel %vm4055, %v4048, %v4052
    %v4057 = vand.u32 2147483647, %v3978
    %vm4058 = vcmp.eq.f32.partialorder %v4057, 8.507059e+37
    %v4059 = vand.u32 %v3978, 2147483648
    %v4060 = vor.u32 1.1754944e-38, %v4059
    %v4061 = vsel %vm4058, %v4060, %v4056
    %v4062 = vmul.f32 1.0, %v4061
    %v4063 = vrcp.pop %v3979
    %v4064 = vmul.f32 %v3979, %v4063
    %v4065 = vsub.f32 1.0, %v4064
    %v4066 = vmul.f32 %v4063, %v4065
    %v4067 = vadd.f32 %v4063, %v4066
    %vm4068 = vweird.f32 %v3979
    %vm4069 = vweird.f32 %v4063
    %vm4070 = vmor %vm4068, %vm4069
    %v4071 = vsel %vm4070, %v4063, %v4067
    %v4072 = vand.u32 2147483647, %v3979
    %vm4073 = vcmp.eq.f32.partialorder %v4072, 8.507059e+37
    %v4074 = vand.u32 %v3979, 2147483648
    %v4075 = vor.u32 1.1754944e-38, %v4074
    %v4076 = vsel %vm4073, %v4075, %v4071
    %v4077 = vmul.f32 1.0, %v4076
    %v4078 = vrcp.pop %v3980
    %v4079 = vmul.f32 %v3980, %v4078
    %v4080 = vsub.f32 1.0, %v4079
    %v4081 = vmul.f32 %v4078, %v4080
    %v4082 = vadd.f32 %v4078, %v4081
    %vm4083 = vweird.f32 %v3980
    %vm4084 = vweird.f32 %v4078
    %vm4085 = vmor %vm4083, %vm4084
    %v4086 = vsel %vm4085, %v4078, %v4082
    %v4087 = vand.u32 2147483647, %v3980
    %vm4088 = vcmp.eq.f32.partialorder %v4087, 8.507059e+37
    %v4089 = vand.u32 %v3980, 2147483648
    %v4090 = vor.u32 1.1754944e-38, %v4089
    %v4091 = vsel %vm4088, %v4090, %v4086
    %v4092 = vmul.f32 1.0, %v4091
    %v4093 = vrcp.pop %v3981
    %v4094 = vmul.f32 %v3981, %v4093
    %v4095 = vsub.f32 1.0, %v4094
    %v4096 = vmul.f32 %v4093, %v4095
    %v4097 = vadd.f32 %v4093, %v4096
    %vm4098 = vweird.f32 %v3981
    %vm4099 = vweird.f32 %v4093
    %vm4100 = vmor %vm4098, %vm4099
    %v4101 = vsel %vm4100, %v4093, %v4097
    %v4102 = vand.u32 2147483647, %v3981
    %vm4103 = vcmp.eq.f32.partialorder %v4102, 8.507059e+37
    %v4104 = vand.u32 %v3981, 2147483648
    %v4105 = vor.u32 1.1754944e-38, %v4104
    %v4106 = vsel %vm4103, %v4105, %v4101
    %v4107 = vmul.f32 1.0, %v4106
    %v4108 = vrcp.pop %v3982
    %v4109 = vmul.f32 %v3982, %v4108
    %v4110 = vsub.f32 1.0, %v4109
    %v4111 = vmul.f32 %v4108, %v4110
    %v4112 = vadd.f32 %v4108, %v4111
    %vm4113 = vweird.f32 %v3982
    %vm4114 = vweird.f32 %v4108
    %vm4115 = vmor %vm4113, %vm4114
    %v4116 = vsel %vm4115, %v4108, %v4112
    %v4117 = vand.u32 2147483647, %v3982
    %vm4118 = vcmp.eq.f32.partialorder %v4117, 8.507059e+37
    %v4119 = vand.u32 %v3982, 2147483648
    %v4120 = vor.u32 1.1754944e-38, %v4119
    %v4121 = vsel %vm4118, %v4120, %v4116
    %v4122 = vmul.f32 1.0, %v4121
    %v4123 = vrcp.pop %v3983
    %v4124 = vmul.f32 %v3983, %v4123
    %v4125 = vsub.f32 1.0, %v4124
    %v4126 = vmul.f32 %v4123, %v4125
    %v4127 = vadd.f32 %v4123, %v4126
    %vm4128 = vweird.f32 %v3983
    %vm4129 = vweird.f32 %v4123
    %vm4130 = vmor %vm4128, %vm4129
    %v4131 = vsel %vm4130, %v4123, %v4127
    %v4132 = vand.u32 2147483647, %v3983
    %vm4133 = vcmp.eq.f32.partialorder %v4132, 8.507059e+37
    %v4134 = vand.u32 %v3983, 2147483648
    %v4135 = vor.u32 1.1754944e-38, %v4134
    %v4136 = vsel %vm4133, %v4135, %v4131
    %v4137 = vmul.f32 1.0, %v4136
    %v4138 = vrcp.pop %v3984
    %v4139 = vmul.f32 %v3984, %v4138
    %v4140 = vsub.f32 1.0, %v4139
    %v4141 = vmul.f32 %v4138, %v4140
    %v4142 = vadd.f32 %v4138, %v4141
    %vm4143 = vweird.f32 %v3984
    %vm4144 = vweird.f32 %v4138
    %vm4145 = vmor %vm4143, %vm4144
    %v4146 = vsel %vm4145, %v4138, %v4142
    %v4147 = vand.u32 2147483647, %v3984
    %vm4148 = vcmp.eq.f32.partialorder %v4147, 8.507059e+37
    %v4149 = vand.u32 %v3984, 2147483648
    %v4150 = vor.u32 1.1754944e-38, %v4149
    %v4151 = vsel %vm4148, %v4150, %v4146
    %v4152 = vmul.f32 1.0, %v4151
    %v4153 = vrcp.pop %v3985
    %v4154 = vmul.f32 %v3985, %v4153
    %v4155 = vsub.f32 1.0, %v4154
    %v4156 = vmul.f32 %v4153, %v4155
    %v4157 = vadd.f32 %v4153, %v4156
    %vm4158 = vweird.f32 %v3985
    %vm4159 = vweird.f32 %v4153
    %vm4160 = vmor %vm4158, %vm4159
    %v4161 = vsel %vm4160, %v4153, %v4157
    %v4162 = vand.u32 2147483647, %v3985
    %vm4163 = vcmp.eq.f32.partialorder %v4162, 8.507059e+37
    %v4164 = vand.u32 %v3985, 2147483648
    %v4165 = vor.u32 1.1754944e-38, %v4164
    %v4166 = vsel %vm4163, %v4165, %v4161
    %v4167 = vmul.f32 1.0, %v4166
    %v4168 = vrcp.pop %v3986
    %v4169 = vmul.f32 %v3986, %v4168
    %v4170 = vsub.f32 1.0, %v4169
    %v4171 = vmul.f32 %v4168, %v4170
    %v4172 = vadd.f32 %v4168, %v4171
    %vm4173 = vweird.f32 %v3986
    %vm4174 = vweird.f32 %v4168
    %vm4175 = vmor %vm4173, %vm4174
    %v4176 = vsel %vm4175, %v4168, %v4172
    %v4177 = vand.u32 2147483647, %v3986
    %vm4178 = vcmp.eq.f32.partialorder %v4177, 8.507059e+37
    %v4179 = vand.u32 %v3986, 2147483648
    %v4180 = vor.u32 1.1754944e-38, %v4179
    %v4181 = vsel %vm4178, %v4180, %v4176
    %v4182 = vmul.f32 1.0, %v4181
    %v4183 = vrcp.pop %v3987
    %v4184 = vmul.f32 %v3987, %v4183
    %v4185 = vsub.f32 1.0, %v4184
    %v4186 = vmul.f32 %v4183, %v4185
    %v4187 = vadd.f32 %v4183, %v4186
    %vm4188 = vweird.f32 %v3987
    %vm4189 = vweird.f32 %v4183
    %vm4190 = vmor %vm4188, %vm4189
    %v4191 = vsel %vm4190, %v4183, %v4187
    %v4192 = vand.u32 2147483647, %v3987
    %vm4193 = vcmp.eq.f32.partialorder %v4192, 8.507059e+37
    %v4194 = vand.u32 %v3987, 2147483648
    %v4195 = vor.u32 1.1754944e-38, %v4194
    %v4196 = vsel %vm4193, %v4195, %v4191
    %v4197 = vmul.f32 1.0, %v4196
    %v4198 = vrcp.pop %v3988
    %v4199 = vmul.f32 %v3988, %v4198
    %v4200 = vsub.f32 1.0, %v4199
    %v4201 = vmul.f32 %v4198, %v4200
    %v4202 = vadd.f32 %v4198, %v4201
    %vm4203 = vweird.f32 %v3988
    %vm4204 = vweird.f32 %v4198
    %vm4205 = vmor %vm4203, %vm4204
    %v4206 = vsel %vm4205, %v4198, %v4202
    %v4207 = vand.u32 2147483647, %v3988
    %vm4208 = vcmp.eq.f32.partialorder %v4207, 8.507059e+37
    %v4209 = vand.u32 %v3988, 2147483648
    %v4210 = vor.u32 1.1754944e-38, %v4209
    %v4211 = vsel %vm4208, %v4210, %v4206
    %v4212 = vmul.f32 1.0, %v4211
    %v4213 = vrcp.pop %v3989
    %v4214 = vmul.f32 %v3989, %v4213
    %v4215 = vsub.f32 1.0, %v4214
    %v4216 = vmul.f32 %v4213, %v4215
    %v4217 = vadd.f32 %v4213, %v4216
    %vm4218 = vweird.f32 %v3989
    %vm4219 = vweird.f32 %v4213
    %vm4220 = vmor %vm4218, %vm4219
    %v4221 = vsel %vm4220, %v4213, %v4217
    %v4222 = vand.u32 2147483647, %v3989
    %vm4223 = vcmp.eq.f32.partialorder %v4222, 8.507059e+37
    %v4224 = vand.u32 %v3989, 2147483648
    %v4225 = vor.u32 1.1754944e-38, %v4224
    %v4226 = vsel %vm4223, %v4225, %v4221
    %v4227 = vmul.f32 1.0, %v4226
    %v4228 = vrcp.pop %v3990
    %v4229 = vmul.f32 %v3990, %v4228
    %v4230 = vsub.f32 1.0, %v4229
    %v4231 = vmul.f32 %v4228, %v4230
    %v4232 = vadd.f32 %v4228, %v4231
    %vm4233 = vweird.f32 %v3990
    %vm4234 = vweird.f32 %v4228
    %vm4235 = vmor %vm4233, %vm4234
    %v4236 = vsel %vm4235, %v4228, %v4232
    %v4237 = vand.u32 2147483647, %v3990
    %vm4238 = vcmp.eq.f32.partialorder %v4237, 8.507059e+37
    %v4239 = vand.u32 %v3990, 2147483648
    %v4240 = vor.u32 1.1754944e-38, %v4239
    %v4241 = vsel %vm4238, %v4240, %v4236
    %v4242 = vmul.f32 1.0, %v4241
    %v4243 = vrcp.pop %v3991
    %v4244 = vmul.f32 %v3991, %v4243
    %v4245 = vsub.f32 1.0, %v4244
    %v4246 = vmul.f32 %v4243, %v4245
    %v4247 = vadd.f32 %v4243, %v4246
    %vm4248 = vweird.f32 %v3991
    %vm4249 = vweird.f32 %v4243
    %vm4250 = vmor %vm4248, %vm4249
    %v4251 = vsel %vm4250, %v4243, %v4247
    %v4252 = vand.u32 2147483647, %v3991
    %vm4253 = vcmp.eq.f32.partialorder %v4252, 8.507059e+37
    %v4254 = vand.u32 %v3991, 2147483648
    %v4255 = vor.u32 1.1754944e-38, %v4254
    %v4256 = vsel %vm4253, %v4255, %v4251
    %v4257 = vmul.f32 1.0, %v4256
    %v4258 = vrcp.pop %v3992
    %v4259 = vmul.f32 %v3992, %v4258
    %v4260 = vsub.f32 1.0, %v4259
    %v4261 = vmul.f32 %v4258, %v4260
    %v4262 = vadd.f32 %v4258, %v4261
    %vm4263 = vweird.f32 %v3992
    %vm4264 = vweird.f32 %v4258
    %vm4265 = vmor %vm4263, %vm4264
    %v4266 = vsel %vm4265, %v4258, %v4262
    %v4267 = vand.u32 2147483647, %v3992
    %vm4268 = vcmp.eq.f32.partialorder %v4267, 8.507059e+37
    %v4269 = vand.u32 %v3992, 2147483648
    %v4270 = vor.u32 1.1754944e-38, %v4269
    %v4271 = vsel %vm4268, %v4270, %v4266
    %v4272 = vmul.f32 1.0, %v4271
    %v4273 = vrcp.pop %v3993
    %v4274 = vmul.f32 %v3993, %v4273
    %v4275 = vsub.f32 1.0, %v4274
    %v4276 = vmul.f32 %v4273, %v4275
    %v4277 = vadd.f32 %v4273, %v4276
    %vm4278 = vweird.f32 %v3993
    %vm4279 = vweird.f32 %v4273
    %vm4280 = vmor %vm4278, %vm4279
    %v4281 = vsel %vm4280, %v4273, %v4277
    %v4282 = vand.u32 2147483647, %v3993
    %vm4283 = vcmp.eq.f32.partialorder %v4282, 8.507059e+37
    %v4284 = vand.u32 %v3993, 2147483648
    %v4285 = vor.u32 1.1754944e-38, %v4284
    %v4286 = vsel %vm4283, %v4285, %v4281
    %v4287 = vmul.f32 1.0, %v4286
    %v4288 = vrcp.pop %v3994
    %v4289 = vmul.f32 %v3994, %v4288
    %v4290 = vsub.f32 1.0, %v4289
    %v4291 = vmul.f32 %v4288, %v4290
    %v4292 = vadd.f32 %v4288, %v4291
    %vm4293 = vweird.f32 %v3994
    %vm4294 = vweird.f32 %v4288
    %vm4295 = vmor %vm4293, %vm4294
    %v4296 = vsel %vm4295, %v4288, %v4292
    %v4297 = vand.u32 2147483647, %v3994
    %vm4298 = vcmp.eq.f32.partialorder %v4297, 8.507059e+37
    %v4299 = vand.u32 %v3994, 2147483648
    %v4300 = vor.u32 1.1754944e-38, %v4299
    %v4301 = vsel %vm4298, %v4300, %v4296
    %v4302 = vmul.f32 1.0, %v4301
    %v4303 = vrcp.pop %v3995
    %v4304 = vmul.f32 %v3995, %v4303
    %v4305 = vsub.f32 1.0, %v4304
    %v4306 = vmul.f32 %v4303, %v4305
    %v4307 = vadd.f32 %v4303, %v4306
    %vm4308 = vweird.f32 %v3995
    %vm4309 = vweird.f32 %v4303
    %vm4310 = vmor %vm4308, %vm4309
    %v4311 = vsel %vm4310, %v4303, %v4307
    %v4312 = vand.u32 2147483647, %v3995
    %vm4313 = vcmp.eq.f32.partialorder %v4312, 8.507059e+37
    %v4314 = vand.u32 %v3995, 2147483648
    %v4315 = vor.u32 1.1754944e-38, %v4314
    %v4316 = vsel %vm4313, %v4315, %v4311
    %v4317 = vmul.f32 1.0, %v4316
    %v4318 = vrcp.pop %v3996
    %v4319 = vmul.f32 %v3996, %v4318
    %v4320 = vsub.f32 1.0, %v4319
    %v4321 = vmul.f32 %v4318, %v4320
    %v4322 = vadd.f32 %v4318, %v4321
    %vm4323 = vweird.f32 %v3996
    %vm4324 = vweird.f32 %v4318
    %vm4325 = vmor %vm4323, %vm4324
    %v4326 = vsel %vm4325, %v4318, %v4322
    %v4327 = vand.u32 2147483647, %v3996
    %vm4328 = vcmp.eq.f32.partialorder %v4327, 8.507059e+37
    %v4329 = vand.u32 %v3996, 2147483648
    %v4330 = vor.u32 1.1754944e-38, %v4329
    %v4331 = vsel %vm4328, %v4330, %v4326
    %v4332 = vmul.f32 1.0, %v4331
    %v4333 = vrcp.pop %v3997
    %v4334 = vmul.f32 %v3997, %v4333
    %v4335 = vsub.f32 1.0, %v4334
    %v4336 = vmul.f32 %v4333, %v4335
    %v4337 = vadd.f32 %v4333, %v4336
    %vm4338 = vweird.f32 %v3997
    %vm4339 = vweird.f32 %v4333
    %vm4340 = vmor %vm4338, %vm4339
    %v4341 = vsel %vm4340, %v4333, %v4337
    %v4342 = vand.u32 2147483647, %v3997
    %vm4343 = vcmp.eq.f32.partialorder %v4342, 8.507059e+37
    %v4344 = vand.u32 %v3997, 2147483648
    %v4345 = vor.u32 1.1754944e-38, %v4344
    %v4346 = vsel %vm4343, %v4345, %v4341
    %v4347 = vmul.f32 1.0, %v4346
    %v4348 = vrcp.pop %v3998
    %v4349 = vmul.f32 %v3998, %v4348
    %v4350 = vsub.f32 1.0, %v4349
    %v4351 = vmul.f32 %v4348, %v4350
    %v4352 = vadd.f32 %v4348, %v4351
    %vm4353 = vweird.f32 %v3998
    %vm4354 = vweird.f32 %v4348
    %vm4355 = vmor %vm4353, %vm4354
    %v4356 = vsel %vm4355, %v4348, %v4352
    %v4357 = vand.u32 2147483647, %v3998
    %vm4358 = vcmp.eq.f32.partialorder %v4357, 8.507059e+37
    %v4359 = vand.u32 %v3998, 2147483648
    %v4360 = vor.u32 1.1754944e-38, %v4359
    %v4361 = vsel %vm4358, %v4360, %v4356
    %v4362 = vmul.f32 1.0, %v4361
    %v4363 = vrcp.pop %v3999
    %v4364 = vmul.f32 %v3999, %v4363
    %v4365 = vsub.f32 1.0, %v4364
    %v4366 = vmul.f32 %v4363, %v4365
    %v4367 = vadd.f32 %v4363, %v4366
    %vm4368 = vweird.f32 %v3999
    %vm4369 = vweird.f32 %v4363
    %vm4370 = vmor %vm4368, %vm4369
    %v4371 = vsel %vm4370, %v4363, %v4367
    %v4372 = vand.u32 2147483647, %v3999
    %vm4373 = vcmp.eq.f32.partialorder %v4372, 8.507059e+37
    %v4374 = vand.u32 %v3999, 2147483648
    %v4375 = vor.u32 1.1754944e-38, %v4374
    %v4376 = vsel %vm4373, %v4375, %v4371
    %v4377 = vmul.f32 1.0, %v4376
    %v4378 = vrcp.pop %v4000
    %v4379 = vmul.f32 %v4000, %v4378
    %v4380 = vsub.f32 1.0, %v4379
    %v4381 = vmul.f32 %v4378, %v4380
    %v4382 = vadd.f32 %v4378, %v4381
    %vm4383 = vweird.f32 %v4000
    %vm4384 = vweird.f32 %v4378
    %vm4385 = vmor %vm4383, %vm4384
    %v4386 = vsel %vm4385, %v4378, %v4382
    %v4387 = vand.u32 2147483647, %v4000
    %vm4388 = vcmp.eq.f32.partialorder %v4387, 8.507059e+37
    %v4389 = vand.u32 %v4000, 2147483648
    %v4390 = vor.u32 1.1754944e-38, %v4389
    %v4391 = vsel %vm4388, %v4390, %v4386
    %v4392 = vmul.f32 1.0, %v4391
    %v4393 = vrcp.pop %v4001
    %v4394 = vmul.f32 %v4001, %v4393
    %v4395 = vsub.f32 1.0, %v4394
    %v4396 = vmul.f32 %v4393, %v4395
    %v4397 = vadd.f32 %v4393, %v4396
    %vm4398 = vweird.f32 %v4001
    %vm4399 = vweird.f32 %v4393
    %vm4400 = vmor %vm4398, %vm4399
    %v4401 = vsel %vm4400, %v4393, %v4397
    %v4402 = vand.u32 2147483647, %v4001
    %vm4403 = vcmp.eq.f32.partialorder %v4402, 8.507059e+37
    %v4404 = vand.u32 %v4001, 2147483648
    %v4405 = vor.u32 1.1754944e-38, %v4404
    %v4406 = vsel %vm4403, %v4405, %v4401
    %v4407 = vmul.f32 1.0, %v4406
    %v4408 = vrcp.pop %v4002
    %v4409 = vmul.f32 %v4002, %v4408
    %v4410 = vsub.f32 1.0, %v4409
    %v4411 = vmul.f32 %v4408, %v4410
    %v4412 = vadd.f32 %v4408, %v4411
    %vm4413 = vweird.f32 %v4002
    %vm4414 = vweird.f32 %v4408
    %vm4415 = vmor %vm4413, %vm4414
    %v4416 = vsel %vm4415, %v4408, %v4412
    %v4417 = vand.u32 2147483647, %v4002
    %vm4418 = vcmp.eq.f32.partialorder %v4417, 8.507059e+37
    %v4419 = vand.u32 %v4002, 2147483648
    %v4420 = vor.u32 1.1754944e-38, %v4419
    %v4421 = vsel %vm4418, %v4420, %v4416
    %v4422 = vmul.f32 1.0, %v4421
    %4423 = vst [vmem:[%s9] sm:$0xff] %v4017
    %4424 = vst [vmem:[%s9 + $0x8] sm:$0xff] %v4032
    %4425 = vst [vmem:[%s9 + $0x10] sm:$0xff] %v4047
    %4426 = vst [vmem:[%s9 + $0x18] sm:$0xff] %v4062
    %4427 = vst [vmem:[%s9 + $0x20] sm:$0xff] %v4077
    %4428 = vst [vmem:[%s9 + $0x28] sm:$0xff] %v4092
    %4429 = vst [vmem:[%s9 + $0x30] sm:$0xff] %v4107
    %4430 = vst [vmem:[%s9 + $0x38] sm:$0xff] %v4122
    %4431 = vst [vmem:[%s9 + $0x40] sm:$0xff] %v4137
    %4432 = vst [vmem:[%s9 + $0x48] sm:$0xff] %v4152
    %4433 = vst [vmem:[%s9 + $0x50] sm:$0xff] %v4167
    %4434 = vst [vmem:[%s9 + $0x58] sm:$0xff] %v4182
    %4435 = vst [vmem:[%s9 + $0x60] sm:$0xff] %v4197
    %4436 = vst [vmem:[%s9 + $0x68] sm:$0xff] %v4212
    %4437 = vst [vmem:[%s9 + $0x70] sm:$0xff] %v4227
    %4438 = vst [vmem:[%s9 + $0x78] sm:$0xff] %v4242
    %4439 = vst [vmem:[%s9 + $0x80] sm:$0xff] %v4257
    %4440 = vst [vmem:[%s9 + $0x88] sm:$0xff] %v4272
    %4441 = vst [vmem:[%s9 + $0x90] sm:$0xff] %v4287
    %4442 = vst [vmem:[%s9 + $0x98] sm:$0xff] %v4302
    %4443 = vst [vmem:[%s9 + $0xa0] sm:$0xff] %v4317
    %4444 = vst [vmem:[%s9 + $0xa8] sm:$0xff] %v4332
    %4445 = vst [vmem:[%s9 + $0xb0] sm:$0xff] %v4347
    %4446 = vst [vmem:[%s9 + $0xb8] sm:$0xff] %v4362
    %4447 = vst [vmem:[%s9 + $0xc0] sm:$0xff] %v4377
    %4448 = vst [vmem:[%s9 + $0xc8] sm:$0xff] %v4392
    %4449 = vst [vmem:[%s9 + $0xd0] sm:$0xff] %v4407
    %4450 = vst [vmem:[%s9 + $0xd8] sm:$0xff] %v4422
    // Predicated region
    $region58: #{_decoder_forward.1} parent=1 // pred_check
      _
    $region59: #{_decoder_forward.1} parent=1 // pred_check_branch
      %4452 = sbr.rel (0) target = $region61
    $region60: #{_decoder_forward.1} parent=1 // pred_region
      _
    $region61: #{_decoder_forward.1} parent=1 // pred_fallthru
      _
    // Predicated region
    $region62: #{_decoder_forward.1} parent=1 // pred_check
      _
    $region63: #{_decoder_forward.1} parent=1 // pred_check_branch
      %4454 = sbr.rel (0) target = $region65
    $region64: #{_decoder_forward.1} parent=1 // pred_region
      _
    $region65: #{_decoder_forward.1} parent=1 // pred_fallthru
      _
    %4455 = vsyncpa [#allocation6], 1
    %4456 = vsyncpa [#allocation8], 1
    %4457 = vsyncpa [#allocation11], 1

</llo_original>
